<compile_context>
chip_gen: v5e
topology: v5e:2x2
jax: 0.10.0
libtpu: 0.0.40
codegen_flags: <defaults>
</compile_context>

<pallas_src>
import math

import jax
import jax.numpy as jnp
from jax.experimental import pallas as pl
from jax.experimental.pallas import tpu as pltpu

# ----------------------------- config (args) ---------------------------------
PAD_ID = 0
SOS_ID = 1
EOS_ID = 2

ENC_DIM = 48          # args.encoder_dim
D_MODEL = 32          # args.dec_hidden_size
N_HEADS = 4           # args.dec_attn_heads
D_HEAD = D_MODEL // N_HEADS
D_FF = D_MODEL * 4    # d_ff
N_LAYERS = 2          # args.dec_num_layers
VOCAB = 40            # len(tokenizer)
VOCAB_PAD = 128       # lane-dense output projection width (sliced back to VOCAB)
ENC_POS_VOCAB = 144   # nn.Embedding(144, encoder_dim)
USE_ENC_POS_EMB = True

LN_EPS = 1e-6         # OpenNMT transformer layer norms use eps=1e-6
NEG_INF = -1e18       # OpenNMT masked_fill value

MATMUL_DTYPE = jnp.float32   # bf16 at production sizes (fp32 accumulation kept)

# ------------------- packed parameter buffer layout ---------------------------
# Weight slab: (W_ROWS, 128) fp32.  Every block starts on a multiple of 8 rows
# (sublane-aligned static slices inside the kernel).
WCOL = 128

W_ENC = 0                           # enc_transform W   (ENC_DIM, D)
W_OUT = W_ENC + ENC_DIM             # output_layer W    (D, VOCAB_PAD)
W_LAYER0 = W_OUT + D_MODEL          # start of per-layer blocks
LW_SA_QKV = 0                       # fused self-attn QKV   (D, 3D)
LW_SA_O = LW_SA_QKV + D_MODEL       # self-attn out proj    (D, D)
LW_CA_Q = LW_SA_O + D_MODEL         # cross-attn Q          (D, D)
LW_CA_KV = LW_CA_Q + D_MODEL        # fused cross-attn KV   (D, 2D)
LW_CA_O = LW_CA_KV + D_MODEL        # cross-attn out proj   (D, D)
LW_FF_1 = LW_CA_O + D_MODEL         # FFN W1                (D, F)
LW_FF_2 = LW_FF_1 + D_MODEL         # FFN W2                (F, D)
LW_STRIDE = LW_FF_2 + D_FF          # = 320 rows / layer
W_ROWS = W_LAYER0 + N_LAYERS * LW_STRIDE   # = 720 (multiple of 8)

# Bias / LayerNorm slab: (V_ROWS, 128) fp32, one row per vector.
V_ENC_B = 0
V_FINAL_G = 1
V_FINAL_B = 2
V_OUT_B = 3
V_LAYER0 = 4
LV_LN1_G, LV_LN1_B = 0, 1
LV_SA_BQKV = 2
LV_SA_BO = 3
LV_LN2_G, LV_LN2_B = 4, 5
LV_CA_BQ = 6
LV_CA_BKV = 7
LV_CA_BO = 8
LV_FF_LN_G, LV_FF_LN_B = 9, 10
LV_FF_B1 = 11
LV_FF_B2 = 12
LV_STRIDE = 13
V_ROWS = 32   # 4 + 2*13 = 30 used, padded to a multiple of 8


# --------------------------- fused decoder kernel ----------------------------
def _decoder_fwd_kernel(
    enc_in_ref, emb_ref, bias_self_ref, bias_cross_ref, w_ref, v_ref,
    logits_ref, dec_out_ref,
):
    D = D_MODEL
    DH = D_HEAD

    def mm(x, w):
        return jnp.dot(x.astype(MATMUL_DTYPE), w.astype(MATMUL_DTYPE),
                       preferred_element_type=jnp.float32)

    def wslice(row, nrows, ncols):
        # static, sublane-aligned slice of the packed weight slab
        return w_ref[row:row + nrows, 0:ncols]

    def vrow(row, ncols):
        return v_ref[row:row + 1, 0:ncols]            # (1, ncols), broadcasts

    def ln(x, grow, brow):
        # LayerNorm over feature axis (biased variance, eps=1e-6), fp32.
        g = vrow(grow, D)
        b = vrow(brow, D)
        mu = jnp.mean(x, axis=-1, keepdims=True)
        xc = x - mu
        var = jnp.mean(xc * xc, axis=-1, keepdims=True)
        return xc * jax.lax.rsqrt(var + LN_EPS) * g + b

    def attention(q, k, v, bias, wo_row):
        # q: (M, D) [scale already folded into the Q projection],
        # k/v: (Nkv, D), bias: (M, Nkv) block-diagonal additive mask.
        # Each head's context is immediately projected through the matching
        # (DH, D) row-slice of W_o and accumulated -> no ctx scratch.
        acc = None
        for h in range(N_HEADS):
            qh = q[:, h * DH:(h + 1) * DH]
            kh = k[:, h * DH:(h + 1) * DH]
            vh = v[:, h * DH:(h + 1) * DH]
            # q @ k^T via dot_general contracting last axes (no XLU transpose)
            s = jax.lax.dot_general(
                qh.astype(MATMUL_DTYPE), kh.astype(MATMUL_DTYPE),
                (((1,), (1,)), ((), ())),
                preferred_element_type=jnp.float32) + bias          # (M, Nkv)
            m = jnp.max(s, axis=-1, keepdims=True)
            p = jnp.exp(s - m)
            denom = jnp.sum(p, axis=-1, keepdims=True)
            ctx = mm(p, vh) * pl.reciprocal(denom, approx=True)     # (M, DH)
            part = mm(ctx, wslice(wo_row + h * DH, DH, D))          # (M, D)
            acc = part if acc is None else acc + part
        return acc

    # --- enc_transform: memory bank for cross-attention (computed once) ------
    memory = mm(enc_in_ref[...], wslice(W_ENC, ENC_DIM, D)) + vrow(V_ENC_B, D)
    bias_self = bias_self_ref[...]                                   # (M, M)
    bias_cross = bias_cross_ref[...]                                 # (M, B*MEM)

    x = emb_ref[...]                                                 # (M, D)
    for l in range(N_LAYERS):            # static unroll over layers
        wl = W_LAYER0 + l * LW_STRIDE
        vl = V_LAYER0 + l * LV_STRIDE

        # --- masked self-attention (pre-LN), fused (scaled-)QKV projection ----
        xn = ln(x, vl + LV_LN1_G, vl + LV_LN1_B)
        qkv = mm(xn, wslice(wl + LW_SA_QKV, D, 3 * D)) + vrow(vl + LV_SA_BQKV, 3 * D)
        x = x + attention(qkv[:, 0:D], qkv[:, D:2 * D], qkv[:, 2 * D:3 * D],
                          bias_self, wl + LW_SA_O) + vrow(vl + LV_SA_BO, D)

        # --- context attention over memory_bank (block-diag batch mask only) --
        xn = ln(x, vl + LV_LN2_G, vl + LV_LN2_B)
        qc = mm(xn, wslice(wl + LW_CA_Q, D, D)) + vrow(vl + LV_CA_BQ, D)
        kv = mm(memory, wslice(wl + LW_CA_KV, D, 2 * D)) + vrow(vl + LV_CA_BKV, 2 * D)
        x = x + attention(qc, kv[:, 0:D], kv[:, D:2 * D],
                          bias_cross, wl + LW_CA_O) + vrow(vl + LV_CA_BO, D)

        # --- position-wise feed-forward, exact (erf) GELU ----------------------
        xn = ln(x, vl + LV_FF_LN_G, vl + LV_FF_LN_B)
        h = mm(xn, wslice(wl + LW_FF_1, D, D_FF)) + vrow(vl + LV_FF_B1, D_FF)
        h = 0.5 * h * (1.0 + jax.lax.erf(h * (1.0 / math.sqrt(2.0))))
        x = x + mm(h, wslice(wl + LW_FF_2, D_FF, D)) + vrow(vl + LV_FF_B2, D)

    # --- final LayerNorm + lane-dense output projection ------------------------
    dec = ln(x, V_FINAL_G, V_FINAL_B)
    dec_out_ref[...] = dec
    logits_ref[...] = mm(dec, wslice(W_OUT, D, VOCAB_PAD)) + vrow(V_OUT_B, VOCAB_PAD)


def _full_block(ndim):
    return lambda i: (0,) * ndim


def decoder_forward_fused(enc_in, emb, bias_self, bias_cross, w_packed, v_packed):
    """One pallas_call for the whole decoder forward.  Everything fits in VMEM."""
    M = emb.shape[0]
    inputs = [enc_in, emb, bias_self, bias_cross, w_packed, v_packed]
    in_specs = [pl.BlockSpec(a.shape, _full_block(a.ndim)) for a in inputs]
    logits_pad, dec_out = pl.pallas_call(
        _decoder_fwd_kernel,
        out_shape=(jax.ShapeDtypeStruct((M, VOCAB_PAD), jnp.float32),
                   jax.ShapeDtypeStruct((M, D_MODEL), jnp.float32)),
        grid=(1,),
        in_specs=in_specs,
        out_specs=(pl.BlockSpec((M, VOCAB_PAD), _full_block(2)),
                   pl.BlockSpec((M, D_MODEL), _full_block(2))),
        compiler_params=pltpu.CompilerParams(
            dimension_semantics=("arbitrary",)),
    )(*inputs)
    return logits_pad, dec_out


# ------------------------------- JAX glue -------------------------------------
def sinusoid_pe(T, d):
    position = jnp.arange(T, dtype=jnp.float32)[:, None]
    div_term = jnp.exp(jnp.arange(0, d, 2, dtype=jnp.float32)
                       * (-(math.log(10000.0) / d)))
    pe = jnp.zeros((T, d), jnp.float32)
    pe = pe.at[:, 0::2].set(jnp.sin(position * div_term))
    pe = pe.at[:, 1::2].set(jnp.cos(position * div_term))
    return pe


def forward(params, encoder_out, labels):
    """TransformerDecoderAR.forward (training / teacher-forcing mode)."""
    B, MEM, _ = encoder_out.shape
    T = labels.shape[1]
    M = B * T

    # --- enc positional embedding (elementwise; the enc_trans Linear is in-kernel)
    enc = encoder_out
    if USE_ENC_POS_EMB:
        enc = enc + params['enc_pos_emb'][:MEM][None, :, :]
    enc_in = enc.reshape(B * MEM, ENC_DIM)

    # --- dec_embedding: word emb * sqrt(d) + sinusoidal PE (gather stays in XLA)
    emb = jnp.take(params['word_emb'], labels, axis=0)            # (B, T, D)
    emb = emb * math.sqrt(D_MODEL) + sinusoid_pe(T, D_MODEL)[None]
    emb = emb.reshape(M, D_MODEL)

    # --- block-diagonal additive self-attention bias over all B*T rows:
    #     causal + key-pad mask inside each batch block, NEG_INF across batches.
    rows = jnp.arange(M)
    same_b = (rows[:, None] // T) == (rows[None, :] // T)
    future = (rows[None, :] % T) > (rows[:, None] % T)
    pad_key = (labels == PAD_ID).reshape(M)
    mask_self = (~same_b) | pad_key[None, :] | future
    bias_self = jnp.where(mask_self, NEG_INF, 0.0).astype(jnp.float32)   # (M, M)

    # --- block-diagonal cross-attention bias (only cross-batch masking; the
    #     model's memory mask is all-zeros within a batch).
    kv_rows = jnp.arange(B * MEM)
    same_b_cross = (rows[:, None] // T) == (kv_rows[None, :] // MEM)
    bias_cross = jnp.where(same_b_cross, 0.0, NEG_INF).astype(jnp.float32)

    logits_pad, dec_flat = decoder_forward_fused(
        enc_in, emb, bias_self, bias_cross,
        params['w_packed'], params['v_packed'])

    dec_out = dec_flat.reshape(B, T, D_MODEL)
    logits = logits_pad[:, :VOCAB].reshape(B, T, VOCAB)
    return logits[:, :-1], labels[:, 1:], dec_out


# ----------------------------- parameter init ---------------------------------
def _pack_params(p):
    """Pack all decoder weights into two flat fp32 slabs (one-time, at init).

    Also folds the 1/sqrt(DH) attention scale into the Q projections (weights
    AND biases), so the kernel never multiplies by the scale.
    """
    scale = 1.0 / math.sqrt(D_HEAD)
    W = jnp.zeros((W_ROWS, WCOL), jnp.float32)
    V = jnp.zeros((V_ROWS, WCOL), jnp.float32)

    def put_w(buf, row, mat):
        r, c = mat.shape
        return buf.at[row:row + r, 0:c].set(mat)

    def put_v(buf, row, vec):
        vec = vec.reshape(-1)
        return buf.at[row, 0:vec.shape[0]].set(vec)

    W = put_w(W, W_ENC, p['enc_w'])
    W = put_w(W, W_OUT, p['out_w_pad'])
    V = put_v(V, V_ENC_B, p['enc_b'])
    V = put_v(V, V_FINAL_G, p['final_ln_g'])
    V = put_v(V, V_FINAL_B, p['final_ln_b'])
    V = put_v(V, V_OUT_B, p['out_b_pad'])

    lp = p['layers']
    for l in range(N_LAYERS):
        wl = W_LAYER0 + l * LW_STRIDE
        vl = V_LAYER0 + l * LV_STRIDE
        sa_wqkv = lp['sa_wqkv'][l].at[:, 0:D_MODEL].multiply(scale)
        sa_bqkv = lp['sa_bqkv'][l].at[:, 0:D_MODEL].multiply(scale)
        ca_wq = lp['ca_wq'][l] * scale
        ca_bq = lp['ca_bq'][l] * scale

        W = put_w(W, wl + LW_SA_QKV, sa_wqkv)
        W = put_w(W, wl + LW_SA_O, lp['sa_wo'][l])
        W = put_w(W, wl + LW_CA_Q, ca_wq)
        W = put_w(W, wl + LW_CA_KV, lp['ca_wkv'][l])
        W = put_w(W, wl + LW_CA_O, lp['ca_wo'][l])
        W = put_w(W, wl + LW_FF_1, lp['ff_w1'][l])
        W = put_w(W, wl + LW_FF_2, lp['ff_w2'][l])

        V = put_v(V, vl + LV_LN1_G, lp['ln1_g'][l])
        V = put_v(V, vl + LV_LN1_B, lp['ln1_b'][l])
        V = put_v(V, vl + LV_SA_BQKV, sa_bqkv)
        V = put_v(V, vl + LV_SA_BO, lp['sa_bo'][l])
        V = put_v(V, vl + LV_LN2_G, lp['ln2_g'][l])
        V = put_v(V, vl + LV_LN2_B, lp['ln2_b'][l])
        V = put_v(V, vl + LV_CA_BQ, ca_bq)
        V = put_v(V, vl + LV_CA_BKV, lp['ca_bkv'][l])
        V = put_v(V, vl + LV_CA_BO, lp['ca_bo'][l])
        V = put_v(V, vl + LV_FF_LN_G, lp['ff_ln_g'][l])
        V = put_v(V, vl + LV_FF_LN_B, lp['ff_ln_b'][l])
        V = put_v(V, vl + LV_FF_B1, lp['ff_b1'][l])
        V = put_v(V, vl + LV_FF_B2, lp['ff_b2'][l])
    return W, V


def init_params(key):
    keys = iter(jax.random.split(key, 32))

    def dense(shape):
        return jax.random.normal(next(keys), shape, jnp.float32) * 0.02

    L, D, F = N_LAYERS, D_MODEL, D_FF
    raw = {}
    raw['enc_w'] = dense((ENC_DIM, D))
    raw['enc_b'] = jnp.zeros((1, D), jnp.float32)

    ones_v = jnp.ones((L, 1, D), jnp.float32)
    zeros_v = jnp.zeros((L, 1, D), jnp.float32)
    raw['layers'] = {
        'ln1_g': ones_v, 'ln1_b': zeros_v,
        'sa_wqkv': dense((L, D, 3 * D)),
        'sa_bqkv': jnp.zeros((L, 1, 3 * D), jnp.float32),
        'sa_wo': dense((L, D, D)), 'sa_bo': zeros_v,
        'ln2_g': ones_v, 'ln2_b': zeros_v,
        'ca_wq': dense((L, D, D)), 'ca_bq': zeros_v,
        'ca_wkv': dense((L, D, 2 * D)),
        'ca_bkv': jnp.zeros((L, 1, 2 * D), jnp.float32),
        'ca_wo': dense((L, D, D)), 'ca_bo': zeros_v,
        'ff_ln_g': ones_v, 'ff_ln_b': zeros_v,
        'ff_w1': dense((L, D, F)), 'ff_b1': jnp.zeros((L, 1, F), jnp.float32),
        'ff_w2': dense((L, F, D)), 'ff_b2': zeros_v,
    }
    raw['final_ln_g'] = jnp.ones((1, D), jnp.float32)
    raw['final_ln_b'] = jnp.zeros((1, D), jnp.float32)

    out_w = dense((D, VOCAB))
    # lane-dense output projection: pad vocab 40 -> 128 with zero columns.
    raw['out_w_pad'] = jnp.pad(out_w, ((0, 0), (0, VOCAB_PAD - VOCAB)))
    raw['out_b_pad'] = jnp.zeros((1, VOCAB_PAD), jnp.float32)

    w_packed, v_packed = _pack_params(raw)

    p = {'w_packed': w_packed, 'v_packed': v_packed}
    p['enc_pos_emb'] = dense((ENC_POS_VOCAB, ENC_DIM))
    word = dense((VOCAB, D))
    p['word_emb'] = word.at[PAD_ID].set(0.0)     # padding_idx row zeroed
    return p


# ---------------------------------- main ---------------------------------------
if __name__ == "__main__":
    # TODO(synk): decode() (greedy/beam search with dynamic state pruning) is
    #             host-side control flow and is not translated; only forward() is.
    # TODO(synk): the GraphPredictor 'edges' head of Decoder is not exercised by
    #             this (TransformerDecoderAR) forward path and is not translated.
    key = jax.random.PRNGKey(0)
    k_params, k_enc = jax.random.split(key)

    B = 2           # batch
    MEM = 16        # number of encoder tokens (e.g. flattened 4x4 feature map)
    T = 8           # target sequence length

    params = init_params(k_params)
    encoder_out = jax.random.normal(k_enc, (B, MEM, ENC_DIM), jnp.float32)
    labels = jnp.array([[SOS_ID, 5, 7, 9, 3, EOS_ID, PAD_ID, PAD_ID],
                        [SOS_ID, 4, 8, 6, EOS_ID, PAD_ID, PAD_ID, PAD_ID]],
                       dtype=jnp.int32)

    fwd = jax.jit(forward)
    logits, shifted_labels, dec_out = fwd(params, encoder_out, labels)
    jax.block_until_ready((logits, shifted_labels, dec_out))

    assert logits.shape == (B, T - 1, VOCAB)
    assert shifted_labels.shape == (B, T - 1)
    assert dec_out.shape == (B, T, D_MODEL)
    print("KERNEL_OK")
</pallas_src>

<mosaic_0001>
module attributes {stable_mosaic.version = 11 : i64} {
  func.func @_decoder_fwd_kernel(%arg0: i32, %arg1: memref<32x48xf32, #tpu.memory_space<vmem>>, %arg2: memref<16x32xf32, #tpu.memory_space<vmem>>, %arg3: memref<16x16xf32, #tpu.memory_space<vmem>>, %arg4: memref<16x32xf32, #tpu.memory_space<vmem>>, %arg5: memref<720x128xf32, #tpu.memory_space<vmem>>, %arg6: memref<32x128xf32, #tpu.memory_space<vmem>>, %arg7: memref<16x128xf32, #tpu.memory_space<vmem>>, %arg8: memref<16x32xf32, #tpu.memory_space<vmem>>) attributes {dimension_semantics = [#tpu.dimension_semantics<arbitrary>], iteration_bounds = array<i64: 1>, scalar_prefetch = 0 : i64, scratch_operands = 0 : i64, tpu.core_type = #tpu.core_type<tc>, window_params = [{pipeline_mode = #tpu.pipeline_mode<synchronous>, transform_indices = @transform_0, window_bounds = array<i64: 32, 48>}, {pipeline_mode = #tpu.pipeline_mode<synchronous>, transform_indices = @transform_1, window_bounds = array<i64: 16, 32>}, {pipeline_mode = #tpu.pipeline_mode<synchronous>, transform_indices = @transform_2, window_bounds = array<i64: 16, 16>}, {pipeline_mode = #tpu.pipeline_mode<synchronous>, transform_indices = @transform_3, window_bounds = array<i64: 16, 32>}, {pipeline_mode = #tpu.pipeline_mode<synchronous>, transform_indices = @transform_4, window_bounds = array<i64: 720, 128>}, {pipeline_mode = #tpu.pipeline_mode<synchronous>, transform_indices = @transform_5, window_bounds = array<i64: 32, 128>}, {pipeline_mode = #tpu.pipeline_mode<synchronous>, transform_indices = @transform_6, window_bounds = array<i64: 16, 128>}, {pipeline_mode = #tpu.pipeline_mode<synchronous>, transform_indices = @transform_7, window_bounds = array<i64: 16, 32>}]} {
    %c0 = arith.constant 0 : index
    %c0_0 = arith.constant 0 : index
    %0 = vector.load %arg1[%c0, %c0_0] : memref<32x48xf32, #tpu.memory_space<vmem>>, vector<32x48xf32>
    %c0_1 = arith.constant 0 : index
    %c0_2 = arith.constant 0 : index
    %1 = vector.load %arg5[%c0_1, %c0_2] : memref<720x128xf32, #tpu.memory_space<vmem>>, vector<48x32xf32>
    %cst = arith.constant dense<0.000000e+00> : vector<32x32xf32>
    %2 = tpu.matmul %0, %1, %cst {dimension_numbers = #tpu.dot_dimension_numbers<[1], [0], [0], [1], [0, 0, 1, 1], [], []>} : vector<32x48xf32>, vector<48x32xf32>, vector<32x32xf32> -> vector<32x32xf32>
    %c0_3 = arith.constant 0 : index
    %c0_4 = arith.constant 0 : index
    %3 = vector.load %arg6[%c0_3, %c0_4] : memref<32x128xf32, #tpu.memory_space<vmem>>, vector<1x32xf32>
    %4 = vector.broadcast %3 : vector<1x32xf32> to vector<32x32xf32>
    %5 = arith.addf %2, %4 : vector<32x32xf32>
    %c0_5 = arith.constant 0 : index
    %c0_6 = arith.constant 0 : index
    %6 = vector.load %arg3[%c0_5, %c0_6] : memref<16x16xf32, #tpu.memory_space<vmem>>, vector<16x16xf32>
    %c0_7 = arith.constant 0 : index
    %c0_8 = arith.constant 0 : index
    %7 = vector.load %arg4[%c0_7, %c0_8] : memref<16x32xf32, #tpu.memory_space<vmem>>, vector<16x32xf32>
    %c0_9 = arith.constant 0 : index
    %c0_10 = arith.constant 0 : index
    %8 = vector.load %arg2[%c0_9, %c0_10] : memref<16x32xf32, #tpu.memory_space<vmem>>, vector<16x32xf32>
    %c4 = arith.constant 4 : index
    %c0_11 = arith.constant 0 : index
    %9 = vector.load %arg6[%c4, %c0_11] : memref<32x128xf32, #tpu.memory_space<vmem>>, vector<1x32xf32>
    %c5 = arith.constant 5 : index
    %c0_12 = arith.constant 0 : index
    %10 = vector.load %arg6[%c5, %c0_12] : memref<32x128xf32, #tpu.memory_space<vmem>>, vector<1x32xf32>
    %cst_13 = arith.constant dense<0.000000e+00> : vector<16xf32>
    %11 = vector.multi_reduction <add>, %8, %cst_13 [1] : vector<16x32xf32> to vector<16xf32>
    %12 = vector.shape_cast %11 : vector<16xf32> to vector<16x1xf32>
    %cst_14 = arith.constant 3.200000e+01 : f32
    %13 = vector.broadcast %cst_14 : f32 to vector<16x1xf32>
    %14 = arith.divf %12, %13 : vector<16x1xf32>
    %15 = vector.broadcast %14 : vector<16x1xf32> to vector<16x32xf32>
    %16 = arith.subf %8, %15 : vector<16x32xf32>
    %17 = arith.mulf %16, %16 : vector<16x32xf32>
    %cst_15 = arith.constant dense<0.000000e+00> : vector<16xf32>
    %18 = vector.multi_reduction <add>, %17, %cst_15 [1] : vector<16x32xf32> to vector<16xf32>
    %19 = vector.shape_cast %18 : vector<16xf32> to vector<16x1xf32>
    %cst_16 = arith.constant 3.200000e+01 : f32
    %20 = vector.broadcast %cst_16 : f32 to vector<16x1xf32>
    %21 = arith.divf %19, %20 : vector<16x1xf32>
    %cst_17 = arith.constant 9.99999997E-7 : f32
    %22 = vector.broadcast %cst_17 : f32 to vector<16x1xf32>
    %23 = arith.addf %21, %22 : vector<16x1xf32>
    %24 = math.rsqrt %23 : vector<16x1xf32>
    %25 = vector.broadcast %24 : vector<16x1xf32> to vector<16x32xf32>
    %26 = arith.mulf %16, %25 : vector<16x32xf32>
    %27 = vector.broadcast %9 : vector<1x32xf32> to vector<16x32xf32>
    %28 = arith.mulf %26, %27 : vector<16x32xf32>
    %29 = vector.broadcast %10 : vector<1x32xf32> to vector<16x32xf32>
    %30 = arith.addf %28, %29 : vector<16x32xf32>
    %c80 = arith.constant 80 : index
    %c0_18 = arith.constant 0 : index
    %31 = vector.load %arg5[%c80, %c0_18] : memref<720x128xf32, #tpu.memory_space<vmem>>, vector<32x96xf32>
    %cst_19 = arith.constant dense<0.000000e+00> : vector<16x96xf32>
    %32 = tpu.matmul %30, %31, %cst_19 {dimension_numbers = #tpu.dot_dimension_numbers<[1], [0], [0], [1], [0, 0, 1, 1], [], []>} : vector<16x32xf32>, vector<32x96xf32>, vector<16x96xf32> -> vector<16x96xf32>
    %c6 = arith.constant 6 : index
    %c0_20 = arith.constant 0 : index
    %33 = vector.load %arg6[%c6, %c0_20] : memref<32x128xf32, #tpu.memory_space<vmem>>, vector<1x96xf32>
    %34 = vector.broadcast %33 : vector<1x96xf32> to vector<16x96xf32>
    %35 = arith.addf %32, %34 : vector<16x96xf32>
    %36 = vector.extract_strided_slice %35 {offsets = [0, 0], sizes = [16, 32], strides = [1, 1]} : vector<16x96xf32> to vector<16x32xf32>
    %37 = vector.extract_strided_slice %35 {offsets = [0, 32], sizes = [16, 32], strides = [1, 1]} : vector<16x96xf32> to vector<16x32xf32>
    %38 = vector.extract_strided_slice %35 {offsets = [0, 64], sizes = [16, 32], strides = [1, 1]} : vector<16x96xf32> to vector<16x32xf32>
    %39 = vector.extract_strided_slice %36 {offsets = [0, 0], sizes = [16, 8], strides = [1, 1]} : vector<16x32xf32> to vector<16x8xf32>
    %40 = vector.extract_strided_slice %37 {offsets = [0, 0], sizes = [16, 8], strides = [1, 1]} : vector<16x32xf32> to vector<16x8xf32>
    %41 = vector.extract_strided_slice %38 {offsets = [0, 0], sizes = [16, 8], strides = [1, 1]} : vector<16x32xf32> to vector<16x8xf32>
    %cst_21 = arith.constant dense<0.000000e+00> : vector<16x16xf32>
    %42 = tpu.matmul %39, %40, %cst_21 {dimension_numbers = #tpu.dot_dimension_numbers<[1], [1], [0], [0], [0, 0, 1, 0], [], []>} : vector<16x8xf32>, vector<16x8xf32>, vector<16x16xf32> -> vector<16x16xf32>
    %43 = arith.addf %42, %6 : vector<16x16xf32>
    %cst_22 = arith.constant dense<0xFF800000> : vector<16xf32>
    %44 = vector.multi_reduction <maximumf>, %43, %cst_22 [1] : vector<16x16xf32> to vector<16xf32>
    %45 = vector.shape_cast %44 : vector<16xf32> to vector<16x1xf32>
    %46 = vector.broadcast %45 : vector<16x1xf32> to vector<16x16xf32>
    %47 = arith.subf %43, %46 : vector<16x16xf32>
    %48 = math.exp %47 : vector<16x16xf32>
    %cst_23 = arith.constant dense<0.000000e+00> : vector<16xf32>
    %49 = vector.multi_reduction <add>, %48, %cst_23 [1] : vector<16x16xf32> to vector<16xf32>
    %50 = vector.shape_cast %49 : vector<16xf32> to vector<16x1xf32>
    %cst_24 = arith.constant dense<0.000000e+00> : vector<16x8xf32>
    %51 = tpu.matmul %48, %41, %cst_24 {dimension_numbers = #tpu.dot_dimension_numbers<[1], [0], [0], [1], [0, 0, 1, 1], [], []>} : vector<16x16xf32>, vector<16x8xf32>, vector<16x8xf32> -> vector<16x8xf32>
    %52 = tpu.reciprocal %50 {approx = true} : vector<16x1xf32> -> vector<16x1xf32>
    %53 = vector.broadcast %52 : vector<16x1xf32> to vector<16x8xf32>
    %54 = arith.mulf %51, %53 : vector<16x8xf32>
    %c112 = arith.constant 112 : index
    %c0_25 = arith.constant 0 : index
    %55 = vector.load %arg5[%c112, %c0_25] : memref<720x128xf32, #tpu.memory_space<vmem>>, vector<8x32xf32>
    %cst_26 = arith.constant dense<0.000000e+00> : vector<16x32xf32>
    %56 = tpu.matmul %54, %55, %cst_26 {dimension_numbers = #tpu.dot_dimension_numbers<[1], [0], [0], [1], [0, 0, 1, 1], [], []>} : vector<16x8xf32>, vector<8x32xf32>, vector<16x32xf32> -> vector<16x32xf32>
    %57 = vector.extract_strided_slice %36 {offsets = [0, 8], sizes = [16, 8], strides = [1, 1]} : vector<16x32xf32> to vector<16x8xf32>
    %58 = vector.extract_strided_slice %37 {offsets = [0, 8], sizes = [16, 8], strides = [1, 1]} : vector<16x32xf32> to vector<16x8xf32>
    %59 = vector.extract_strided_slice %38 {offsets = [0, 8], sizes = [16, 8], strides = [1, 1]} : vector<16x32xf32> to vector<16x8xf32>
    %cst_27 = arith.constant dense<0.000000e+00> : vector<16x16xf32>
    %60 = tpu.matmul %57, %58, %cst_27 {dimension_numbers = #tpu.dot_dimension_numbers<[1], [1], [0], [0], [0, 0, 1, 0], [], []>} : vector<16x8xf32>, vector<16x8xf32>, vector<16x16xf32> -> vector<16x16xf32>
    %61 = arith.addf %60, %6 : vector<16x16xf32>
    %cst_28 = arith.constant dense<0xFF800000> : vector<16xf32>
    %62 = vector.multi_reduction <maximumf>, %61, %cst_28 [1] : vector<16x16xf32> to vector<16xf32>
    %63 = vector.shape_cast %62 : vector<16xf32> to vector<16x1xf32>
    %64 = vector.broadcast %63 : vector<16x1xf32> to vector<16x16xf32>
    %65 = arith.subf %61, %64 : vector<16x16xf32>
    %66 = math.exp %65 : vector<16x16xf32>
    %cst_29 = arith.constant dense<0.000000e+00> : vector<16xf32>
    %67 = vector.multi_reduction <add>, %66, %cst_29 [1] : vector<16x16xf32> to vector<16xf32>
    %68 = vector.shape_cast %67 : vector<16xf32> to vector<16x1xf32>
    %cst_30 = arith.constant dense<0.000000e+00> : vector<16x8xf32>
    %69 = tpu.matmul %66, %59, %cst_30 {dimension_numbers = #tpu.dot_dimension_numbers<[1], [0], [0], [1], [0, 0, 1, 1], [], []>} : vector<16x16xf32>, vector<16x8xf32>, vector<16x8xf32> -> vector<16x8xf32>
    %70 = tpu.reciprocal %68 {approx = true} : vector<16x1xf32> -> vector<16x1xf32>
    %71 = vector.broadcast %70 : vector<16x1xf32> to vector<16x8xf32>
    %72 = arith.mulf %69, %71 : vector<16x8xf32>
    %c120 = arith.constant 120 : index
    %c0_31 = arith.constant 0 : index
    %73 = vector.load %arg5[%c120, %c0_31] : memref<720x128xf32, #tpu.memory_space<vmem>>, vector<8x32xf32>
    %cst_32 = arith.constant dense<0.000000e+00> : vector<16x32xf32>
    %74 = tpu.matmul %72, %73, %cst_32 {dimension_numbers = #tpu.dot_dimension_numbers<[1], [0], [0], [1], [0, 0, 1, 1], [], []>} : vector<16x8xf32>, vector<8x32xf32>, vector<16x32xf32> -> vector<16x32xf32>
    %75 = arith.addf %56, %74 : vector<16x32xf32>
    %76 = vector.extract_strided_slice %36 {offsets = [0, 16], sizes = [16, 8], strides = [1, 1]} : vector<16x32xf32> to vector<16x8xf32>
    %77 = vector.extract_strided_slice %37 {offsets = [0, 16], sizes = [16, 8], strides = [1, 1]} : vector<16x32xf32> to vector<16x8xf32>
    %78 = vector.extract_strided_slice %38 {offsets = [0, 16], sizes = [16, 8], strides = [1, 1]} : vector<16x32xf32> to vector<16x8xf32>
    %cst_33 = arith.constant dense<0.000000e+00> : vector<16x16xf32>
    %79 = tpu.matmul %76, %77, %cst_33 {dimension_numbers = #tpu.dot_dimension_numbers<[1], [1], [0], [0], [0, 0, 1, 0], [], []>} : vector<16x8xf32>, vector<16x8xf32>, vector<16x16xf32> -> vector<16x16xf32>
    %80 = arith.addf %79, %6 : vector<16x16xf32>
    %cst_34 = arith.constant dense<0xFF800000> : vector<16xf32>
    %81 = vector.multi_reduction <maximumf>, %80, %cst_34 [1] : vector<16x16xf32> to vector<16xf32>
    %82 = vector.shape_cast %81 : vector<16xf32> to vector<16x1xf32>
    %83 = vector.broadcast %82 : vector<16x1xf32> to vector<16x16xf32>
    %84 = arith.subf %80, %83 : vector<16x16xf32>
    %85 = math.exp %84 : vector<16x16xf32>
    %cst_35 = arith.constant dense<0.000000e+00> : vector<16xf32>
    %86 = vector.multi_reduction <add>, %85, %cst_35 [1] : vector<16x16xf32> to vector<16xf32>
    %87 = vector.shape_cast %86 : vector<16xf32> to vector<16x1xf32>
    %cst_36 = arith.constant dense<0.000000e+00> : vector<16x8xf32>
    %88 = tpu.matmul %85, %78, %cst_36 {dimension_numbers = #tpu.dot_dimension_numbers<[1], [0], [0], [1], [0, 0, 1, 1], [], []>} : vector<16x16xf32>, vector<16x8xf32>, vector<16x8xf32> -> vector<16x8xf32>
    %89 = tpu.reciprocal %87 {approx = true} : vector<16x1xf32> -> vector<16x1xf32>
    %90 = vector.broadcast %89 : vector<16x1xf32> to vector<16x8xf32>
    %91 = arith.mulf %88, %90 : vector<16x8xf32>
    %c128 = arith.constant 128 : index
    %c0_37 = arith.constant 0 : index
    %92 = vector.load %arg5[%c128, %c0_37] : memref<720x128xf32, #tpu.memory_space<vmem>>, vector<8x32xf32>
    %cst_38 = arith.constant dense<0.000000e+00> : vector<16x32xf32>
    %93 = tpu.matmul %91, %92, %cst_38 {dimension_numbers = #tpu.dot_dimension_numbers<[1], [0], [0], [1], [0, 0, 1, 1], [], []>} : vector<16x8xf32>, vector<8x32xf32>, vector<16x32xf32> -> vector<16x32xf32>
    %94 = arith.addf %75, %93 : vector<16x32xf32>
    %95 = vector.extract_strided_slice %36 {offsets = [0, 24], sizes = [16, 8], strides = [1, 1]} : vector<16x32xf32> to vector<16x8xf32>
    %96 = vector.extract_strided_slice %37 {offsets = [0, 24], sizes = [16, 8], strides = [1, 1]} : vector<16x32xf32> to vector<16x8xf32>
    %97 = vector.extract_strided_slice %38 {offsets = [0, 24], sizes = [16, 8], strides = [1, 1]} : vector<16x32xf32> to vector<16x8xf32>
    %cst_39 = arith.constant dense<0.000000e+00> : vector<16x16xf32>
    %98 = tpu.matmul %95, %96, %cst_39 {dimension_numbers = #tpu.dot_dimension_numbers<[1], [1], [0], [0], [0, 0, 1, 0], [], []>} : vector<16x8xf32>, vector<16x8xf32>, vector<16x16xf32> -> vector<16x16xf32>
    %99 = arith.addf %98, %6 : vector<16x16xf32>
    %cst_40 = arith.constant dense<0xFF800000> : vector<16xf32>
    %100 = vector.multi_reduction <maximumf>, %99, %cst_40 [1] : vector<16x16xf32> to vector<16xf32>
    %101 = vector.shape_cast %100 : vector<16xf32> to vector<16x1xf32>
    %102 = vector.broadcast %101 : vector<16x1xf32> to vector<16x16xf32>
    %103 = arith.subf %99, %102 : vector<16x16xf32>
    %104 = math.exp %103 : vector<16x16xf32>
    %cst_41 = arith.constant dense<0.000000e+00> : vector<16xf32>
    %105 = vector.multi_reduction <add>, %104, %cst_41 [1] : vector<16x16xf32> to vector<16xf32>
    %106 = vector.shape_cast %105 : vector<16xf32> to vector<16x1xf32>
    %cst_42 = arith.constant dense<0.000000e+00> : vector<16x8xf32>
    %107 = tpu.matmul %104, %97, %cst_42 {dimension_numbers = #tpu.dot_dimension_numbers<[1], [0], [0], [1], [0, 0, 1, 1], [], []>} : vector<16x16xf32>, vector<16x8xf32>, vector<16x8xf32> -> vector<16x8xf32>
    %108 = tpu.reciprocal %106 {approx = true} : vector<16x1xf32> -> vector<16x1xf32>
    %109 = vector.broadcast %108 : vector<16x1xf32> to vector<16x8xf32>
    %110 = arith.mulf %107, %109 : vector<16x8xf32>
    %c136 = arith.constant 136 : index
    %c0_43 = arith.constant 0 : index
    %111 = vector.load %arg5[%c136, %c0_43] : memref<720x128xf32, #tpu.memory_space<vmem>>, vector<8x32xf32>
    %cst_44 = arith.constant dense<0.000000e+00> : vector<16x32xf32>
    %112 = tpu.matmul %110, %111, %cst_44 {dimension_numbers = #tpu.dot_dimension_numbers<[1], [0], [0], [1], [0, 0, 1, 1], [], []>} : vector<16x8xf32>, vector<8x32xf32>, vector<16x32xf32> -> vector<16x32xf32>
    %113 = arith.addf %94, %112 : vector<16x32xf32>
    %114 = arith.addf %8, %113 : vector<16x32xf32>
    %c7 = arith.constant 7 : index
    %c0_45 = arith.constant 0 : index
    %115 = vector.load %arg6[%c7, %c0_45] : memref<32x128xf32, #tpu.memory_space<vmem>>, vector<1x32xf32>
    %116 = vector.broadcast %115 : vector<1x32xf32> to vector<16x32xf32>
    %117 = arith.addf %114, %116 : vector<16x32xf32>
    %c8 = arith.constant 8 : index
    %c0_46 = arith.constant 0 : index
    %118 = vector.load %arg6[%c8, %c0_46] : memref<32x128xf32, #tpu.memory_space<vmem>>, vector<1x32xf32>
    %c9 = arith.constant 9 : index
    %c0_47 = arith.constant 0 : index
    %119 = vector.load %arg6[%c9, %c0_47] : memref<32x128xf32, #tpu.memory_space<vmem>>, vector<1x32xf32>
    %cst_48 = arith.constant dense<0.000000e+00> : vector<16xf32>
    %120 = vector.multi_reduction <add>, %117, %cst_48 [1] : vector<16x32xf32> to vector<16xf32>
    %121 = vector.shape_cast %120 : vector<16xf32> to vector<16x1xf32>
    %cst_49 = arith.constant 3.200000e+01 : f32
    %122 = vector.broadcast %cst_49 : f32 to vector<16x1xf32>
    %123 = arith.divf %121, %122 : vector<16x1xf32>
    %124 = vector.broadcast %123 : vector<16x1xf32> to vector<16x32xf32>
    %125 = arith.subf %117, %124 : vector<16x32xf32>
    %126 = arith.mulf %125, %125 : vector<16x32xf32>
    %cst_50 = arith.constant dense<0.000000e+00> : vector<16xf32>
    %127 = vector.multi_reduction <add>, %126, %cst_50 [1] : vector<16x32xf32> to vector<16xf32>
    %128 = vector.shape_cast %127 : vector<16xf32> to vector<16x1xf32>
    %cst_51 = arith.constant 3.200000e+01 : f32
    %129 = vector.broadcast %cst_51 : f32 to vector<16x1xf32>
    %130 = arith.divf %128, %129 : vector<16x1xf32>
    %cst_52 = arith.constant 9.99999997E-7 : f32
    %131 = vector.broadcast %cst_52 : f32 to vector<16x1xf32>
    %132 = arith.addf %130, %131 : vector<16x1xf32>
    %133 = math.rsqrt %132 : vector<16x1xf32>
    %134 = vector.broadcast %133 : vector<16x1xf32> to vector<16x32xf32>
    %135 = arith.mulf %125, %134 : vector<16x32xf32>
    %136 = vector.broadcast %118 : vector<1x32xf32> to vector<16x32xf32>
    %137 = arith.mulf %135, %136 : vector<16x32xf32>
    %138 = vector.broadcast %119 : vector<1x32xf32> to vector<16x32xf32>
    %139 = arith.addf %137, %138 : vector<16x32xf32>
    %c144 = arith.constant 144 : index
    %c0_53 = arith.constant 0 : index
    %140 = vector.load %arg5[%c144, %c0_53] : memref<720x128xf32, #tpu.memory_space<vmem>>, vector<32x32xf32>
    %cst_54 = arith.constant dense<0.000000e+00> : vector<16x32xf32>
    %141 = tpu.matmul %139, %140, %cst_54 {dimension_numbers = #tpu.dot_dimension_numbers<[1], [0], [0], [1], [0, 0, 1, 1], [], []>} : vector<16x32xf32>, vector<32x32xf32>, vector<16x32xf32> -> vector<16x32xf32>
    %c10 = arith.constant 10 : index
    %c0_55 = arith.constant 0 : index
    %142 = vector.load %arg6[%c10, %c0_55] : memref<32x128xf32, #tpu.memory_space<vmem>>, vector<1x32xf32>
    %143 = vector.broadcast %142 : vector<1x32xf32> to vector<16x32xf32>
    %144 = arith.addf %141, %143 : vector<16x32xf32>
    %c176 = arith.constant 176 : index
    %c0_56 = arith.constant 0 : index
    %145 = vector.load %arg5[%c176, %c0_56] : memref<720x128xf32, #tpu.memory_space<vmem>>, vector<32x64xf32>
    %cst_57 = arith.constant dense<0.000000e+00> : vector<32x64xf32>
    %146 = tpu.matmul %5, %145, %cst_57 {dimension_numbers = #tpu.dot_dimension_numbers<[1], [0], [0], [1], [0, 0, 1, 1], [], []>} : vector<32x32xf32>, vector<32x64xf32>, vector<32x64xf32> -> vector<32x64xf32>
    %c11 = arith.constant 11 : index
    %c0_58 = arith.constant 0 : index
    %147 = vector.load %arg6[%c11, %c0_58] : memref<32x128xf32, #tpu.memory_space<vmem>>, vector<1x64xf32>
    %148 = vector.broadcast %147 : vector<1x64xf32> to vector<32x64xf32>
    %149 = arith.addf %146, %148 : vector<32x64xf32>
    %150 = vector.extract_strided_slice %149 {offsets = [0, 0], sizes = [32, 32], strides = [1, 1]} : vector<32x64xf32> to vector<32x32xf32>
    %151 = vector.extract_strided_slice %149 {offsets = [0, 32], sizes = [32, 32], strides = [1, 1]} : vector<32x64xf32> to vector<32x32xf32>
    %152 = vector.extract_strided_slice %144 {offsets = [0, 0], sizes = [16, 8], strides = [1, 1]} : vector<16x32xf32> to vector<16x8xf32>
    %153 = vector.extract_strided_slice %150 {offsets = [0, 0], sizes = [32, 8], strides = [1, 1]} : vector<32x32xf32> to vector<32x8xf32>
    %154 = vector.extract_strided_slice %151 {offsets = [0, 0], sizes = [32, 8], strides = [1, 1]} : vector<32x32xf32> to vector<32x8xf32>
    %cst_59 = arith.constant dense<0.000000e+00> : vector<16x32xf32>
    %155 = tpu.matmul %152, %153, %cst_59 {dimension_numbers = #tpu.dot_dimension_numbers<[1], [1], [0], [0], [0, 0, 1, 0], [], []>} : vector<16x8xf32>, vector<32x8xf32>, vector<16x32xf32> -> vector<16x32xf32>
    %156 = arith.addf %155, %7 : vector<16x32xf32>
    %cst_60 = arith.constant dense<0xFF800000> : vector<16xf32>
    %157 = vector.multi_reduction <maximumf>, %156, %cst_60 [1] : vector<16x32xf32> to vector<16xf32>
    %158 = vector.shape_cast %157 : vector<16xf32> to vector<16x1xf32>
    %159 = vector.broadcast %158 : vector<16x1xf32> to vector<16x32xf32>
    %160 = arith.subf %156, %159 : vector<16x32xf32>
    %161 = math.exp %160 : vector<16x32xf32>
    %cst_61 = arith.constant dense<0.000000e+00> : vector<16xf32>
    %162 = vector.multi_reduction <add>, %161, %cst_61 [1] : vector<16x32xf32> to vector<16xf32>
    %163 = vector.shape_cast %162 : vector<16xf32> to vector<16x1xf32>
    %cst_62 = arith.constant dense<0.000000e+00> : vector<16x8xf32>
    %164 = tpu.matmul %161, %154, %cst_62 {dimension_numbers = #tpu.dot_dimension_numbers<[1], [0], [0], [1], [0, 0, 1, 1], [], []>} : vector<16x32xf32>, vector<32x8xf32>, vector<16x8xf32> -> vector<16x8xf32>
    %165 = tpu.reciprocal %163 {approx = true} : vector<16x1xf32> -> vector<16x1xf32>
    %166 = vector.broadcast %165 : vector<16x1xf32> to vector<16x8xf32>
    %167 = arith.mulf %164, %166 : vector<16x8xf32>
    %c208 = arith.constant 208 : index
    %c0_63 = arith.constant 0 : index
    %168 = vector.load %arg5[%c208, %c0_63] : memref<720x128xf32, #tpu.memory_space<vmem>>, vector<8x32xf32>
    %cst_64 = arith.constant dense<0.000000e+00> : vector<16x32xf32>
    %169 = tpu.matmul %167, %168, %cst_64 {dimension_numbers = #tpu.dot_dimension_numbers<[1], [0], [0], [1], [0, 0, 1, 1], [], []>} : vector<16x8xf32>, vector<8x32xf32>, vector<16x32xf32> -> vector<16x32xf32>
    %170 = vector.extract_strided_slice %144 {offsets = [0, 8], sizes = [16, 8], strides = [1, 1]} : vector<16x32xf32> to vector<16x8xf32>
    %171 = vector.extract_strided_slice %150 {offsets = [0, 8], sizes = [32, 8], strides = [1, 1]} : vector<32x32xf32> to vector<32x8xf32>
    %172 = vector.extract_strided_slice %151 {offsets = [0, 8], sizes = [32, 8], strides = [1, 1]} : vector<32x32xf32> to vector<32x8xf32>
    %cst_65 = arith.constant dense<0.000000e+00> : vector<16x32xf32>
    %173 = tpu.matmul %170, %171, %cst_65 {dimension_numbers = #tpu.dot_dimension_numbers<[1], [1], [0], [0], [0, 0, 1, 0], [], []>} : vector<16x8xf32>, vector<32x8xf32>, vector<16x32xf32> -> vector<16x32xf32>
    %174 = arith.addf %173, %7 : vector<16x32xf32>
    %cst_66 = arith.constant dense<0xFF800000> : vector<16xf32>
    %175 = vector.multi_reduction <maximumf>, %174, %cst_66 [1] : vector<16x32xf32> to vector<16xf32>
    %176 = vector.shape_cast %175 : vector<16xf32> to vector<16x1xf32>
    %177 = vector.broadcast %176 : vector<16x1xf32> to vector<16x32xf32>
    %178 = arith.subf %174, %177 : vector<16x32xf32>
    %179 = math.exp %178 : vector<16x32xf32>
    %cst_67 = arith.constant dense<0.000000e+00> : vector<16xf32>
    %180 = vector.multi_reduction <add>, %179, %cst_67 [1] : vector<16x32xf32> to vector<16xf32>
    %181 = vector.shape_cast %180 : vector<16xf32> to vector<16x1xf32>
    %cst_68 = arith.constant dense<0.000000e+00> : vector<16x8xf32>
    %182 = tpu.matmul %179, %172, %cst_68 {dimension_numbers = #tpu.dot_dimension_numbers<[1], [0], [0], [1], [0, 0, 1, 1], [], []>} : vector<16x32xf32>, vector<32x8xf32>, vector<16x8xf32> -> vector<16x8xf32>
    %183 = tpu.reciprocal %181 {approx = true} : vector<16x1xf32> -> vector<16x1xf32>
    %184 = vector.broadcast %183 : vector<16x1xf32> to vector<16x8xf32>
    %185 = arith.mulf %182, %184 : vector<16x8xf32>
    %c216 = arith.constant 216 : index
    %c0_69 = arith.constant 0 : index
    %186 = vector.load %arg5[%c216, %c0_69] : memref<720x128xf32, #tpu.memory_space<vmem>>, vector<8x32xf32>
    %cst_70 = arith.constant dense<0.000000e+00> : vector<16x32xf32>
    %187 = tpu.matmul %185, %186, %cst_70 {dimension_numbers = #tpu.dot_dimension_numbers<[1], [0], [0], [1], [0, 0, 1, 1], [], []>} : vector<16x8xf32>, vector<8x32xf32>, vector<16x32xf32> -> vector<16x32xf32>
    %188 = arith.addf %169, %187 : vector<16x32xf32>
    %189 = vector.extract_strided_slice %144 {offsets = [0, 16], sizes = [16, 8], strides = [1, 1]} : vector<16x32xf32> to vector<16x8xf32>
    %190 = vector.extract_strided_slice %150 {offsets = [0, 16], sizes = [32, 8], strides = [1, 1]} : vector<32x32xf32> to vector<32x8xf32>
    %191 = vector.extract_strided_slice %151 {offsets = [0, 16], sizes = [32, 8], strides = [1, 1]} : vector<32x32xf32> to vector<32x8xf32>
    %cst_71 = arith.constant dense<0.000000e+00> : vector<16x32xf32>
    %192 = tpu.matmul %189, %190, %cst_71 {dimension_numbers = #tpu.dot_dimension_numbers<[1], [1], [0], [0], [0, 0, 1, 0], [], []>} : vector<16x8xf32>, vector<32x8xf32>, vector<16x32xf32> -> vector<16x32xf32>
    %193 = arith.addf %192, %7 : vector<16x32xf32>
    %cst_72 = arith.constant dense<0xFF800000> : vector<16xf32>
    %194 = vector.multi_reduction <maximumf>, %193, %cst_72 [1] : vector<16x32xf32> to vector<16xf32>
    %195 = vector.shape_cast %194 : vector<16xf32> to vector<16x1xf32>
    %196 = vector.broadcast %195 : vector<16x1xf32> to vector<16x32xf32>
    %197 = arith.subf %193, %196 : vector<16x32xf32>
    %198 = math.exp %197 : vector<16x32xf32>
    %cst_73 = arith.constant dense<0.000000e+00> : vector<16xf32>
    %199 = vector.multi_reduction <add>, %198, %cst_73 [1] : vector<16x32xf32> to vector<16xf32>
    %200 = vector.shape_cast %199 : vector<16xf32> to vector<16x1xf32>
    %cst_74 = arith.constant dense<0.000000e+00> : vector<16x8xf32>
    %201 = tpu.matmul %198, %191, %cst_74 {dimension_numbers = #tpu.dot_dimension_numbers<[1], [0], [0], [1], [0, 0, 1, 1], [], []>} : vector<16x32xf32>, vector<32x8xf32>, vector<16x8xf32> -> vector<16x8xf32>
    %202 = tpu.reciprocal %200 {approx = true} : vector<16x1xf32> -> vector<16x1xf32>
    %203 = vector.broadcast %202 : vector<16x1xf32> to vector<16x8xf32>
    %204 = arith.mulf %201, %203 : vector<16x8xf32>
    %c224 = arith.constant 224 : index
    %c0_75 = arith.constant 0 : index
    %205 = vector.load %arg5[%c224, %c0_75] : memref<720x128xf32, #tpu.memory_space<vmem>>, vector<8x32xf32>
    %cst_76 = arith.constant dense<0.000000e+00> : vector<16x32xf32>
    %206 = tpu.matmul %204, %205, %cst_76 {dimension_numbers = #tpu.dot_dimension_numbers<[1], [0], [0], [1], [0, 0, 1, 1], [], []>} : vector<16x8xf32>, vector<8x32xf32>, vector<16x32xf32> -> vector<16x32xf32>
    %207 = arith.addf %188, %206 : vector<16x32xf32>
    %208 = vector.extract_strided_slice %144 {offsets = [0, 24], sizes = [16, 8], strides = [1, 1]} : vector<16x32xf32> to vector<16x8xf32>
    %209 = vector.extract_strided_slice %150 {offsets = [0, 24], sizes = [32, 8], strides = [1, 1]} : vector<32x32xf32> to vector<32x8xf32>
    %210 = vector.extract_strided_slice %151 {offsets = [0, 24], sizes = [32, 8], strides = [1, 1]} : vector<32x32xf32> to vector<32x8xf32>
    %cst_77 = arith.constant dense<0.000000e+00> : vector<16x32xf32>
    %211 = tpu.matmul %208, %209, %cst_77 {dimension_numbers = #tpu.dot_dimension_numbers<[1], [1], [0], [0], [0, 0, 1, 0], [], []>} : vector<16x8xf32>, vector<32x8xf32>, vector<16x32xf32> -> vector<16x32xf32>
    %212 = arith.addf %211, %7 : vector<16x32xf32>
    %cst_78 = arith.constant dense<0xFF800000> : vector<16xf32>
    %213 = vector.multi_reduction <maximumf>, %212, %cst_78 [1] : vector<16x32xf32> to vector<16xf32>
    %214 = vector.shape_cast %213 : vector<16xf32> to vector<16x1xf32>
    %215 = vector.broadcast %214 : vector<16x1xf32> to vector<16x32xf32>
    %216 = arith.subf %212, %215 : vector<16x32xf32>
    %217 = math.exp %216 : vector<16x32xf32>
    %cst_79 = arith.constant dense<0.000000e+00> : vector<16xf32>
    %218 = vector.multi_reduction <add>, %217, %cst_79 [1] : vector<16x32xf32> to vector<16xf32>
    %219 = vector.shape_cast %218 : vector<16xf32> to vector<16x1xf32>
    %cst_80 = arith.constant dense<0.000000e+00> : vector<16x8xf32>
    %220 = tpu.matmul %217, %210, %cst_80 {dimension_numbers = #tpu.dot_dimension_numbers<[1], [0], [0], [1], [0, 0, 1, 1], [], []>} : vector<16x32xf32>, vector<32x8xf32>, vector<16x8xf32> -> vector<16x8xf32>
    %221 = tpu.reciprocal %219 {approx = true} : vector<16x1xf32> -> vector<16x1xf32>
    %222 = vector.broadcast %221 : vector<16x1xf32> to vector<16x8xf32>
    %223 = arith.mulf %220, %222 : vector<16x8xf32>
    %c232 = arith.constant 232 : index
    %c0_81 = arith.constant 0 : index
    %224 = vector.load %arg5[%c232, %c0_81] : memref<720x128xf32, #tpu.memory_space<vmem>>, vector<8x32xf32>
    %cst_82 = arith.constant dense<0.000000e+00> : vector<16x32xf32>
    %225 = tpu.matmul %223, %224, %cst_82 {dimension_numbers = #tpu.dot_dimension_numbers<[1], [0], [0], [1], [0, 0, 1, 1], [], []>} : vector<16x8xf32>, vector<8x32xf32>, vector<16x32xf32> -> vector<16x32xf32>
    %226 = arith.addf %207, %225 : vector<16x32xf32>
    %227 = arith.addf %117, %226 : vector<16x32xf32>
    %c12 = arith.constant 12 : index
    %c0_83 = arith.constant 0 : index
    %228 = vector.load %arg6[%c12, %c0_83] : memref<32x128xf32, #tpu.memory_space<vmem>>, vector<1x32xf32>
    %229 = vector.broadcast %228 : vector<1x32xf32> to vector<16x32xf32>
    %230 = arith.addf %227, %229 : vector<16x32xf32>
    %c13 = arith.constant 13 : index
    %c0_84 = arith.constant 0 : index
    %231 = vector.load %arg6[%c13, %c0_84] : memref<32x128xf32, #tpu.memory_space<vmem>>, vector<1x32xf32>
    %c14 = arith.constant 14 : index
    %c0_85 = arith.constant 0 : index
    %232 = vector.load %arg6[%c14, %c0_85] : memref<32x128xf32, #tpu.memory_space<vmem>>, vector<1x32xf32>
    %cst_86 = arith.constant dense<0.000000e+00> : vector<16xf32>
    %233 = vector.multi_reduction <add>, %230, %cst_86 [1] : vector<16x32xf32> to vector<16xf32>
    %234 = vector.shape_cast %233 : vector<16xf32> to vector<16x1xf32>
    %cst_87 = arith.constant 3.200000e+01 : f32
    %235 = vector.broadcast %cst_87 : f32 to vector<16x1xf32>
    %236 = arith.divf %234, %235 : vector<16x1xf32>
    %237 = vector.broadcast %236 : vector<16x1xf32> to vector<16x32xf32>
    %238 = arith.subf %230, %237 : vector<16x32xf32>
    %239 = arith.mulf %238, %238 : vector<16x32xf32>
    %cst_88 = arith.constant dense<0.000000e+00> : vector<16xf32>
    %240 = vector.multi_reduction <add>, %239, %cst_88 [1] : vector<16x32xf32> to vector<16xf32>
    %241 = vector.shape_cast %240 : vector<16xf32> to vector<16x1xf32>
    %cst_89 = arith.constant 3.200000e+01 : f32
    %242 = vector.broadcast %cst_89 : f32 to vector<16x1xf32>
    %243 = arith.divf %241, %242 : vector<16x1xf32>
    %cst_90 = arith.constant 9.99999997E-7 : f32
    %244 = vector.broadcast %cst_90 : f32 to vector<16x1xf32>
    %245 = arith.addf %243, %244 : vector<16x1xf32>
    %246 = math.rsqrt %245 : vector<16x1xf32>
    %247 = vector.broadcast %246 : vector<16x1xf32> to vector<16x32xf32>
    %248 = arith.mulf %238, %247 : vector<16x32xf32>
    %249 = vector.broadcast %231 : vector<1x32xf32> to vector<16x32xf32>
    %250 = arith.mulf %248, %249 : vector<16x32xf32>
    %251 = vector.broadcast %232 : vector<1x32xf32> to vector<16x32xf32>
    %252 = arith.addf %250, %251 : vector<16x32xf32>
    %c240 = arith.constant 240 : index
    %c0_91 = arith.constant 0 : index
    %253 = vector.load %arg5[%c240, %c0_91] : memref<720x128xf32, #tpu.memory_space<vmem>>, vector<32x128xf32>
    %cst_92 = arith.constant dense<0.000000e+00> : vector<16x128xf32>
    %254 = tpu.matmul %252, %253, %cst_92 {dimension_numbers = #tpu.dot_dimension_numbers<[1], [0], [0], [1], [0, 0, 1, 1], [], []>} : vector<16x32xf32>, vector<32x128xf32>, vector<16x128xf32> -> vector<16x128xf32>
    %c15 = arith.constant 15 : index
    %c0_93 = arith.constant 0 : index
    %255 = vector.load %arg6[%c15, %c0_93] : memref<32x128xf32, #tpu.memory_space<vmem>>, vector<1x128xf32>
    %256 = vector.broadcast %255 : vector<1x128xf32> to vector<16x128xf32>
    %257 = arith.addf %254, %256 : vector<16x128xf32>
    %cst_94 = arith.constant 5.000000e-01 : f32
    %258 = vector.broadcast %cst_94 : f32 to vector<16x128xf32>
    %259 = arith.mulf %258, %257 : vector<16x128xf32>
    %cst_95 = arith.constant 0.707106769 : f32
    %260 = vector.broadcast %cst_95 : f32 to vector<16x128xf32>
    %261 = arith.mulf %257, %260 : vector<16x128xf32>
    %262 = math.erf %261 : vector<16x128xf32>
    %cst_96 = arith.constant 1.000000e+00 : f32
    %263 = vector.broadcast %cst_96 : f32 to vector<16x128xf32>
    %264 = arith.addf %263, %262 : vector<16x128xf32>
    %265 = arith.mulf %259, %264 : vector<16x128xf32>
    %c272 = arith.constant 272 : index
    %c0_97 = arith.constant 0 : index
    %266 = vector.load %arg5[%c272, %c0_97] : memref<720x128xf32, #tpu.memory_space<vmem>>, vector<128x32xf32>
    %cst_98 = arith.constant dense<0.000000e+00> : vector<16x32xf32>
    %267 = tpu.matmul %265, %266, %cst_98 {dimension_numbers = #tpu.dot_dimension_numbers<[1], [0], [0], [1], [0, 0, 1, 1], [], []>} : vector<16x128xf32>, vector<128x32xf32>, vector<16x32xf32> -> vector<16x32xf32>
    %268 = arith.addf %230, %267 : vector<16x32xf32>
    %c16 = arith.constant 16 : index
    %c0_99 = arith.constant 0 : index
    %269 = vector.load %arg6[%c16, %c0_99] : memref<32x128xf32, #tpu.memory_space<vmem>>, vector<1x32xf32>
    %270 = vector.broadcast %269 : vector<1x32xf32> to vector<16x32xf32>
    %271 = arith.addf %268, %270 : vector<16x32xf32>
    %c17 = arith.constant 17 : index
    %c0_100 = arith.constant 0 : index
    %272 = vector.load %arg6[%c17, %c0_100] : memref<32x128xf32, #tpu.memory_space<vmem>>, vector<1x32xf32>
    %c18 = arith.constant 18 : index
    %c0_101 = arith.constant 0 : index
    %273 = vector.load %arg6[%c18, %c0_101] : memref<32x128xf32, #tpu.memory_space<vmem>>, vector<1x32xf32>
    %cst_102 = arith.constant dense<0.000000e+00> : vector<16xf32>
    %274 = vector.multi_reduction <add>, %271, %cst_102 [1] : vector<16x32xf32> to vector<16xf32>
    %275 = vector.shape_cast %274 : vector<16xf32> to vector<16x1xf32>
    %cst_103 = arith.constant 3.200000e+01 : f32
    %276 = vector.broadcast %cst_103 : f32 to vector<16x1xf32>
    %277 = arith.divf %275, %276 : vector<16x1xf32>
    %278 = vector.broadcast %277 : vector<16x1xf32> to vector<16x32xf32>
    %279 = arith.subf %271, %278 : vector<16x32xf32>
    %280 = arith.mulf %279, %279 : vector<16x32xf32>
    %cst_104 = arith.constant dense<0.000000e+00> : vector<16xf32>
    %281 = vector.multi_reduction <add>, %280, %cst_104 [1] : vector<16x32xf32> to vector<16xf32>
    %282 = vector.shape_cast %281 : vector<16xf32> to vector<16x1xf32>
    %cst_105 = arith.constant 3.200000e+01 : f32
    %283 = vector.broadcast %cst_105 : f32 to vector<16x1xf32>
    %284 = arith.divf %282, %283 : vector<16x1xf32>
    %cst_106 = arith.constant 9.99999997E-7 : f32
    %285 = vector.broadcast %cst_106 : f32 to vector<16x1xf32>
    %286 = arith.addf %284, %285 : vector<16x1xf32>
    %287 = math.rsqrt %286 : vector<16x1xf32>
    %288 = vector.broadcast %287 : vector<16x1xf32> to vector<16x32xf32>
    %289 = arith.mulf %279, %288 : vector<16x32xf32>
    %290 = vector.broadcast %272 : vector<1x32xf32> to vector<16x32xf32>
    %291 = arith.mulf %289, %290 : vector<16x32xf32>
    %292 = vector.broadcast %273 : vector<1x32xf32> to vector<16x32xf32>
    %293 = arith.addf %291, %292 : vector<16x32xf32>
    %c400 = arith.constant 400 : index
    %c0_107 = arith.constant 0 : index
    %294 = vector.load %arg5[%c400, %c0_107] : memref<720x128xf32, #tpu.memory_space<vmem>>, vector<32x96xf32>
    %cst_108 = arith.constant dense<0.000000e+00> : vector<16x96xf32>
    %295 = tpu.matmul %293, %294, %cst_108 {dimension_numbers = #tpu.dot_dimension_numbers<[1], [0], [0], [1], [0, 0, 1, 1], [], []>} : vector<16x32xf32>, vector<32x96xf32>, vector<16x96xf32> -> vector<16x96xf32>
    %c19 = arith.constant 19 : index
    %c0_109 = arith.constant 0 : index
    %296 = vector.load %arg6[%c19, %c0_109] : memref<32x128xf32, #tpu.memory_space<vmem>>, vector<1x96xf32>
    %297 = vector.broadcast %296 : vector<1x96xf32> to vector<16x96xf32>
    %298 = arith.addf %295, %297 : vector<16x96xf32>
    %299 = vector.extract_strided_slice %298 {offsets = [0, 0], sizes = [16, 32], strides = [1, 1]} : vector<16x96xf32> to vector<16x32xf32>
    %300 = vector.extract_strided_slice %298 {offsets = [0, 32], sizes = [16, 32], strides = [1, 1]} : vector<16x96xf32> to vector<16x32xf32>
    %301 = vector.extract_strided_slice %298 {offsets = [0, 64], sizes = [16, 32], strides = [1, 1]} : vector<16x96xf32> to vector<16x32xf32>
    %302 = vector.extract_strided_slice %299 {offsets = [0, 0], sizes = [16, 8], strides = [1, 1]} : vector<16x32xf32> to vector<16x8xf32>
    %303 = vector.extract_strided_slice %300 {offsets = [0, 0], sizes = [16, 8], strides = [1, 1]} : vector<16x32xf32> to vector<16x8xf32>
    %304 = vector.extract_strided_slice %301 {offsets = [0, 0], sizes = [16, 8], strides = [1, 1]} : vector<16x32xf32> to vector<16x8xf32>
    %cst_110 = arith.constant dense<0.000000e+00> : vector<16x16xf32>
    %305 = tpu.matmul %302, %303, %cst_110 {dimension_numbers = #tpu.dot_dimension_numbers<[1], [1], [0], [0], [0, 0, 1, 0], [], []>} : vector<16x8xf32>, vector<16x8xf32>, vector<16x16xf32> -> vector<16x16xf32>
    %306 = arith.addf %305, %6 : vector<16x16xf32>
    %cst_111 = arith.constant dense<0xFF800000> : vector<16xf32>
    %307 = vector.multi_reduction <maximumf>, %306, %cst_111 [1] : vector<16x16xf32> to vector<16xf32>
    %308 = vector.shape_cast %307 : vector<16xf32> to vector<16x1xf32>
    %309 = vector.broadcast %308 : vector<16x1xf32> to vector<16x16xf32>
    %310 = arith.subf %306, %309 : vector<16x16xf32>
    %311 = math.exp %310 : vector<16x16xf32>
    %cst_112 = arith.constant dense<0.000000e+00> : vector<16xf32>
    %312 = vector.multi_reduction <add>, %311, %cst_112 [1] : vector<16x16xf32> to vector<16xf32>
    %313 = vector.shape_cast %312 : vector<16xf32> to vector<16x1xf32>
    %cst_113 = arith.constant dense<0.000000e+00> : vector<16x8xf32>
    %314 = tpu.matmul %311, %304, %cst_113 {dimension_numbers = #tpu.dot_dimension_numbers<[1], [0], [0], [1], [0, 0, 1, 1], [], []>} : vector<16x16xf32>, vector<16x8xf32>, vector<16x8xf32> -> vector<16x8xf32>
    %315 = tpu.reciprocal %313 {approx = true} : vector<16x1xf32> -> vector<16x1xf32>
    %316 = vector.broadcast %315 : vector<16x1xf32> to vector<16x8xf32>
    %317 = arith.mulf %314, %316 : vector<16x8xf32>
    %c432 = arith.constant 432 : index
    %c0_114 = arith.constant 0 : index
    %318 = vector.load %arg5[%c432, %c0_114] : memref<720x128xf32, #tpu.memory_space<vmem>>, vector<8x32xf32>
    %cst_115 = arith.constant dense<0.000000e+00> : vector<16x32xf32>
    %319 = tpu.matmul %317, %318, %cst_115 {dimension_numbers = #tpu.dot_dimension_numbers<[1], [0], [0], [1], [0, 0, 1, 1], [], []>} : vector<16x8xf32>, vector<8x32xf32>, vector<16x32xf32> -> vector<16x32xf32>
    %320 = vector.extract_strided_slice %299 {offsets = [0, 8], sizes = [16, 8], strides = [1, 1]} : vector<16x32xf32> to vector<16x8xf32>
    %321 = vector.extract_strided_slice %300 {offsets = [0, 8], sizes = [16, 8], strides = [1, 1]} : vector<16x32xf32> to vector<16x8xf32>
    %322 = vector.extract_strided_slice %301 {offsets = [0, 8], sizes = [16, 8], strides = [1, 1]} : vector<16x32xf32> to vector<16x8xf32>
    %cst_116 = arith.constant dense<0.000000e+00> : vector<16x16xf32>
    %323 = tpu.matmul %320, %321, %cst_116 {dimension_numbers = #tpu.dot_dimension_numbers<[1], [1], [0], [0], [0, 0, 1, 0], [], []>} : vector<16x8xf32>, vector<16x8xf32>, vector<16x16xf32> -> vector<16x16xf32>
    %324 = arith.addf %323, %6 : vector<16x16xf32>
    %cst_117 = arith.constant dense<0xFF800000> : vector<16xf32>
    %325 = vector.multi_reduction <maximumf>, %324, %cst_117 [1] : vector<16x16xf32> to vector<16xf32>
    %326 = vector.shape_cast %325 : vector<16xf32> to vector<16x1xf32>
    %327 = vector.broadcast %326 : vector<16x1xf32> to vector<16x16xf32>
    %328 = arith.subf %324, %327 : vector<16x16xf32>
    %329 = math.exp %328 : vector<16x16xf32>
    %cst_118 = arith.constant dense<0.000000e+00> : vector<16xf32>
    %330 = vector.multi_reduction <add>, %329, %cst_118 [1] : vector<16x16xf32> to vector<16xf32>
    %331 = vector.shape_cast %330 : vector<16xf32> to vector<16x1xf32>
    %cst_119 = arith.constant dense<0.000000e+00> : vector<16x8xf32>
    %332 = tpu.matmul %329, %322, %cst_119 {dimension_numbers = #tpu.dot_dimension_numbers<[1], [0], [0], [1], [0, 0, 1, 1], [], []>} : vector<16x16xf32>, vector<16x8xf32>, vector<16x8xf32> -> vector<16x8xf32>
    %333 = tpu.reciprocal %331 {approx = true} : vector<16x1xf32> -> vector<16x1xf32>
    %334 = vector.broadcast %333 : vector<16x1xf32> to vector<16x8xf32>
    %335 = arith.mulf %332, %334 : vector<16x8xf32>
    %c440 = arith.constant 440 : index
    %c0_120 = arith.constant 0 : index
    %336 = vector.load %arg5[%c440, %c0_120] : memref<720x128xf32, #tpu.memory_space<vmem>>, vector<8x32xf32>
    %cst_121 = arith.constant dense<0.000000e+00> : vector<16x32xf32>
    %337 = tpu.matmul %335, %336, %cst_121 {dimension_numbers = #tpu.dot_dimension_numbers<[1], [0], [0], [1], [0, 0, 1, 1], [], []>} : vector<16x8xf32>, vector<8x32xf32>, vector<16x32xf32> -> vector<16x32xf32>
    %338 = arith.addf %319, %337 : vector<16x32xf32>
    %339 = vector.extract_strided_slice %299 {offsets = [0, 16], sizes = [16, 8], strides = [1, 1]} : vector<16x32xf32> to vector<16x8xf32>
    %340 = vector.extract_strided_slice %300 {offsets = [0, 16], sizes = [16, 8], strides = [1, 1]} : vector<16x32xf32> to vector<16x8xf32>
    %341 = vector.extract_strided_slice %301 {offsets = [0, 16], sizes = [16, 8], strides = [1, 1]} : vector<16x32xf32> to vector<16x8xf32>
    %cst_122 = arith.constant dense<0.000000e+00> : vector<16x16xf32>
    %342 = tpu.matmul %339, %340, %cst_122 {dimension_numbers = #tpu.dot_dimension_numbers<[1], [1], [0], [0], [0, 0, 1, 0], [], []>} : vector<16x8xf32>, vector<16x8xf32>, vector<16x16xf32> -> vector<16x16xf32>
    %343 = arith.addf %342, %6 : vector<16x16xf32>
    %cst_123 = arith.constant dense<0xFF800000> : vector<16xf32>
    %344 = vector.multi_reduction <maximumf>, %343, %cst_123 [1] : vector<16x16xf32> to vector<16xf32>
    %345 = vector.shape_cast %344 : vector<16xf32> to vector<16x1xf32>
    %346 = vector.broadcast %345 : vector<16x1xf32> to vector<16x16xf32>
    %347 = arith.subf %343, %346 : vector<16x16xf32>
    %348 = math.exp %347 : vector<16x16xf32>
    %cst_124 = arith.constant dense<0.000000e+00> : vector<16xf32>
    %349 = vector.multi_reduction <add>, %348, %cst_124 [1] : vector<16x16xf32> to vector<16xf32>
    %350 = vector.shape_cast %349 : vector<16xf32> to vector<16x1xf32>
    %cst_125 = arith.constant dense<0.000000e+00> : vector<16x8xf32>
    %351 = tpu.matmul %348, %341, %cst_125 {dimension_numbers = #tpu.dot_dimension_numbers<[1], [0], [0], [1], [0, 0, 1, 1], [], []>} : vector<16x16xf32>, vector<16x8xf32>, vector<16x8xf32> -> vector<16x8xf32>
    %352 = tpu.reciprocal %350 {approx = true} : vector<16x1xf32> -> vector<16x1xf32>
    %353 = vector.broadcast %352 : vector<16x1xf32> to vector<16x8xf32>
    %354 = arith.mulf %351, %353 : vector<16x8xf32>
    %c448 = arith.constant 448 : index
    %c0_126 = arith.constant 0 : index
    %355 = vector.load %arg5[%c448, %c0_126] : memref<720x128xf32, #tpu.memory_space<vmem>>, vector<8x32xf32>
    %cst_127 = arith.constant dense<0.000000e+00> : vector<16x32xf32>
    %356 = tpu.matmul %354, %355, %cst_127 {dimension_numbers = #tpu.dot_dimension_numbers<[1], [0], [0], [1], [0, 0, 1, 1], [], []>} : vector<16x8xf32>, vector<8x32xf32>, vector<16x32xf32> -> vector<16x32xf32>
    %357 = arith.addf %338, %356 : vector<16x32xf32>
    %358 = vector.extract_strided_slice %299 {offsets = [0, 24], sizes = [16, 8], strides = [1, 1]} : vector<16x32xf32> to vector<16x8xf32>
    %359 = vector.extract_strided_slice %300 {offsets = [0, 24], sizes = [16, 8], strides = [1, 1]} : vector<16x32xf32> to vector<16x8xf32>
    %360 = vector.extract_strided_slice %301 {offsets = [0, 24], sizes = [16, 8], strides = [1, 1]} : vector<16x32xf32> to vector<16x8xf32>
    %cst_128 = arith.constant dense<0.000000e+00> : vector<16x16xf32>
    %361 = tpu.matmul %358, %359, %cst_128 {dimension_numbers = #tpu.dot_dimension_numbers<[1], [1], [0], [0], [0, 0, 1, 0], [], []>} : vector<16x8xf32>, vector<16x8xf32>, vector<16x16xf32> -> vector<16x16xf32>
    %362 = arith.addf %361, %6 : vector<16x16xf32>
    %cst_129 = arith.constant dense<0xFF800000> : vector<16xf32>
    %363 = vector.multi_reduction <maximumf>, %362, %cst_129 [1] : vector<16x16xf32> to vector<16xf32>
    %364 = vector.shape_cast %363 : vector<16xf32> to vector<16x1xf32>
    %365 = vector.broadcast %364 : vector<16x1xf32> to vector<16x16xf32>
    %366 = arith.subf %362, %365 : vector<16x16xf32>
    %367 = math.exp %366 : vector<16x16xf32>
    %cst_130 = arith.constant dense<0.000000e+00> : vector<16xf32>
    %368 = vector.multi_reduction <add>, %367, %cst_130 [1] : vector<16x16xf32> to vector<16xf32>
    %369 = vector.shape_cast %368 : vector<16xf32> to vector<16x1xf32>
    %cst_131 = arith.constant dense<0.000000e+00> : vector<16x8xf32>
    %370 = tpu.matmul %367, %360, %cst_131 {dimension_numbers = #tpu.dot_dimension_numbers<[1], [0], [0], [1], [0, 0, 1, 1], [], []>} : vector<16x16xf32>, vector<16x8xf32>, vector<16x8xf32> -> vector<16x8xf32>
    %371 = tpu.reciprocal %369 {approx = true} : vector<16x1xf32> -> vector<16x1xf32>
    %372 = vector.broadcast %371 : vector<16x1xf32> to vector<16x8xf32>
    %373 = arith.mulf %370, %372 : vector<16x8xf32>
    %c456 = arith.constant 456 : index
    %c0_132 = arith.constant 0 : index
    %374 = vector.load %arg5[%c456, %c0_132] : memref<720x128xf32, #tpu.memory_space<vmem>>, vector<8x32xf32>
    %cst_133 = arith.constant dense<0.000000e+00> : vector<16x32xf32>
    %375 = tpu.matmul %373, %374, %cst_133 {dimension_numbers = #tpu.dot_dimension_numbers<[1], [0], [0], [1], [0, 0, 1, 1], [], []>} : vector<16x8xf32>, vector<8x32xf32>, vector<16x32xf32> -> vector<16x32xf32>
    %376 = arith.addf %357, %375 : vector<16x32xf32>
    %377 = arith.addf %271, %376 : vector<16x32xf32>
    %c20 = arith.constant 20 : index
    %c0_134 = arith.constant 0 : index
    %378 = vector.load %arg6[%c20, %c0_134] : memref<32x128xf32, #tpu.memory_space<vmem>>, vector<1x32xf32>
    %379 = vector.broadcast %378 : vector<1x32xf32> to vector<16x32xf32>
    %380 = arith.addf %377, %379 : vector<16x32xf32>
    %c21 = arith.constant 21 : index
    %c0_135 = arith.constant 0 : index
    %381 = vector.load %arg6[%c21, %c0_135] : memref<32x128xf32, #tpu.memory_space<vmem>>, vector<1x32xf32>
    %c22 = arith.constant 22 : index
    %c0_136 = arith.constant 0 : index
    %382 = vector.load %arg6[%c22, %c0_136] : memref<32x128xf32, #tpu.memory_space<vmem>>, vector<1x32xf32>
    %cst_137 = arith.constant dense<0.000000e+00> : vector<16xf32>
    %383 = vector.multi_reduction <add>, %380, %cst_137 [1] : vector<16x32xf32> to vector<16xf32>
    %384 = vector.shape_cast %383 : vector<16xf32> to vector<16x1xf32>
    %cst_138 = arith.constant 3.200000e+01 : f32
    %385 = vector.broadcast %cst_138 : f32 to vector<16x1xf32>
    %386 = arith.divf %384, %385 : vector<16x1xf32>
    %387 = vector.broadcast %386 : vector<16x1xf32> to vector<16x32xf32>
    %388 = arith.subf %380, %387 : vector<16x32xf32>
    %389 = arith.mulf %388, %388 : vector<16x32xf32>
    %cst_139 = arith.constant dense<0.000000e+00> : vector<16xf32>
    %390 = vector.multi_reduction <add>, %389, %cst_139 [1] : vector<16x32xf32> to vector<16xf32>
    %391 = vector.shape_cast %390 : vector<16xf32> to vector<16x1xf32>
    %cst_140 = arith.constant 3.200000e+01 : f32
    %392 = vector.broadcast %cst_140 : f32 to vector<16x1xf32>
    %393 = arith.divf %391, %392 : vector<16x1xf32>
    %cst_141 = arith.constant 9.99999997E-7 : f32
    %394 = vector.broadcast %cst_141 : f32 to vector<16x1xf32>
    %395 = arith.addf %393, %394 : vector<16x1xf32>
    %396 = math.rsqrt %395 : vector<16x1xf32>
    %397 = vector.broadcast %396 : vector<16x1xf32> to vector<16x32xf32>
    %398 = arith.mulf %388, %397 : vector<16x32xf32>
    %399 = vector.broadcast %381 : vector<1x32xf32> to vector<16x32xf32>
    %400 = arith.mulf %398, %399 : vector<16x32xf32>
    %401 = vector.broadcast %382 : vector<1x32xf32> to vector<16x32xf32>
    %402 = arith.addf %400, %401 : vector<16x32xf32>
    %c464 = arith.constant 464 : index
    %c0_142 = arith.constant 0 : index
    %403 = vector.load %arg5[%c464, %c0_142] : memref<720x128xf32, #tpu.memory_space<vmem>>, vector<32x32xf32>
    %cst_143 = arith.constant dense<0.000000e+00> : vector<16x32xf32>
    %404 = tpu.matmul %402, %403, %cst_143 {dimension_numbers = #tpu.dot_dimension_numbers<[1], [0], [0], [1], [0, 0, 1, 1], [], []>} : vector<16x32xf32>, vector<32x32xf32>, vector<16x32xf32> -> vector<16x32xf32>
    %c23 = arith.constant 23 : index
    %c0_144 = arith.constant 0 : index
    %405 = vector.load %arg6[%c23, %c0_144] : memref<32x128xf32, #tpu.memory_space<vmem>>, vector<1x32xf32>
    %406 = vector.broadcast %405 : vector<1x32xf32> to vector<16x32xf32>
    %407 = arith.addf %404, %406 : vector<16x32xf32>
    %c496 = arith.constant 496 : index
    %c0_145 = arith.constant 0 : index
    %408 = vector.load %arg5[%c496, %c0_145] : memref<720x128xf32, #tpu.memory_space<vmem>>, vector<32x64xf32>
    %cst_146 = arith.constant dense<0.000000e+00> : vector<32x64xf32>
    %409 = tpu.matmul %5, %408, %cst_146 {dimension_numbers = #tpu.dot_dimension_numbers<[1], [0], [0], [1], [0, 0, 1, 1], [], []>} : vector<32x32xf32>, vector<32x64xf32>, vector<32x64xf32> -> vector<32x64xf32>
    %c24 = arith.constant 24 : index
    %c0_147 = arith.constant 0 : index
    %410 = vector.load %arg6[%c24, %c0_147] : memref<32x128xf32, #tpu.memory_space<vmem>>, vector<1x64xf32>
    %411 = vector.broadcast %410 : vector<1x64xf32> to vector<32x64xf32>
    %412 = arith.addf %409, %411 : vector<32x64xf32>
    %413 = vector.extract_strided_slice %412 {offsets = [0, 0], sizes = [32, 32], strides = [1, 1]} : vector<32x64xf32> to vector<32x32xf32>
    %414 = vector.extract_strided_slice %412 {offsets = [0, 32], sizes = [32, 32], strides = [1, 1]} : vector<32x64xf32> to vector<32x32xf32>
    %415 = vector.extract_strided_slice %407 {offsets = [0, 0], sizes = [16, 8], strides = [1, 1]} : vector<16x32xf32> to vector<16x8xf32>
    %416 = vector.extract_strided_slice %413 {offsets = [0, 0], sizes = [32, 8], strides = [1, 1]} : vector<32x32xf32> to vector<32x8xf32>
    %417 = vector.extract_strided_slice %414 {offsets = [0, 0], sizes = [32, 8], strides = [1, 1]} : vector<32x32xf32> to vector<32x8xf32>
    %cst_148 = arith.constant dense<0.000000e+00> : vector<16x32xf32>
    %418 = tpu.matmul %415, %416, %cst_148 {dimension_numbers = #tpu.dot_dimension_numbers<[1], [1], [0], [0], [0, 0, 1, 0], [], []>} : vector<16x8xf32>, vector<32x8xf32>, vector<16x32xf32> -> vector<16x32xf32>
    %419 = arith.addf %418, %7 : vector<16x32xf32>
    %cst_149 = arith.constant dense<0xFF800000> : vector<16xf32>
    %420 = vector.multi_reduction <maximumf>, %419, %cst_149 [1] : vector<16x32xf32> to vector<16xf32>
    %421 = vector.shape_cast %420 : vector<16xf32> to vector<16x1xf32>
    %422 = vector.broadcast %421 : vector<16x1xf32> to vector<16x32xf32>
    %423 = arith.subf %419, %422 : vector<16x32xf32>
    %424 = math.exp %423 : vector<16x32xf32>
    %cst_150 = arith.constant dense<0.000000e+00> : vector<16xf32>
    %425 = vector.multi_reduction <add>, %424, %cst_150 [1] : vector<16x32xf32> to vector<16xf32>
    %426 = vector.shape_cast %425 : vector<16xf32> to vector<16x1xf32>
    %cst_151 = arith.constant dense<0.000000e+00> : vector<16x8xf32>
    %427 = tpu.matmul %424, %417, %cst_151 {dimension_numbers = #tpu.dot_dimension_numbers<[1], [0], [0], [1], [0, 0, 1, 1], [], []>} : vector<16x32xf32>, vector<32x8xf32>, vector<16x8xf32> -> vector<16x8xf32>
    %428 = tpu.reciprocal %426 {approx = true} : vector<16x1xf32> -> vector<16x1xf32>
    %429 = vector.broadcast %428 : vector<16x1xf32> to vector<16x8xf32>
    %430 = arith.mulf %427, %429 : vector<16x8xf32>
    %c528 = arith.constant 528 : index
    %c0_152 = arith.constant 0 : index
    %431 = vector.load %arg5[%c528, %c0_152] : memref<720x128xf32, #tpu.memory_space<vmem>>, vector<8x32xf32>
    %cst_153 = arith.constant dense<0.000000e+00> : vector<16x32xf32>
    %432 = tpu.matmul %430, %431, %cst_153 {dimension_numbers = #tpu.dot_dimension_numbers<[1], [0], [0], [1], [0, 0, 1, 1], [], []>} : vector<16x8xf32>, vector<8x32xf32>, vector<16x32xf32> -> vector<16x32xf32>
    %433 = vector.extract_strided_slice %407 {offsets = [0, 8], sizes = [16, 8], strides = [1, 1]} : vector<16x32xf32> to vector<16x8xf32>
    %434 = vector.extract_strided_slice %413 {offsets = [0, 8], sizes = [32, 8], strides = [1, 1]} : vector<32x32xf32> to vector<32x8xf32>
    %435 = vector.extract_strided_slice %414 {offsets = [0, 8], sizes = [32, 8], strides = [1, 1]} : vector<32x32xf32> to vector<32x8xf32>
    %cst_154 = arith.constant dense<0.000000e+00> : vector<16x32xf32>
    %436 = tpu.matmul %433, %434, %cst_154 {dimension_numbers = #tpu.dot_dimension_numbers<[1], [1], [0], [0], [0, 0, 1, 0], [], []>} : vector<16x8xf32>, vector<32x8xf32>, vector<16x32xf32> -> vector<16x32xf32>
    %437 = arith.addf %436, %7 : vector<16x32xf32>
    %cst_155 = arith.constant dense<0xFF800000> : vector<16xf32>
    %438 = vector.multi_reduction <maximumf>, %437, %cst_155 [1] : vector<16x32xf32> to vector<16xf32>
    %439 = vector.shape_cast %438 : vector<16xf32> to vector<16x1xf32>
    %440 = vector.broadcast %439 : vector<16x1xf32> to vector<16x32xf32>
    %441 = arith.subf %437, %440 : vector<16x32xf32>
    %442 = math.exp %441 : vector<16x32xf32>
    %cst_156 = arith.constant dense<0.000000e+00> : vector<16xf32>
    %443 = vector.multi_reduction <add>, %442, %cst_156 [1] : vector<16x32xf32> to vector<16xf32>
    %444 = vector.shape_cast %443 : vector<16xf32> to vector<16x1xf32>
    %cst_157 = arith.constant dense<0.000000e+00> : vector<16x8xf32>
    %445 = tpu.matmul %442, %435, %cst_157 {dimension_numbers = #tpu.dot_dimension_numbers<[1], [0], [0], [1], [0, 0, 1, 1], [], []>} : vector<16x32xf32>, vector<32x8xf32>, vector<16x8xf32> -> vector<16x8xf32>
    %446 = tpu.reciprocal %444 {approx = true} : vector<16x1xf32> -> vector<16x1xf32>
    %447 = vector.broadcast %446 : vector<16x1xf32> to vector<16x8xf32>
    %448 = arith.mulf %445, %447 : vector<16x8xf32>
    %c536 = arith.constant 536 : index
    %c0_158 = arith.constant 0 : index
    %449 = vector.load %arg5[%c536, %c0_158] : memref<720x128xf32, #tpu.memory_space<vmem>>, vector<8x32xf32>
    %cst_159 = arith.constant dense<0.000000e+00> : vector<16x32xf32>
    %450 = tpu.matmul %448, %449, %cst_159 {dimension_numbers = #tpu.dot_dimension_numbers<[1], [0], [0], [1], [0, 0, 1, 1], [], []>} : vector<16x8xf32>, vector<8x32xf32>, vector<16x32xf32> -> vector<16x32xf32>
    %451 = arith.addf %432, %450 : vector<16x32xf32>
    %452 = vector.extract_strided_slice %407 {offsets = [0, 16], sizes = [16, 8], strides = [1, 1]} : vector<16x32xf32> to vector<16x8xf32>
    %453 = vector.extract_strided_slice %413 {offsets = [0, 16], sizes = [32, 8], strides = [1, 1]} : vector<32x32xf32> to vector<32x8xf32>
    %454 = vector.extract_strided_slice %414 {offsets = [0, 16], sizes = [32, 8], strides = [1, 1]} : vector<32x32xf32> to vector<32x8xf32>
    %cst_160 = arith.constant dense<0.000000e+00> : vector<16x32xf32>
    %455 = tpu.matmul %452, %453, %cst_160 {dimension_numbers = #tpu.dot_dimension_numbers<[1], [1], [0], [0], [0, 0, 1, 0], [], []>} : vector<16x8xf32>, vector<32x8xf32>, vector<16x32xf32> -> vector<16x32xf32>
    %456 = arith.addf %455, %7 : vector<16x32xf32>
    %cst_161 = arith.constant dense<0xFF800000> : vector<16xf32>
    %457 = vector.multi_reduction <maximumf>, %456, %cst_161 [1] : vector<16x32xf32> to vector<16xf32>
    %458 = vector.shape_cast %457 : vector<16xf32> to vector<16x1xf32>
    %459 = vector.broadcast %458 : vector<16x1xf32> to vector<16x32xf32>
    %460 = arith.subf %456, %459 : vector<16x32xf32>
    %461 = math.exp %460 : vector<16x32xf32>
    %cst_162 = arith.constant dense<0.000000e+00> : vector<16xf32>
    %462 = vector.multi_reduction <add>, %461, %cst_162 [1] : vector<16x32xf32> to vector<16xf32>
    %463 = vector.shape_cast %462 : vector<16xf32> to vector<16x1xf32>
    %cst_163 = arith.constant dense<0.000000e+00> : vector<16x8xf32>
    %464 = tpu.matmul %461, %454, %cst_163 {dimension_numbers = #tpu.dot_dimension_numbers<[1], [0], [0], [1], [0, 0, 1, 1], [], []>} : vector<16x32xf32>, vector<32x8xf32>, vector<16x8xf32> -> vector<16x8xf32>
    %465 = tpu.reciprocal %463 {approx = true} : vector<16x1xf32> -> vector<16x1xf32>
    %466 = vector.broadcast %465 : vector<16x1xf32> to vector<16x8xf32>
    %467 = arith.mulf %464, %466 : vector<16x8xf32>
    %c544 = arith.constant 544 : index
    %c0_164 = arith.constant 0 : index
    %468 = vector.load %arg5[%c544, %c0_164] : memref<720x128xf32, #tpu.memory_space<vmem>>, vector<8x32xf32>
    %cst_165 = arith.constant dense<0.000000e+00> : vector<16x32xf32>
    %469 = tpu.matmul %467, %468, %cst_165 {dimension_numbers = #tpu.dot_dimension_numbers<[1], [0], [0], [1], [0, 0, 1, 1], [], []>} : vector<16x8xf32>, vector<8x32xf32>, vector<16x32xf32> -> vector<16x32xf32>
    %470 = arith.addf %451, %469 : vector<16x32xf32>
    %471 = vector.extract_strided_slice %407 {offsets = [0, 24], sizes = [16, 8], strides = [1, 1]} : vector<16x32xf32> to vector<16x8xf32>
    %472 = vector.extract_strided_slice %413 {offsets = [0, 24], sizes = [32, 8], strides = [1, 1]} : vector<32x32xf32> to vector<32x8xf32>
    %473 = vector.extract_strided_slice %414 {offsets = [0, 24], sizes = [32, 8], strides = [1, 1]} : vector<32x32xf32> to vector<32x8xf32>
    %cst_166 = arith.constant dense<0.000000e+00> : vector<16x32xf32>
    %474 = tpu.matmul %471, %472, %cst_166 {dimension_numbers = #tpu.dot_dimension_numbers<[1], [1], [0], [0], [0, 0, 1, 0], [], []>} : vector<16x8xf32>, vector<32x8xf32>, vector<16x32xf32> -> vector<16x32xf32>
    %475 = arith.addf %474, %7 : vector<16x32xf32>
    %cst_167 = arith.constant dense<0xFF800000> : vector<16xf32>
    %476 = vector.multi_reduction <maximumf>, %475, %cst_167 [1] : vector<16x32xf32> to vector<16xf32>
    %477 = vector.shape_cast %476 : vector<16xf32> to vector<16x1xf32>
    %478 = vector.broadcast %477 : vector<16x1xf32> to vector<16x32xf32>
    %479 = arith.subf %475, %478 : vector<16x32xf32>
    %480 = math.exp %479 : vector<16x32xf32>
    %cst_168 = arith.constant dense<0.000000e+00> : vector<16xf32>
    %481 = vector.multi_reduction <add>, %480, %cst_168 [1] : vector<16x32xf32> to vector<16xf32>
    %482 = vector.shape_cast %481 : vector<16xf32> to vector<16x1xf32>
    %cst_169 = arith.constant dense<0.000000e+00> : vector<16x8xf32>
    %483 = tpu.matmul %480, %473, %cst_169 {dimension_numbers = #tpu.dot_dimension_numbers<[1], [0], [0], [1], [0, 0, 1, 1], [], []>} : vector<16x32xf32>, vector<32x8xf32>, vector<16x8xf32> -> vector<16x8xf32>
    %484 = tpu.reciprocal %482 {approx = true} : vector<16x1xf32> -> vector<16x1xf32>
    %485 = vector.broadcast %484 : vector<16x1xf32> to vector<16x8xf32>
    %486 = arith.mulf %483, %485 : vector<16x8xf32>
    %c552 = arith.constant 552 : index
    %c0_170 = arith.constant 0 : index
    %487 = vector.load %arg5[%c552, %c0_170] : memref<720x128xf32, #tpu.memory_space<vmem>>, vector<8x32xf32>
    %cst_171 = arith.constant dense<0.000000e+00> : vector<16x32xf32>
    %488 = tpu.matmul %486, %487, %cst_171 {dimension_numbers = #tpu.dot_dimension_numbers<[1], [0], [0], [1], [0, 0, 1, 1], [], []>} : vector<16x8xf32>, vector<8x32xf32>, vector<16x32xf32> -> vector<16x32xf32>
    %489 = arith.addf %470, %488 : vector<16x32xf32>
    %490 = arith.addf %380, %489 : vector<16x32xf32>
    %c25 = arith.constant 25 : index
    %c0_172 = arith.constant 0 : index
    %491 = vector.load %arg6[%c25, %c0_172] : memref<32x128xf32, #tpu.memory_space<vmem>>, vector<1x32xf32>
    %492 = vector.broadcast %491 : vector<1x32xf32> to vector<16x32xf32>
    %493 = arith.addf %490, %492 : vector<16x32xf32>
    %c26 = arith.constant 26 : index
    %c0_173 = arith.constant 0 : index
    %494 = vector.load %arg6[%c26, %c0_173] : memref<32x128xf32, #tpu.memory_space<vmem>>, vector<1x32xf32>
    %c27 = arith.constant 27 : index
    %c0_174 = arith.constant 0 : index
    %495 = vector.load %arg6[%c27, %c0_174] : memref<32x128xf32, #tpu.memory_space<vmem>>, vector<1x32xf32>
    %cst_175 = arith.constant dense<0.000000e+00> : vector<16xf32>
    %496 = vector.multi_reduction <add>, %493, %cst_175 [1] : vector<16x32xf32> to vector<16xf32>
    %497 = vector.shape_cast %496 : vector<16xf32> to vector<16x1xf32>
    %cst_176 = arith.constant 3.200000e+01 : f32
    %498 = vector.broadcast %cst_176 : f32 to vector<16x1xf32>
    %499 = arith.divf %497, %498 : vector<16x1xf32>
    %500 = vector.broadcast %499 : vector<16x1xf32> to vector<16x32xf32>
    %501 = arith.subf %493, %500 : vector<16x32xf32>
    %502 = arith.mulf %501, %501 : vector<16x32xf32>
    %cst_177 = arith.constant dense<0.000000e+00> : vector<16xf32>
    %503 = vector.multi_reduction <add>, %502, %cst_177 [1] : vector<16x32xf32> to vector<16xf32>
    %504 = vector.shape_cast %503 : vector<16xf32> to vector<16x1xf32>
    %cst_178 = arith.constant 3.200000e+01 : f32
    %505 = vector.broadcast %cst_178 : f32 to vector<16x1xf32>
    %506 = arith.divf %504, %505 : vector<16x1xf32>
    %cst_179 = arith.constant 9.99999997E-7 : f32
    %507 = vector.broadcast %cst_179 : f32 to vector<16x1xf32>
    %508 = arith.addf %506, %507 : vector<16x1xf32>
    %509 = math.rsqrt %508 : vector<16x1xf32>
    %510 = vector.broadcast %509 : vector<16x1xf32> to vector<16x32xf32>
    %511 = arith.mulf %501, %510 : vector<16x32xf32>
    %512 = vector.broadcast %494 : vector<1x32xf32> to vector<16x32xf32>
    %513 = arith.mulf %511, %512 : vector<16x32xf32>
    %514 = vector.broadcast %495 : vector<1x32xf32> to vector<16x32xf32>
    %515 = arith.addf %513, %514 : vector<16x32xf32>
    %c560 = arith.constant 560 : index
    %c0_180 = arith.constant 0 : index
    %516 = vector.load %arg5[%c560, %c0_180] : memref<720x128xf32, #tpu.memory_space<vmem>>, vector<32x128xf32>
    %cst_181 = arith.constant dense<0.000000e+00> : vector<16x128xf32>
    %517 = tpu.matmul %515, %516, %cst_181 {dimension_numbers = #tpu.dot_dimension_numbers<[1], [0], [0], [1], [0, 0, 1, 1], [], []>} : vector<16x32xf32>, vector<32x128xf32>, vector<16x128xf32> -> vector<16x128xf32>
    %c28 = arith.constant 28 : index
    %c0_182 = arith.constant 0 : index
    %518 = vector.load %arg6[%c28, %c0_182] : memref<32x128xf32, #tpu.memory_space<vmem>>, vector<1x128xf32>
    %519 = vector.broadcast %518 : vector<1x128xf32> to vector<16x128xf32>
    %520 = arith.addf %517, %519 : vector<16x128xf32>
    %cst_183 = arith.constant 5.000000e-01 : f32
    %521 = vector.broadcast %cst_183 : f32 to vector<16x128xf32>
    %522 = arith.mulf %521, %520 : vector<16x128xf32>
    %cst_184 = arith.constant 0.707106769 : f32
    %523 = vector.broadcast %cst_184 : f32 to vector<16x128xf32>
    %524 = arith.mulf %520, %523 : vector<16x128xf32>
    %525 = math.erf %524 : vector<16x128xf32>
    %cst_185 = arith.constant 1.000000e+00 : f32
    %526 = vector.broadcast %cst_185 : f32 to vector<16x128xf32>
    %527 = arith.addf %526, %525 : vector<16x128xf32>
    %528 = arith.mulf %522, %527 : vector<16x128xf32>
    %c592 = arith.constant 592 : index
    %c0_186 = arith.constant 0 : index
    %529 = vector.load %arg5[%c592, %c0_186] : memref<720x128xf32, #tpu.memory_space<vmem>>, vector<128x32xf32>
    %cst_187 = arith.constant dense<0.000000e+00> : vector<16x32xf32>
    %530 = tpu.matmul %528, %529, %cst_187 {dimension_numbers = #tpu.dot_dimension_numbers<[1], [0], [0], [1], [0, 0, 1, 1], [], []>} : vector<16x128xf32>, vector<128x32xf32>, vector<16x32xf32> -> vector<16x32xf32>
    %531 = arith.addf %493, %530 : vector<16x32xf32>
    %c29 = arith.constant 29 : index
    %c0_188 = arith.constant 0 : index
    %532 = vector.load %arg6[%c29, %c0_188] : memref<32x128xf32, #tpu.memory_space<vmem>>, vector<1x32xf32>
    %533 = vector.broadcast %532 : vector<1x32xf32> to vector<16x32xf32>
    %534 = arith.addf %531, %533 : vector<16x32xf32>
    %c1 = arith.constant 1 : index
    %c0_189 = arith.constant 0 : index
    %535 = vector.load %arg6[%c1, %c0_189] : memref<32x128xf32, #tpu.memory_space<vmem>>, vector<1x32xf32>
    %c2 = arith.constant 2 : index
    %c0_190 = arith.constant 0 : index
    %536 = vector.load %arg6[%c2, %c0_190] : memref<32x128xf32, #tpu.memory_space<vmem>>, vector<1x32xf32>
    %cst_191 = arith.constant dense<0.000000e+00> : vector<16xf32>
    %537 = vector.multi_reduction <add>, %534, %cst_191 [1] : vector<16x32xf32> to vector<16xf32>
    %538 = vector.shape_cast %537 : vector<16xf32> to vector<16x1xf32>
    %cst_192 = arith.constant 3.200000e+01 : f32
    %539 = vector.broadcast %cst_192 : f32 to vector<16x1xf32>
    %540 = arith.divf %538, %539 : vector<16x1xf32>
    %541 = vector.broadcast %540 : vector<16x1xf32> to vector<16x32xf32>
    %542 = arith.subf %534, %541 : vector<16x32xf32>
    %543 = arith.mulf %542, %542 : vector<16x32xf32>
    %cst_193 = arith.constant dense<0.000000e+00> : vector<16xf32>
    %544 = vector.multi_reduction <add>, %543, %cst_193 [1] : vector<16x32xf32> to vector<16xf32>
    %545 = vector.shape_cast %544 : vector<16xf32> to vector<16x1xf32>
    %cst_194 = arith.constant 3.200000e+01 : f32
    %546 = vector.broadcast %cst_194 : f32 to vector<16x1xf32>
    %547 = arith.divf %545, %546 : vector<16x1xf32>
    %cst_195 = arith.constant 9.99999997E-7 : f32
    %548 = vector.broadcast %cst_195 : f32 to vector<16x1xf32>
    %549 = arith.addf %547, %548 : vector<16x1xf32>
    %550 = math.rsqrt %549 : vector<16x1xf32>
    %551 = vector.broadcast %550 : vector<16x1xf32> to vector<16x32xf32>
    %552 = arith.mulf %542, %551 : vector<16x32xf32>
    %553 = vector.broadcast %535 : vector<1x32xf32> to vector<16x32xf32>
    %554 = arith.mulf %552, %553 : vector<16x32xf32>
    %555 = vector.broadcast %536 : vector<1x32xf32> to vector<16x32xf32>
    %556 = arith.addf %554, %555 : vector<16x32xf32>
    %c0_196 = arith.constant 0 : index
    %c0_197 = arith.constant 0 : index
    %557 = vector.load %arg8[%c0_196, %c0_197] : memref<16x32xf32, #tpu.memory_space<vmem>>, vector<16x32xf32>
    tpu.vector_store %arg8[%c0_196, %c0_197], %556 {strides = array<i32>} : memref<16x32xf32, #tpu.memory_space<vmem>>, vector<16x32xf32>,
    %c48 = arith.constant 48 : index
    %c0_198 = arith.constant 0 : index
    %558 = vector.load %arg5[%c48, %c0_198] : memref<720x128xf32, #tpu.memory_space<vmem>>, vector<32x128xf32>
    %cst_199 = arith.constant dense<0.000000e+00> : vector<16x128xf32>
    %559 = tpu.matmul %556, %558, %cst_199 {dimension_numbers = #tpu.dot_dimension_numbers<[1], [0], [0], [1], [0, 0, 1, 1], [], []>} : vector<16x32xf32>, vector<32x128xf32>, vector<16x128xf32> -> vector<16x128xf32>
    %c3 = arith.constant 3 : index
    %c0_200 = arith.constant 0 : index
    %560 = vector.load %arg6[%c3, %c0_200] : memref<32x128xf32, #tpu.memory_space<vmem>>, vector<1x128xf32>
    %561 = vector.broadcast %560 : vector<1x128xf32> to vector<16x128xf32>
    %562 = arith.addf %559, %561 : vector<16x128xf32>
    %c0_201 = arith.constant 0 : index
    %c0_202 = arith.constant 0 : index
    %563 = vector.load %arg7[%c0_201, %c0_202] : memref<16x128xf32, #tpu.memory_space<vmem>>, vector<16x128xf32>
    tpu.vector_store %arg7[%c0_201, %c0_202], %562 {strides = array<i32>} : memref<16x128xf32, #tpu.memory_space<vmem>>, vector<16x128xf32>,
    return
  }
  func.func @transform_0(%arg0: i32) -> (i32, i32) {
    %c0_i32 = arith.constant 0 : i32
    %c0_i32_0 = arith.constant 0 : i32
    %c0_i32_1 = arith.constant 0 : i32
    return %c0_i32, %c0_i32_0 : i32, i32
  }
  func.func @transform_1(%arg0: i32) -> (i32, i32) {
    %c0_i32 = arith.constant 0 : i32
    %c0_i32_0 = arith.constant 0 : i32
    %c0_i32_1 = arith.constant 0 : i32
    return %c0_i32, %c0_i32_0 : i32, i32
  }
  func.func @transform_2(%arg0: i32) -> (i32, i32) {
    %c0_i32 = arith.constant 0 : i32
    %c0_i32_0 = arith.constant 0 : i32
    %c0_i32_1 = arith.constant 0 : i32
    return %c0_i32, %c0_i32_0 : i32, i32
  }
  func.func @transform_3(%arg0: i32) -> (i32, i32) {
    %c0_i32 = arith.constant 0 : i32
    %c0_i32_0 = arith.constant 0 : i32
    %c0_i32_1 = arith.constant 0 : i32
    return %c0_i32, %c0_i32_0 : i32, i32
  }
  func.func @transform_4(%arg0: i32) -> (i32, i32) {
    %c0_i32 = arith.constant 0 : i32
    %c0_i32_0 = arith.constant 0 : i32
    %c0_i32_1 = arith.constant 0 : i32
    return %c0_i32, %c0_i32_0 : i32, i32
  }
  func.func @transform_5(%arg0: i32) -> (i32, i32) {
    %c0_i32 = arith.constant 0 : i32
    %c0_i32_0 = arith.constant 0 : i32
    %c0_i32_1 = arith.constant 0 : i32
    return %c0_i32, %c0_i32_0 : i32, i32
  }
  func.func @transform_6(%arg0: i32) -> (i32, i32) {
    %c0_i32 = arith.constant 0 : i32
    %c0_i32_0 = arith.constant 0 : i32
    %c0_i32_1 = arith.constant 0 : i32
    return %c0_i32, %c0_i32_0 : i32, i32
  }
  func.func @transform_7(%arg0: i32) -> (i32, i32) {
    %c0_i32 = arith.constant 0 : i32
    %c0_i32_0 = arith.constant 0 : i32
    %c0_i32_1 = arith.constant 0 : i32
    return %c0_i32, %c0_i32_0 : i32, i32
  }
}

</mosaic_0001>

<llo_original>
// kernel: forward.1
$region0: #{forward.1}
  #allocation0 [shape = 'u32[]', space=smem, size = 0x4, offset = 0x4, fixed_abs, tag = 'smem constant byte address 0x4 - core index']
  #allocation1 [shape = 'u32[72,128]{1,0:T(1,128)}', space=vmem, size = 0x9000, scoped, tag = 'internal scratch']
  %s0 = inlined_call_operand.vmem [shape: f32[32,48], index: 0, kind: input, shape index: {}]
  %s1 = inlined_call_operand.vmem [shape: f32[16,32], index: 1, kind: input, shape index: {}]
  %s2 = inlined_call_operand.vmem [shape: f32[16,16], index: 2, kind: input, shape index: {}]
  %s3 = inlined_call_operand.vmem [shape: f32[16,32], index: 3, kind: input, shape index: {}]
  %s4 = inlined_call_operand.hbm [shape: f32[720,128], index: 4, kind: input, shape index: {}]
  %s5 = inlined_call_operand.vmem [shape: f32[32,128], index: 5, kind: input, shape index: {}]
  %s6 = inlined_call_operand.vmem [shape: f32[16,128], index: 6, kind: output, shape index: {0}]
  %s7 = inlined_call_operand.hbm [shape: f32[16,32], index: 7, kind: output, shape index: {1}]
  %8 = xla_tuple %s6, %s7
  %s9 = sld [smem:[#allocation0]]
  $region46: #{forward.1} parent=0
    _
  %s11 = ssub.s32 1, %s9
  %s12 = scalar_select 0, %s11, %s9
  $region1: #{forward.1} parent=0
    #allocation2 [shape = 'u8[368640]{0}', space=vmem, size = 0x5a000, scoped, tag = 'input window, operand 4, single buffered']
    #allocation3 [shape = 's32[1]{0}', space=sflag, size = 0x4, scoped, tag = 'scoped memory for forward.1']
    #allocation4 [shape = 's32[1]{0}', space=sflag, size = 0x4, scoped, tag = 'scoped memory for forward.1']
    #allocation5 [shape = 'u8[8192]{0}', space=vmem, size = 0x2000, scoped, tag = 'output window, operand 1, single buffered']
    %13 = vsyncpa [#allocation3], 0
    %14 = vsyncpa [#allocation4], 0
    // Predicated region
    $region2: #{forward.1} parent=1 // pred_check
      _
    $region3: #{forward.1} parent=1 // pred_check_branch
      %16 = sbr.rel (0) target = $region5
    $region4: #{forward.1} parent=1 // pred_region
      _
    $region5: #{forward.1} parent=1 // pred_fallthru
      _
    // Predicated region
    $region6: #{forward.1} parent=1 // pred_check
      _
    $region7: #{forward.1} parent=1 // pred_check_branch
      %18 = sbr.rel (0) target = $region9
    $region8: #{forward.1} parent=1 // pred_region
      _
    $region9: #{forward.1} parent=1 // pred_fallthru
      _
    // Predicated region
    $region10: #{forward.1} parent=1 // pred_check
      _
    $region11: #{forward.1} parent=1 // pred_check_branch
      %20 = sbr.rel (0) target = $region13
    $region12: #{forward.1} parent=1 // pred_region
      _
    $region13: #{forward.1} parent=1 // pred_fallthru
      _
    // Predicated region
    $region14: #{forward.1} parent=1 // pred_check
      _
    $region15: #{forward.1} parent=1 // pred_check_branch
      %22 = sbr.rel (0) target = $region17
    $region16: #{forward.1} parent=1 // pred_region
      _
    $region17: #{forward.1} parent=1 // pred_fallthru
      _
    // Predicated region
    $region18: #{forward.1} parent=1 // pred_check
      _
    $region19: #{forward.1} parent=1 // pred_check_branch
      %24 = sbr.rel (0) target = $region21
    $region20: #{forward.1} parent=1 // pred_region
      %26 = vsyncadd [#allocation3], 0
      %s27 = sshll.u32 %s4, 4
      %s28 = int_to_ptr.hbm [resolvable:$true] %s27
      %s29 = sshll.u32 [#allocation2], 4
      %s30 = int_to_ptr.vmem [resolvable:$true] %s29
      %35 = dma.hbm_to_vmem [thread:$0]  %s28, 11520, %s30, [#allocation3], 128, 128, 8
    $region21: #{forward.1} parent=1 // pred_fallthru
      _
    // Predicated region
    $region22: #{forward.1} parent=1 // pred_check
      _
    $region23: #{forward.1} parent=1 // pred_check_branch
      %37 = sbr.rel (0) target = $region25
    $region24: #{forward.1} parent=1 // pred_region
      _
    $region25: #{forward.1} parent=1 // pred_fallthru
      _
    // Predicated region
    $region26: #{forward.1} parent=1 // pred_check
      _
    $region27: #{forward.1} parent=1 // pred_check_branch
      %39 = sbr.rel (0) target = $region29
    $region28: #{forward.1} parent=1 // pred_region
      %41 = dma.done [#allocation3], 11520
    $region29: #{forward.1} parent=1 // pred_fallthru
      _
    %v42 = vld [vmem:[%s0] sm:$0xff]
    %v43 = vld [vmem:[%s0 + $0x8] sm:$0xff]
    %v44 = vld [vmem:[%s0 + $0x10] sm:$0xff]
    %v45 = vld [vmem:[%s0 + $0x18] sm:$0xff]
    %v46 = vld [vmem:[#allocation2] sm:$0xff]
    %v47 = vld [vmem:[#allocation2 + $0x8] sm:$0xff]
    %v48 = vld [vmem:[#allocation2 + $0x10] sm:$0xff]
    %v49 = vld [vmem:[#allocation2 + $0x18] sm:$0xff]
    %v50 = vld [vmem:[#allocation2 + $0x20] sm:$0xff]
    %v51 = vld [vmem:[#allocation2 + $0x28] sm:$0xff]
    %v52 = vld [vmem:[%s5] sm:$0x1]
    %v53 = vperm.slane %v52, 0
    %vm54 = vcmask 392192
    %v56 = vsel %vm54, %v42, 0
    %v59 = vsel %vm54, %v43, 0
    %v62 = vsel %vm54, %v44, 0
    %v65 = vsel %vm54, %v45, 0
    %67 = vmatpush.msra.mxu0 0.0
    %68 = vmatpush.msra.mxu0 0.0
    %69 = vmatpush.msra.mxu0 0.0
    %70 = vmatpush.msra.mxu0 0.0
    %71 = vmatpush.msra.mxu0 0.0
    %72 = vmatpush.msra.mxu0 0.0
    %73 = vmatpush.msra.mxu0 0.0
    %74 = vmatpush.msra.mxu0 0.0
    %75 = vmatpush.msra.mxu0 0.0
    %76 = vmatpush.msra.mxu0 0.0
    %77 = vmatpush.msra.mxu0 %v51
    %78 = vmatpush.msra.mxu0 %v50
    %79 = vmatpush.msra.mxu0 %v49
    %80 = vmatpush.msra.mxu0 %v48
    %81 = vmatpush.msra.mxu0 %v47
    %82 = vmatpush.msra.mxu0 %v46
    %83 = vmatmul.f32.gmra.mxu0 %v56
    %v84 = vpop.f32.mrf.mxu0
    %v85 = vadd.f32 %v53, %v84
    %86 = vmatmul.f32.gmra.mxu0 %v59
    %v87 = vpop.f32.mrf.mxu0
    %v88 = vadd.f32 %v53, %v87
    %89 = vmatmul.f32.gmra.mxu0 %v62
    %v90 = vpop.f32.mrf.mxu0
    %v91 = vadd.f32 %v53, %v90
    %92 = vmatmul.f32.gmra.mxu0 %v65
    %v93 = vpop.f32.mrf.mxu0
    %v94 = vadd.f32 %v53, %v93
    %95 = vdwg.mxu0
    %v96 = vld [vmem:[%s2] sm:$0xff]
    %v97 = vld [vmem:[%s2 + $0x8] sm:$0xff]
    %v98 = vld [vmem:[%s3] sm:$0xff]
    %v99 = vld [vmem:[%s3 + $0x8] sm:$0xff]
    %v100 = vld [vmem:[%s1] sm:$0xff]
    %v101 = vld [vmem:[%s1 + $0x8] sm:$0xff]
    %v102 = vld [vmem:[%s5 + $0x4] sm:$0x1]
    %v103 = vld [vmem:[%s5 + $0x5] sm:$0x1]
    %vm104 = vcmask 261120
    %v105 = vsel %vm104, %v100, 0.0
    %106 = vadd.xlane.f32.xlu0 %v105
    %v107 = vpop.xlane.xlu0 %106
    %v108 = vsel %vm104, %v101, 0.0
    %109 = vadd.xlane.f32.xlu0 %v108
    %v110 = vpop.xlane.xlu0 %109
    %v111 = vrcp.pop 32.0
    %v112 = vmul.f32 32.0, %v111
    %v113 = vsub.f32 1.0, %v112
    %v114 = vmul.f32 %v111, %v113
    %v115 = vadd.f32 %v111, %v114
    %vm116 = vweird.f32 %v111
    %v117 = vsel %vm116, %v111, %v115
    %v118 = vmul.f32 %v107, %v117
    %v119 = vmul.f32 %v110, %v117
    %v120 = vsub.f32 %v100, %v118
    %v121 = vsub.f32 %v101, %v119
    %v122 = vmul.f32 %v120, %v120
    %v123 = vmul.f32 %v121, %v121
    %v124 = vsel %vm104, %v122, 0.0
    %125 = vadd.xlane.f32.xlu0 %v124
    %v126 = vpop.xlane.xlu0 %125
    %v127 = vsel %vm104, %v123, 0.0
    %128 = vadd.xlane.f32.xlu0 %v127
    %v129 = vpop.xlane.xlu0 %128
    %v130 = vmul.f32 %v126, %v117
    %v131 = vmul.f32 %v129, %v117
    %v132 = vadd.f32 %v130, 1e-06
    %v133 = vadd.f32 %v131, 1e-06
    %v134 = vrsqrt.pop %v132
    %v135 = vmul.f32 %v134, %v132
    %v136 = vmul.f32 %v135, %v134
    %v137 = vmul.f32 0.5, %v136
    %v138 = vsub.f32 1.5, %v137
    %v139 = vmul.f32 %v134, %v138
    %vm140 = vweird.f32 %v132
    %vm141 = vweird.f32 %v134
    %vm142 = vmor %vm140, %vm141
    %v143 = vsel %vm142, %v134, %v139
    %v144 = vrsqrt.pop %v133
    %v145 = vmul.f32 %v144, %v133
    %v146 = vmul.f32 %v145, %v144
    %v147 = vmul.f32 0.5, %v146
    %v148 = vsub.f32 1.5, %v147
    %v149 = vmul.f32 %v144, %v148
    %vm150 = vweird.f32 %v133
    %vm151 = vweird.f32 %v144
    %vm152 = vmor %vm150, %vm151
    %v153 = vsel %vm152, %v144, %v149
    %v154 = vmul.f32 %v120, %v143
    %v155 = vmul.f32 %v121, %v153
    %v156 = vperm.slane %v102, 0
    %v157 = vmul.f32 %v154, %v156
    %v158 = vmul.f32 %v155, %v156
    %v159 = vperm.slane %v103, 0
    %v160 = vadd.f32 %v157, %v159
    %v161 = vadd.f32 %v158, %v159
    %v162 = vld [vmem:[#allocation2 + $0x50] sm:$0xff]
    %v163 = vld [vmem:[#allocation2 + $0x58] sm:$0xff]
    %v164 = vld [vmem:[#allocation2 + $0x60] sm:$0xff]
    %v165 = vld [vmem:[#allocation2 + $0x68] sm:$0xff]
    %v166 = vld [vmem:[%s5 + $0x6] sm:$0x1]
    %v167 = vperm.slane %v166, 0
    %v169 = vsel %vm104, %v160, 0
    %v172 = vsel %vm104, %v161, 0
    %174 = vmatpush.msra.mxu0 0.0
    %175 = vmatpush.msra.mxu0 0.0
    %176 = vmatpush.msra.mxu0 0.0
    %177 = vmatpush.msra.mxu0 0.0
    %178 = vmatpush.msra.mxu0 0.0
    %179 = vmatpush.msra.mxu0 0.0
    %180 = vmatpush.msra.mxu0 0.0
    %181 = vmatpush.msra.mxu0 0.0
    %182 = vmatpush.msra.mxu0 0.0
    %183 = vmatpush.msra.mxu0 0.0
    %184 = vmatpush.msra.mxu0 0.0
    %185 = vmatpush.msra.mxu0 0.0
    %186 = vmatpush.msra.mxu0 %v165
    %187 = vmatpush.msra.mxu0 %v164
    %188 = vmatpush.msra.mxu0 %v163
    %189 = vmatpush.msra.mxu0 %v162
    %190 = vmatmul.f32.gmra.mxu0 %v169
    %v191 = vpop.f32.mrf.mxu0
    %v192 = vadd.f32 %v167, %v191
    %193 = vmatmul.f32.gmra.mxu0 %v172
    %v194 = vpop.f32.mrf.mxu0
    %v195 = vadd.f32 %v167, %v194
    %196 = vdwg.mxu0
    %199 = vrot.lane.b32.xlu0 %v192, 96
    %v200 = vpop.permute.xlu0 %199
    %201 = vrot.lane.b32.xlu0 %v195, 96
    %v202 = vpop.permute.xlu0 %201
    %vm203 = vcmask 64512
    %v204 = vsel %vm203, %v192, 0
    %v206 = vsel %vm203, %v195, 0
    %v208 = vsel %vm203, %v200, 0
    %v210 = vsel %vm203, %v202, 0
    %212 = vmatpush.xpose.msra.mxu0 0.0
    %213 = vmatpush.xpose.msra.mxu0 0.0
    %214 = vmatpush.xpose.msra.mxu0 0.0
    %215 = vmatpush.xpose.msra.mxu0 0.0
    %216 = vmatpush.xpose.msra.mxu0 0.0
    %217 = vmatpush.xpose.msra.mxu0 0.0
    %218 = vmatpush.xpose.msra.mxu0 0.0
    %219 = vmatpush.xpose.msra.mxu0 0.0
    %220 = vmatpush.xpose.msra.mxu0 0.0
    %221 = vmatpush.xpose.msra.mxu0 0.0
    %222 = vmatpush.xpose.msra.mxu0 0.0
    %223 = vmatpush.xpose.msra.mxu0 0.0
    %224 = vmatpush.xpose.msra.mxu0 0.0
    %225 = vmatpush.xpose.msra.mxu0 0.0
    %226 = vmatpush.xpose.msra.mxu0 %v210
    %227 = vmatpush.xpose.msra.mxu0 %v208
    %228 = vmatmul.f32.gmra.mxu0 %v204
    %v229 = vpop.f32.mrf.mxu0
    %v230 = vadd.f32 %v96, %v229
    %231 = vmatmul.f32.gmra.mxu0 %v206
    %v232 = vpop.f32.mrf.mxu0
    %v233 = vadd.f32 %v97, %v232
    %234 = vdwg.mxu0
    %vm235 = vcmask 130048
    %v236 = vsel %vm235, %v230, -inf
    %237 = vmax.xlane.f32.xlu0 %v236
    %v238 = vpop.xlane.xlu0 %237
    %v239 = vsel %vm235, %v233, -inf
    %240 = vmax.xlane.f32.xlu0 %v239
    %v241 = vpop.xlane.xlu0 %240
    %v242 = vsub.f32 %v230, %v238
    %v243 = vsub.f32 %v233, %v241
    %v244 = vmul.f32 %v242, 1.442695
    %v245 = vpow.pop %v244
    %v246 = vmul.f32 %v243, 1.442695
    %v247 = vpow.pop %v246
    %v248 = vsel %vm235, %v245, 0.0
    %249 = vadd.xlane.f32.xlu0 %v248
    %v250 = vpop.xlane.xlu0 %249
    %v251 = vsel %vm235, %v247, 0.0
    %252 = vadd.xlane.f32.xlu0 %v251
    %v253 = vpop.xlane.xlu0 %252
    %254 = vrot.lane.b32.xlu0 %v192, 64
    %v255 = vpop.permute.xlu0 %254
    %256 = vrot.lane.b32.xlu0 %v195, 64
    %v257 = vpop.permute.xlu0 %256
    %v261 = vsel %vm235, %v245, 0
    %v264 = vsel %vm235, %v247, 0
    %266 = vmatpush.msra.mxu0 0.0
    %267 = vmatpush.msra.mxu0 0.0
    %268 = vmatpush.msra.mxu0 0.0
    %269 = vmatpush.msra.mxu0 0.0
    %270 = vmatpush.msra.mxu0 0.0
    %271 = vmatpush.msra.mxu0 0.0
    %272 = vmatpush.msra.mxu0 0.0
    %273 = vmatpush.msra.mxu0 0.0
    %274 = vmatpush.msra.mxu0 0.0
    %275 = vmatpush.msra.mxu0 0.0
    %276 = vmatpush.msra.mxu0 0.0
    %277 = vmatpush.msra.mxu0 0.0
    %278 = vmatpush.msra.mxu0 0.0
    %279 = vmatpush.msra.mxu0 0.0
    %280 = vmatpush.msra.mxu0 %v257
    %281 = vmatpush.msra.mxu0 %v255
    %282 = vmatmul.f32.gmra.mxu0 %v261
    %v283 = vpop.f32.mrf.mxu0
    %v284 = vadd.f32 0.0, %v283
    %285 = vmatmul.f32.gmra.mxu0 %v264
    %v286 = vpop.f32.mrf.mxu0
    %v287 = vadd.f32 0.0, %v286
    %288 = vdwg.mxu0
    %v289 = vrcp.pop %v250
    %v290 = vrcp.pop %v253
    %v291 = vmul.f32 %v284, %v289
    %v292 = vmul.f32 %v287, %v290
    %v293 = vld [vmem:[#allocation2 + $0x70] sm:$0xff]
    %294 = vrot.lane.b32.xlu0 %v192, 120
    %v295 = vpop.permute.xlu0 %294
    %296 = vrot.lane.b32.xlu0 %v195, 120
    %v297 = vpop.permute.xlu0 %296
    %298 = vrot.lane.b32.xlu0 %v192, 88
    %v299 = vpop.permute.xlu0 %298
    %300 = vrot.lane.b32.xlu0 %v195, 88
    %v301 = vpop.permute.xlu0 %300
    %v302 = vsel %vm203, %v295, 0
    %v304 = vsel %vm203, %v297, 0
    %v306 = vsel %vm203, %v299, 0
    %v308 = vsel %vm203, %v301, 0
    %310 = vmatpush.xpose.msra.mxu0 0.0
    %311 = vmatpush.xpose.msra.mxu0 0.0
    %312 = vmatpush.xpose.msra.mxu0 0.0
    %313 = vmatpush.xpose.msra.mxu0 0.0
    %314 = vmatpush.xpose.msra.mxu0 0.0
    %315 = vmatpush.xpose.msra.mxu0 0.0
    %316 = vmatpush.xpose.msra.mxu0 0.0
    %317 = vmatpush.xpose.msra.mxu0 0.0
    %318 = vmatpush.xpose.msra.mxu0 0.0
    %319 = vmatpush.xpose.msra.mxu0 0.0
    %320 = vmatpush.xpose.msra.mxu0 0.0
    %321 = vmatpush.xpose.msra.mxu0 0.0
    %322 = vmatpush.xpose.msra.mxu0 0.0
    %323 = vmatpush.xpose.msra.mxu0 0.0
    %324 = vmatpush.xpose.msra.mxu0 %v308
    %325 = vmatpush.xpose.msra.mxu0 %v306
    %326 = vmatmul.f32.gmra.mxu0 %v302
    %v327 = vpop.f32.mrf.mxu0
    %v328 = vadd.f32 %v96, %v327
    %329 = vmatmul.f32.gmra.mxu0 %v304
    %v330 = vpop.f32.mrf.mxu0
    %v331 = vadd.f32 %v97, %v330
    %332 = vdwg.mxu0
    %v333 = vsel %vm235, %v328, -inf
    %334 = vmax.xlane.f32.xlu0 %v333
    %v335 = vpop.xlane.xlu0 %334
    %v336 = vsel %vm235, %v331, -inf
    %337 = vmax.xlane.f32.xlu0 %v336
    %v338 = vpop.xlane.xlu0 %337
    %v339 = vsub.f32 %v328, %v335
    %v340 = vsub.f32 %v331, %v338
    %v341 = vmul.f32 %v339, 1.442695
    %v342 = vpow.pop %v341
    %v343 = vmul.f32 %v340, 1.442695
    %v344 = vpow.pop %v343
    %v345 = vsel %vm235, %v342, 0.0
    %346 = vadd.xlane.f32.xlu0 %v345
    %v347 = vpop.xlane.xlu0 %346
    %v348 = vsel %vm235, %v344, 0.0
    %349 = vadd.xlane.f32.xlu0 %v348
    %v350 = vpop.xlane.xlu0 %349
    %351 = vrot.lane.b32.xlu0 %v192, 56
    %v352 = vpop.permute.xlu0 %351
    %353 = vrot.lane.b32.xlu0 %v195, 56
    %v354 = vpop.permute.xlu0 %353
    %v358 = vsel %vm235, %v342, 0
    %v361 = vsel %vm235, %v344, 0
    %363 = vmatpush.msra.mxu0 0.0
    %364 = vmatpush.msra.mxu0 0.0
    %365 = vmatpush.msra.mxu0 0.0
    %366 = vmatpush.msra.mxu0 0.0
    %367 = vmatpush.msra.mxu0 0.0
    %368 = vmatpush.msra.mxu0 0.0
    %369 = vmatpush.msra.mxu0 0.0
    %370 = vmatpush.msra.mxu0 0.0
    %371 = vmatpush.msra.mxu0 0.0
    %372 = vmatpush.msra.mxu0 0.0
    %373 = vmatpush.msra.mxu0 0.0
    %374 = vmatpush.msra.mxu0 0.0
    %375 = vmatpush.msra.mxu0 0.0
    %376 = vmatpush.msra.mxu0 0.0
    %377 = vmatpush.msra.mxu0 %v354
    %378 = vmatpush.msra.mxu0 %v352
    %379 = vmatmul.f32.gmra.mxu0 %v358
    %v380 = vpop.f32.mrf.mxu0
    %v381 = vadd.f32 0.0, %v380
    %382 = vmatmul.f32.gmra.mxu0 %v361
    %v383 = vpop.f32.mrf.mxu0
    %v384 = vadd.f32 0.0, %v383
    %385 = vdwg.mxu0
    %v386 = vrcp.pop %v347
    %v387 = vrcp.pop %v350
    %v388 = vmul.f32 %v381, %v386
    %v389 = vmul.f32 %v384, %v387
    %v390 = vld [vmem:[#allocation2 + $0x78] sm:$0xff]
    %v392 = vsel %vm203, %v388, 0
    %v395 = vsel %vm203, %v389, 0
    %397 = vmatpush.msra.mxu0 0.0
    %398 = vmatpush.msra.mxu0 0.0
    %399 = vmatpush.msra.mxu0 0.0
    %400 = vmatpush.msra.mxu0 0.0
    %401 = vmatpush.msra.mxu0 0.0
    %402 = vmatpush.msra.mxu0 0.0
    %403 = vmatpush.msra.mxu0 0.0
    %404 = vmatpush.msra.mxu0 0.0
    %405 = vmatpush.msra.mxu0 0.0
    %406 = vmatpush.msra.mxu0 0.0
    %407 = vmatpush.msra.mxu0 0.0
    %408 = vmatpush.msra.mxu0 0.0
    %409 = vmatpush.msra.mxu0 0.0
    %410 = vmatpush.msra.mxu0 0.0
    %411 = vmatpush.msra.mxu0 0.0
    %412 = vmatpush.msra.mxu0 %v390
    %413 = vmatmul.f32.gmra.mxu0 %v392
    %v414 = vpop.f32.mrf.mxu0
    %v415 = vadd.f32 0.0, %v414
    %416 = vmatmul.f32.gmra.mxu0 %v395
    %v417 = vpop.f32.mrf.mxu0
    %v418 = vadd.f32 0.0, %v417
    %419 = vdwg.mxu0
    %v421 = vsel %vm203, %v291, 0
    %v424 = vsel %vm203, %v292, 0
    %426 = vmatpush.msra.mxu0 0.0
    %427 = vmatpush.msra.mxu0 0.0
    %428 = vmatpush.msra.mxu0 0.0
    %429 = vmatpush.msra.mxu0 0.0
    %430 = vmatpush.msra.mxu0 0.0
    %431 = vmatpush.msra.mxu0 0.0
    %432 = vmatpush.msra.mxu0 0.0
    %433 = vmatpush.msra.mxu0 0.0
    %434 = vmatpush.msra.mxu0 0.0
    %435 = vmatpush.msra.mxu0 0.0
    %436 = vmatpush.msra.mxu0 0.0
    %437 = vmatpush.msra.mxu0 0.0
    %438 = vmatpush.msra.mxu0 0.0
    %439 = vmatpush.msra.mxu0 0.0
    %440 = vmatpush.msra.mxu0 0.0
    %441 = vmatpush.msra.mxu0 %v293
    %442 = vmatmul.f32.gmra.mxu0 %v421
    %v443 = vpop.f32.mrf.mxu0
    %v444 = vadd.f32 %v415, %v443
    %445 = vmatmul.f32.gmra.mxu0 %v424
    %v446 = vpop.f32.mrf.mxu0
    %v447 = vadd.f32 %v418, %v446
    %448 = vdwg.mxu0
    %449 = vrot.lane.b32.xlu0 %v192, 112
    %v450 = vpop.permute.xlu0 %449
    %451 = vrot.lane.b32.xlu0 %v195, 112
    %v452 = vpop.permute.xlu0 %451
    %453 = vrot.lane.b32.xlu0 %v192, 80
    %v454 = vpop.permute.xlu0 %453
    %455 = vrot.lane.b32.xlu0 %v195, 80
    %v456 = vpop.permute.xlu0 %455
    %v457 = vsel %vm203, %v450, 0
    %v459 = vsel %vm203, %v452, 0
    %v461 = vsel %vm203, %v454, 0
    %v463 = vsel %vm203, %v456, 0
    %465 = vmatpush.xpose.msra.mxu0 0.0
    %466 = vmatpush.xpose.msra.mxu0 0.0
    %467 = vmatpush.xpose.msra.mxu0 0.0
    %468 = vmatpush.xpose.msra.mxu0 0.0
    %469 = vmatpush.xpose.msra.mxu0 0.0
    %470 = vmatpush.xpose.msra.mxu0 0.0
    %471 = vmatpush.xpose.msra.mxu0 0.0
    %472 = vmatpush.xpose.msra.mxu0 0.0
    %473 = vmatpush.xpose.msra.mxu0 0.0
    %474 = vmatpush.xpose.msra.mxu0 0.0
    %475 = vmatpush.xpose.msra.mxu0 0.0
    %476 = vmatpush.xpose.msra.mxu0 0.0
    %477 = vmatpush.xpose.msra.mxu0 0.0
    %478 = vmatpush.xpose.msra.mxu0 0.0
    %479 = vmatpush.xpose.msra.mxu0 %v463
    %480 = vmatpush.xpose.msra.mxu0 %v461
    %481 = vmatmul.f32.gmra.mxu0 %v457
    %v482 = vpop.f32.mrf.mxu0
    %v483 = vadd.f32 %v96, %v482
    %484 = vmatmul.f32.gmra.mxu0 %v459
    %v485 = vpop.f32.mrf.mxu0
    %v486 = vadd.f32 %v97, %v485
    %487 = vdwg.mxu0
    %v488 = vsel %vm235, %v483, -inf
    %489 = vmax.xlane.f32.xlu0 %v488
    %v490 = vpop.xlane.xlu0 %489
    %v491 = vsel %vm235, %v486, -inf
    %492 = vmax.xlane.f32.xlu0 %v491
    %v493 = vpop.xlane.xlu0 %492
    %v494 = vsub.f32 %v483, %v490
    %v495 = vsub.f32 %v486, %v493
    %v496 = vmul.f32 %v494, 1.442695
    %v497 = vpow.pop %v496
    %v498 = vmul.f32 %v495, 1.442695
    %v499 = vpow.pop %v498
    %v500 = vsel %vm235, %v497, 0.0
    %501 = vadd.xlane.f32.xlu0 %v500
    %v502 = vpop.xlane.xlu0 %501
    %v503 = vsel %vm235, %v499, 0.0
    %504 = vadd.xlane.f32.xlu0 %v503
    %v505 = vpop.xlane.xlu0 %504
    %506 = vrot.lane.b32.xlu0 %v192, 48
    %v507 = vpop.permute.xlu0 %506
    %508 = vrot.lane.b32.xlu0 %v195, 48
    %v509 = vpop.permute.xlu0 %508
    %v513 = vsel %vm235, %v497, 0
    %v516 = vsel %vm235, %v499, 0
    %518 = vmatpush.msra.mxu0 0.0
    %519 = vmatpush.msra.mxu0 0.0
    %520 = vmatpush.msra.mxu0 0.0
    %521 = vmatpush.msra.mxu0 0.0
    %522 = vmatpush.msra.mxu0 0.0
    %523 = vmatpush.msra.mxu0 0.0
    %524 = vmatpush.msra.mxu0 0.0
    %525 = vmatpush.msra.mxu0 0.0
    %526 = vmatpush.msra.mxu0 0.0
    %527 = vmatpush.msra.mxu0 0.0
    %528 = vmatpush.msra.mxu0 0.0
    %529 = vmatpush.msra.mxu0 0.0
    %530 = vmatpush.msra.mxu0 0.0
    %531 = vmatpush.msra.mxu0 0.0
    %532 = vmatpush.msra.mxu0 %v509
    %533 = vmatpush.msra.mxu0 %v507
    %534 = vmatmul.f32.gmra.mxu0 %v513
    %v535 = vpop.f32.mrf.mxu0
    %v536 = vadd.f32 0.0, %v535
    %537 = vmatmul.f32.gmra.mxu0 %v516
    %v538 = vpop.f32.mrf.mxu0
    %v539 = vadd.f32 0.0, %v538
    %540 = vdwg.mxu0
    %v541 = vrcp.pop %v502
    %v542 = vrcp.pop %v505
    %v543 = vmul.f32 %v536, %v541
    %v544 = vmul.f32 %v539, %v542
    %v545 = vld [vmem:[#allocation2 + $0x80] sm:$0xff]
    %v547 = vsel %vm203, %v543, 0
    %v550 = vsel %vm203, %v544, 0
    %552 = vmatpush.msra.mxu0 0.0
    %553 = vmatpush.msra.mxu0 0.0
    %554 = vmatpush.msra.mxu0 0.0
    %555 = vmatpush.msra.mxu0 0.0
    %556 = vmatpush.msra.mxu0 0.0
    %557 = vmatpush.msra.mxu0 0.0
    %558 = vmatpush.msra.mxu0 0.0
    %559 = vmatpush.msra.mxu0 0.0
    %560 = vmatpush.msra.mxu0 0.0
    %561 = vmatpush.msra.mxu0 0.0
    %562 = vmatpush.msra.mxu0 0.0
    %563 = vmatpush.msra.mxu0 0.0
    %564 = vmatpush.msra.mxu0 0.0
    %565 = vmatpush.msra.mxu0 0.0
    %566 = vmatpush.msra.mxu0 0.0
    %567 = vmatpush.msra.mxu0 %v545
    %568 = vmatmul.f32.gmra.mxu0 %v547
    %v569 = vpop.f32.mrf.mxu0
    %v570 = vadd.f32 0.0, %v569
    %571 = vmatmul.f32.gmra.mxu0 %v550
    %v572 = vpop.f32.mrf.mxu0
    %v573 = vadd.f32 0.0, %v572
    %574 = vdwg.mxu0
    %v575 = vadd.f32 %v444, %v570
    %v576 = vadd.f32 %v447, %v573
    %577 = vrot.lane.b32.xlu0 %v192, 104
    %v578 = vpop.permute.xlu0 %577
    %579 = vrot.lane.b32.xlu0 %v195, 104
    %v580 = vpop.permute.xlu0 %579
    %581 = vrot.lane.b32.xlu0 %v192, 72
    %v582 = vpop.permute.xlu0 %581
    %583 = vrot.lane.b32.xlu0 %v195, 72
    %v584 = vpop.permute.xlu0 %583
    %v585 = vsel %vm203, %v578, 0
    %v587 = vsel %vm203, %v580, 0
    %v589 = vsel %vm203, %v582, 0
    %v591 = vsel %vm203, %v584, 0
    %593 = vmatpush.xpose.msra.mxu0 0.0
    %594 = vmatpush.xpose.msra.mxu0 0.0
    %595 = vmatpush.xpose.msra.mxu0 0.0
    %596 = vmatpush.xpose.msra.mxu0 0.0
    %597 = vmatpush.xpose.msra.mxu0 0.0
    %598 = vmatpush.xpose.msra.mxu0 0.0
    %599 = vmatpush.xpose.msra.mxu0 0.0
    %600 = vmatpush.xpose.msra.mxu0 0.0
    %601 = vmatpush.xpose.msra.mxu0 0.0
    %602 = vmatpush.xpose.msra.mxu0 0.0
    %603 = vmatpush.xpose.msra.mxu0 0.0
    %604 = vmatpush.xpose.msra.mxu0 0.0
    %605 = vmatpush.xpose.msra.mxu0 0.0
    %606 = vmatpush.xpose.msra.mxu0 0.0
    %607 = vmatpush.xpose.msra.mxu0 %v591
    %608 = vmatpush.xpose.msra.mxu0 %v589
    %609 = vmatmul.f32.gmra.mxu0 %v585
    %v610 = vpop.f32.mrf.mxu0
    %v611 = vadd.f32 %v96, %v610
    %612 = vmatmul.f32.gmra.mxu0 %v587
    %v613 = vpop.f32.mrf.mxu0
    %v614 = vadd.f32 %v97, %v613
    %615 = vdwg.mxu0
    %v616 = vsel %vm235, %v611, -inf
    %617 = vmax.xlane.f32.xlu0 %v616
    %v618 = vpop.xlane.xlu0 %617
    %v619 = vsel %vm235, %v614, -inf
    %620 = vmax.xlane.f32.xlu0 %v619
    %v621 = vpop.xlane.xlu0 %620
    %v622 = vsub.f32 %v611, %v618
    %v623 = vsub.f32 %v614, %v621
    %v624 = vmul.f32 %v622, 1.442695
    %v625 = vpow.pop %v624
    %v626 = vmul.f32 %v623, 1.442695
    %v627 = vpow.pop %v626
    %v628 = vsel %vm235, %v625, 0.0
    %629 = vadd.xlane.f32.xlu0 %v628
    %v630 = vpop.xlane.xlu0 %629
    %v631 = vsel %vm235, %v627, 0.0
    %632 = vadd.xlane.f32.xlu0 %v631
    %v633 = vpop.xlane.xlu0 %632
    %634 = vrot.lane.b32.xlu0 %v192, 40
    %v635 = vpop.permute.xlu0 %634
    %636 = vrot.lane.b32.xlu0 %v195, 40
    %v637 = vpop.permute.xlu0 %636
    %v641 = vsel %vm235, %v625, 0
    %v644 = vsel %vm235, %v627, 0
    %646 = vmatpush.msra.mxu0 0.0
    %647 = vmatpush.msra.mxu0 0.0
    %648 = vmatpush.msra.mxu0 0.0
    %649 = vmatpush.msra.mxu0 0.0
    %650 = vmatpush.msra.mxu0 0.0
    %651 = vmatpush.msra.mxu0 0.0
    %652 = vmatpush.msra.mxu0 0.0
    %653 = vmatpush.msra.mxu0 0.0
    %654 = vmatpush.msra.mxu0 0.0
    %655 = vmatpush.msra.mxu0 0.0
    %656 = vmatpush.msra.mxu0 0.0
    %657 = vmatpush.msra.mxu0 0.0
    %658 = vmatpush.msra.mxu0 0.0
    %659 = vmatpush.msra.mxu0 0.0
    %660 = vmatpush.msra.mxu0 %v637
    %661 = vmatpush.msra.mxu0 %v635
    %662 = vmatmul.f32.gmra.mxu0 %v641
    %v663 = vpop.f32.mrf.mxu0
    %v664 = vadd.f32 0.0, %v663
    %665 = vmatmul.f32.gmra.mxu0 %v644
    %v666 = vpop.f32.mrf.mxu0
    %v667 = vadd.f32 0.0, %v666
    %668 = vdwg.mxu0
    %v669 = vrcp.pop %v630
    %v670 = vrcp.pop %v633
    %v671 = vmul.f32 %v664, %v669
    %v672 = vmul.f32 %v667, %v670
    %v673 = vld [vmem:[#allocation2 + $0x88] sm:$0xff]
    %v675 = vsel %vm203, %v671, 0
    %v678 = vsel %vm203, %v672, 0
    %680 = vmatpush.msra.mxu0 0.0
    %681 = vmatpush.msra.mxu0 0.0
    %682 = vmatpush.msra.mxu0 0.0
    %683 = vmatpush.msra.mxu0 0.0
    %684 = vmatpush.msra.mxu0 0.0
    %685 = vmatpush.msra.mxu0 0.0
    %686 = vmatpush.msra.mxu0 0.0
    %687 = vmatpush.msra.mxu0 0.0
    %688 = vmatpush.msra.mxu0 0.0
    %689 = vmatpush.msra.mxu0 0.0
    %690 = vmatpush.msra.mxu0 0.0
    %691 = vmatpush.msra.mxu0 0.0
    %692 = vmatpush.msra.mxu0 0.0
    %693 = vmatpush.msra.mxu0 0.0
    %694 = vmatpush.msra.mxu0 0.0
    %695 = vmatpush.msra.mxu0 %v673
    %696 = vmatmul.f32.gmra.mxu0 %v675
    %v697 = vpop.f32.mrf.mxu0
    %v698 = vadd.f32 0.0, %v697
    %699 = vmatmul.f32.gmra.mxu0 %v678
    %v700 = vpop.f32.mrf.mxu0
    %v701 = vadd.f32 0.0, %v700
    %702 = vdwg.mxu0
    %v703 = vadd.f32 %v575, %v698
    %v704 = vadd.f32 %v576, %v701
    %v705 = vadd.f32 %v100, %v703
    %v706 = vadd.f32 %v101, %v704
    %v707 = vld [vmem:[%s5 + $0x7] sm:$0x1]
    %v708 = vperm.slane %v707, 0
    %v709 = vadd.f32 %v705, %v708
    %v710 = vadd.f32 %v706, %v708
    %v711 = vld [vmem:[%s5 + $0x8] sm:$0x1]
    %v712 = vld [vmem:[%s5 + $0x9] sm:$0x1]
    %v713 = vsel %vm104, %v709, 0.0
    %714 = vadd.xlane.f32.xlu0 %v713
    %v715 = vpop.xlane.xlu0 %714
    %v716 = vsel %vm104, %v710, 0.0
    %717 = vadd.xlane.f32.xlu0 %v716
    %v718 = vpop.xlane.xlu0 %717
    %v719 = vmul.f32 %v715, %v117
    %v720 = vmul.f32 %v718, %v117
    %v721 = vsub.f32 %v709, %v719
    %v722 = vsub.f32 %v710, %v720
    %v723 = vmul.f32 %v721, %v721
    %v724 = vmul.f32 %v722, %v722
    %v725 = vsel %vm104, %v723, 0.0
    %726 = vadd.xlane.f32.xlu0 %v725
    %v727 = vpop.xlane.xlu0 %726
    %v728 = vsel %vm104, %v724, 0.0
    %729 = vadd.xlane.f32.xlu0 %v728
    %v730 = vpop.xlane.xlu0 %729
    %v731 = vmul.f32 %v727, %v117
    %v732 = vmul.f32 %v730, %v117
    %v733 = vadd.f32 %v731, 1e-06
    %v734 = vadd.f32 %v732, 1e-06
    %v735 = vrsqrt.pop %v733
    %v736 = vmul.f32 %v735, %v733
    %v737 = vmul.f32 %v736, %v735
    %v738 = vmul.f32 0.5, %v737
    %v739 = vsub.f32 1.5, %v738
    %v740 = vmul.f32 %v735, %v739
    %vm741 = vweird.f32 %v733
    %vm742 = vweird.f32 %v735
    %vm743 = vmor %vm741, %vm742
    %v744 = vsel %vm743, %v735, %v740
    %v745 = vrsqrt.pop %v734
    %v746 = vmul.f32 %v745, %v734
    %v747 = vmul.f32 %v746, %v745
    %v748 = vmul.f32 0.5, %v747
    %v749 = vsub.f32 1.5, %v748
    %v750 = vmul.f32 %v745, %v749
    %vm751 = vweird.f32 %v734
    %vm752 = vweird.f32 %v745
    %vm753 = vmor %vm751, %vm752
    %v754 = vsel %vm753, %v745, %v750
    %v755 = vmul.f32 %v721, %v744
    %v756 = vmul.f32 %v722, %v754
    %v757 = vperm.slane %v711, 0
    %v758 = vmul.f32 %v755, %v757
    %v759 = vmul.f32 %v756, %v757
    %v760 = vperm.slane %v712, 0
    %v761 = vadd.f32 %v758, %v760
    %v762 = vadd.f32 %v759, %v760
    %v763 = vld [vmem:[#allocation2 + $0x90] sm:$0xff]
    %v764 = vld [vmem:[#allocation2 + $0x98] sm:$0xff]
    %v765 = vld [vmem:[#allocation2 + $0xa0] sm:$0xff]
    %v766 = vld [vmem:[#allocation2 + $0xa8] sm:$0xff]
    %v767 = vld [vmem:[%s5 + $0xa] sm:$0x1]
    %v768 = vperm.slane %v767, 0
    %v770 = vsel %vm104, %v761, 0
    %v773 = vsel %vm104, %v762, 0
    %775 = vmatpush.msra.mxu0 0.0
    %776 = vmatpush.msra.mxu0 0.0
    %777 = vmatpush.msra.mxu0 0.0
    %778 = vmatpush.msra.mxu0 0.0
    %779 = vmatpush.msra.mxu0 0.0
    %780 = vmatpush.msra.mxu0 0.0
    %781 = vmatpush.msra.mxu0 0.0
    %782 = vmatpush.msra.mxu0 0.0
    %783 = vmatpush.msra.mxu0 0.0
    %784 = vmatpush.msra.mxu0 0.0
    %785 = vmatpush.msra.mxu0 0.0
    %786 = vmatpush.msra.mxu0 0.0
    %787 = vmatpush.msra.mxu0 %v766
    %788 = vmatpush.msra.mxu0 %v765
    %789 = vmatpush.msra.mxu0 %v764
    %790 = vmatpush.msra.mxu0 %v763
    %791 = vmatmul.f32.gmra.mxu0 %v770
    %v792 = vpop.f32.mrf.mxu0
    %v793 = vadd.f32 %v768, %v792
    %794 = vmatmul.f32.gmra.mxu0 %v773
    %v795 = vpop.f32.mrf.mxu0
    %v796 = vadd.f32 %v768, %v795
    %797 = vdwg.mxu0
    %v798 = vld [vmem:[#allocation2 + $0xb0] sm:$0xff]
    %v799 = vld [vmem:[#allocation2 + $0xb8] sm:$0xff]
    %v800 = vld [vmem:[#allocation2 + $0xc0] sm:$0xff]
    %v801 = vld [vmem:[#allocation2 + $0xc8] sm:$0xff]
    %v802 = vld [vmem:[%s5 + $0xb] sm:$0x1]
    %v803 = vperm.slane %v802, 0
    %v805 = vsel %vm104, %v85, 0
    %v808 = vsel %vm104, %v88, 0
    %v811 = vsel %vm104, %v91, 0
    %v814 = vsel %vm104, %v94, 0
    %816 = vmatpush.msra.mxu0 0.0
    %817 = vmatpush.msra.mxu0 0.0
    %818 = vmatpush.msra.mxu0 0.0
    %819 = vmatpush.msra.mxu0 0.0
    %820 = vmatpush.msra.mxu0 0.0
    %821 = vmatpush.msra.mxu0 0.0
    %822 = vmatpush.msra.mxu0 0.0
    %823 = vmatpush.msra.mxu0 0.0
    %824 = vmatpush.msra.mxu0 0.0
    %825 = vmatpush.msra.mxu0 0.0
    %826 = vmatpush.msra.mxu0 0.0
    %827 = vmatpush.msra.mxu0 0.0
    %828 = vmatpush.msra.mxu0 %v801
    %829 = vmatpush.msra.mxu0 %v800
    %830 = vmatpush.msra.mxu0 %v799
    %831 = vmatpush.msra.mxu0 %v798
    %832 = vmatmul.f32.gmra.mxu0 %v805
    %v833 = vpop.f32.mrf.mxu0
    %v834 = vadd.f32 %v803, %v833
    %835 = vmatmul.f32.gmra.mxu0 %v808
    %v836 = vpop.f32.mrf.mxu0
    %v837 = vadd.f32 %v803, %v836
    %838 = vmatmul.f32.gmra.mxu0 %v811
    %v839 = vpop.f32.mrf.mxu0
    %v840 = vadd.f32 %v803, %v839
    %841 = vmatmul.f32.gmra.mxu0 %v814
    %v842 = vpop.f32.mrf.mxu0
    %v843 = vadd.f32 %v803, %v842
    %844 = vdwg.mxu0
    %v846 = vsel %vm203, %v793, 0
    %v849 = vsel %vm203, %v796, 0
    %v852 = vsel %vm203, %v834, 0
    %v855 = vsel %vm203, %v837, 0
    %v858 = vsel %vm203, %v840, 0
    %v861 = vsel %vm203, %v843, 0
    %863 = vmatpush.xpose.msra.mxu0 0.0
    %864 = vmatpush.xpose.msra.mxu0 0.0
    %865 = vmatpush.xpose.msra.mxu0 0.0
    %866 = vmatpush.xpose.msra.mxu0 0.0
    %867 = vmatpush.xpose.msra.mxu0 0.0
    %868 = vmatpush.xpose.msra.mxu0 0.0
    %869 = vmatpush.xpose.msra.mxu0 0.0
    %870 = vmatpush.xpose.msra.mxu0 0.0
    %871 = vmatpush.xpose.msra.mxu0 0.0
    %872 = vmatpush.xpose.msra.mxu0 0.0
    %873 = vmatpush.xpose.msra.mxu0 0.0
    %874 = vmatpush.xpose.msra.mxu0 0.0
    %875 = vmatpush.xpose.msra.mxu0 %v861
    %876 = vmatpush.xpose.msra.mxu0 %v858
    %877 = vmatpush.xpose.msra.mxu0 %v855
    %878 = vmatpush.xpose.msra.mxu0 %v852
    %879 = vmatmul.f32.gmra.mxu0 %v846
    %v880 = vpop.f32.mrf.mxu0
    %v881 = vadd.f32 %v98, %v880
    %882 = vmatmul.f32.gmra.mxu0 %v849
    %v883 = vpop.f32.mrf.mxu0
    %v884 = vadd.f32 %v99, %v883
    %885 = vdwg.mxu0
    %v886 = vsel %vm104, %v881, -inf
    %887 = vmax.xlane.f32.xlu0 %v886
    %v888 = vpop.xlane.xlu0 %887
    %v889 = vsel %vm104, %v884, -inf
    %890 = vmax.xlane.f32.xlu0 %v889
    %v891 = vpop.xlane.xlu0 %890
    %v892 = vsub.f32 %v881, %v888
    %v893 = vsub.f32 %v884, %v891
    %v894 = vmul.f32 %v892, 1.442695
    %v895 = vpow.pop %v894
    %v896 = vmul.f32 %v893, 1.442695
    %v897 = vpow.pop %v896
    %v898 = vsel %vm104, %v895, 0.0
    %899 = vadd.xlane.f32.xlu0 %v898
    %v900 = vpop.xlane.xlu0 %899
    %v901 = vsel %vm104, %v897, 0.0
    %902 = vadd.xlane.f32.xlu0 %v901
    %v903 = vpop.xlane.xlu0 %902
    %904 = vrot.lane.b32.xlu0 %v834, 96
    %v905 = vpop.permute.xlu0 %904
    %906 = vrot.lane.b32.xlu0 %v837, 96
    %v907 = vpop.permute.xlu0 %906
    %908 = vrot.lane.b32.xlu0 %v840, 96
    %v909 = vpop.permute.xlu0 %908
    %910 = vrot.lane.b32.xlu0 %v843, 96
    %v911 = vpop.permute.xlu0 %910
    %v917 = vsel %vm104, %v895, 0
    %v920 = vsel %vm104, %v897, 0
    %922 = vmatpush.msra.mxu0 0.0
    %923 = vmatpush.msra.mxu0 0.0
    %924 = vmatpush.msra.mxu0 0.0
    %925 = vmatpush.msra.mxu0 0.0
    %926 = vmatpush.msra.mxu0 0.0
    %927 = vmatpush.msra.mxu0 0.0
    %928 = vmatpush.msra.mxu0 0.0
    %929 = vmatpush.msra.mxu0 0.0
    %930 = vmatpush.msra.mxu0 0.0
    %931 = vmatpush.msra.mxu0 0.0
    %932 = vmatpush.msra.mxu0 0.0
    %933 = vmatpush.msra.mxu0 0.0
    %934 = vmatpush.msra.mxu0 %v911
    %935 = vmatpush.msra.mxu0 %v909
    %936 = vmatpush.msra.mxu0 %v907
    %937 = vmatpush.msra.mxu0 %v905
    %938 = vmatmul.f32.gmra.mxu0 %v917
    %v939 = vpop.f32.mrf.mxu0
    %v940 = vadd.f32 0.0, %v939
    %941 = vmatmul.f32.gmra.mxu0 %v920
    %v942 = vpop.f32.mrf.mxu0
    %v943 = vadd.f32 0.0, %v942
    %944 = vdwg.mxu0
    %v945 = vrcp.pop %v900
    %v946 = vrcp.pop %v903
    %v947 = vmul.f32 %v940, %v945
    %v948 = vmul.f32 %v943, %v946
    %v949 = vld [vmem:[#allocation2 + $0xd0] sm:$0xff]
    %950 = vrot.lane.b32.xlu0 %v793, 120
    %v951 = vpop.permute.xlu0 %950
    %952 = vrot.lane.b32.xlu0 %v796, 120
    %v953 = vpop.permute.xlu0 %952
    %954 = vrot.lane.b32.xlu0 %v834, 120
    %v955 = vpop.permute.xlu0 %954
    %956 = vrot.lane.b32.xlu0 %v837, 120
    %v957 = vpop.permute.xlu0 %956
    %958 = vrot.lane.b32.xlu0 %v840, 120
    %v959 = vpop.permute.xlu0 %958
    %960 = vrot.lane.b32.xlu0 %v843, 120
    %v961 = vpop.permute.xlu0 %960
    %v962 = vsel %vm203, %v951, 0
    %v964 = vsel %vm203, %v953, 0
    %v966 = vsel %vm203, %v955, 0
    %v968 = vsel %vm203, %v957, 0
    %v970 = vsel %vm203, %v959, 0
    %v972 = vsel %vm203, %v961, 0
    %974 = vmatpush.xpose.msra.mxu0 0.0
    %975 = vmatpush.xpose.msra.mxu0 0.0
    %976 = vmatpush.xpose.msra.mxu0 0.0
    %977 = vmatpush.xpose.msra.mxu0 0.0
    %978 = vmatpush.xpose.msra.mxu0 0.0
    %979 = vmatpush.xpose.msra.mxu0 0.0
    %980 = vmatpush.xpose.msra.mxu0 0.0
    %981 = vmatpush.xpose.msra.mxu0 0.0
    %982 = vmatpush.xpose.msra.mxu0 0.0
    %983 = vmatpush.xpose.msra.mxu0 0.0
    %984 = vmatpush.xpose.msra.mxu0 0.0
    %985 = vmatpush.xpose.msra.mxu0 0.0
    %986 = vmatpush.xpose.msra.mxu0 %v972
    %987 = vmatpush.xpose.msra.mxu0 %v970
    %988 = vmatpush.xpose.msra.mxu0 %v968
    %989 = vmatpush.xpose.msra.mxu0 %v966
    %990 = vmatmul.f32.gmra.mxu0 %v962
    %v991 = vpop.f32.mrf.mxu0
    %v992 = vadd.f32 %v98, %v991
    %993 = vmatmul.f32.gmra.mxu0 %v964
    %v994 = vpop.f32.mrf.mxu0
    %v995 = vadd.f32 %v99, %v994
    %996 = vdwg.mxu0
    %v997 = vsel %vm104, %v992, -inf
    %998 = vmax.xlane.f32.xlu0 %v997
    %v999 = vpop.xlane.xlu0 %998
    %v1000 = vsel %vm104, %v995, -inf
    %1001 = vmax.xlane.f32.xlu0 %v1000
    %v1002 = vpop.xlane.xlu0 %1001
    %v1003 = vsub.f32 %v992, %v999
    %v1004 = vsub.f32 %v995, %v1002
    %v1005 = vmul.f32 %v1003, 1.442695
    %v1006 = vpow.pop %v1005
    %v1007 = vmul.f32 %v1004, 1.442695
    %v1008 = vpow.pop %v1007
    %v1009 = vsel %vm104, %v1006, 0.0
    %1010 = vadd.xlane.f32.xlu0 %v1009
    %v1011 = vpop.xlane.xlu0 %1010
    %v1012 = vsel %vm104, %v1008, 0.0
    %1013 = vadd.xlane.f32.xlu0 %v1012
    %v1014 = vpop.xlane.xlu0 %1013
    %1015 = vrot.lane.b32.xlu0 %v834, 88
    %v1016 = vpop.permute.xlu0 %1015
    %1017 = vrot.lane.b32.xlu0 %v837, 88
    %v1018 = vpop.permute.xlu0 %1017
    %1019 = vrot.lane.b32.xlu0 %v840, 88
    %v1020 = vpop.permute.xlu0 %1019
    %1021 = vrot.lane.b32.xlu0 %v843, 88
    %v1022 = vpop.permute.xlu0 %1021
    %v1028 = vsel %vm104, %v1006, 0
    %v1031 = vsel %vm104, %v1008, 0
    %1033 = vmatpush.msra.mxu0 0.0
    %1034 = vmatpush.msra.mxu0 0.0
    %1035 = vmatpush.msra.mxu0 0.0
    %1036 = vmatpush.msra.mxu0 0.0
    %1037 = vmatpush.msra.mxu0 0.0
    %1038 = vmatpush.msra.mxu0 0.0
    %1039 = vmatpush.msra.mxu0 0.0
    %1040 = vmatpush.msra.mxu0 0.0
    %1041 = vmatpush.msra.mxu0 0.0
    %1042 = vmatpush.msra.mxu0 0.0
    %1043 = vmatpush.msra.mxu0 0.0
    %1044 = vmatpush.msra.mxu0 0.0
    %1045 = vmatpush.msra.mxu0 %v1022
    %1046 = vmatpush.msra.mxu0 %v1020
    %1047 = vmatpush.msra.mxu0 %v1018
    %1048 = vmatpush.msra.mxu0 %v1016
    %1049 = vmatmul.f32.gmra.mxu0 %v1028
    %v1050 = vpop.f32.mrf.mxu0
    %v1051 = vadd.f32 0.0, %v1050
    %1052 = vmatmul.f32.gmra.mxu0 %v1031
    %v1053 = vpop.f32.mrf.mxu0
    %v1054 = vadd.f32 0.0, %v1053
    %1055 = vdwg.mxu0
    %v1056 = vrcp.pop %v1011
    %v1057 = vrcp.pop %v1014
    %v1058 = vmul.f32 %v1051, %v1056
    %v1059 = vmul.f32 %v1054, %v1057
    %v1060 = vld [vmem:[#allocation2 + $0xd8] sm:$0xff]
    %v1062 = vsel %vm203, %v1058, 0
    %v1065 = vsel %vm203, %v1059, 0
    %1067 = vmatpush.msra.mxu0 0.0
    %1068 = vmatpush.msra.mxu0 0.0
    %1069 = vmatpush.msra.mxu0 0.0
    %1070 = vmatpush.msra.mxu0 0.0
    %1071 = vmatpush.msra.mxu0 0.0
    %1072 = vmatpush.msra.mxu0 0.0
    %1073 = vmatpush.msra.mxu0 0.0
    %1074 = vmatpush.msra.mxu0 0.0
    %1075 = vmatpush.msra.mxu0 0.0
    %1076 = vmatpush.msra.mxu0 0.0
    %1077 = vmatpush.msra.mxu0 0.0
    %1078 = vmatpush.msra.mxu0 0.0
    %1079 = vmatpush.msra.mxu0 0.0
    %1080 = vmatpush.msra.mxu0 0.0
    %1081 = vmatpush.msra.mxu0 0.0
    %1082 = vmatpush.msra.mxu0 %v1060
    %1083 = vmatmul.f32.gmra.mxu0 %v1062
    %v1084 = vpop.f32.mrf.mxu0
    %v1085 = vadd.f32 0.0, %v1084
    %1086 = vmatmul.f32.gmra.mxu0 %v1065
    %v1087 = vpop.f32.mrf.mxu0
    %v1088 = vadd.f32 0.0, %v1087
    %1089 = vdwg.mxu0
    %v1091 = vsel %vm203, %v947, 0
    %v1094 = vsel %vm203, %v948, 0
    %1096 = vmatpush.msra.mxu0 0.0
    %1097 = vmatpush.msra.mxu0 0.0
    %1098 = vmatpush.msra.mxu0 0.0
    %1099 = vmatpush.msra.mxu0 0.0
    %1100 = vmatpush.msra.mxu0 0.0
    %1101 = vmatpush.msra.mxu0 0.0
    %1102 = vmatpush.msra.mxu0 0.0
    %1103 = vmatpush.msra.mxu0 0.0
    %1104 = vmatpush.msra.mxu0 0.0
    %1105 = vmatpush.msra.mxu0 0.0
    %1106 = vmatpush.msra.mxu0 0.0
    %1107 = vmatpush.msra.mxu0 0.0
    %1108 = vmatpush.msra.mxu0 0.0
    %1109 = vmatpush.msra.mxu0 0.0
    %1110 = vmatpush.msra.mxu0 0.0
    %1111 = vmatpush.msra.mxu0 %v949
    %1112 = vmatmul.f32.gmra.mxu0 %v1091
    %v1113 = vpop.f32.mrf.mxu0
    %v1114 = vadd.f32 %v1085, %v1113
    %1115 = vmatmul.f32.gmra.mxu0 %v1094
    %v1116 = vpop.f32.mrf.mxu0
    %v1117 = vadd.f32 %v1088, %v1116
    %1118 = vdwg.mxu0
    %1119 = vrot.lane.b32.xlu0 %v793, 112
    %v1120 = vpop.permute.xlu0 %1119
    %1121 = vrot.lane.b32.xlu0 %v796, 112
    %v1122 = vpop.permute.xlu0 %1121
    %1123 = vrot.lane.b32.xlu0 %v834, 112
    %v1124 = vpop.permute.xlu0 %1123
    %1125 = vrot.lane.b32.xlu0 %v837, 112
    %v1126 = vpop.permute.xlu0 %1125
    %1127 = vrot.lane.b32.xlu0 %v840, 112
    %v1128 = vpop.permute.xlu0 %1127
    %1129 = vrot.lane.b32.xlu0 %v843, 112
    %v1130 = vpop.permute.xlu0 %1129
    %v1131 = vsel %vm203, %v1120, 0
    %v1133 = vsel %vm203, %v1122, 0
    %v1135 = vsel %vm203, %v1124, 0
    %v1137 = vsel %vm203, %v1126, 0
    %v1139 = vsel %vm203, %v1128, 0
    %v1141 = vsel %vm203, %v1130, 0
    %1143 = vmatpush.xpose.msra.mxu0 0.0
    %1144 = vmatpush.xpose.msra.mxu0 0.0
    %1145 = vmatpush.xpose.msra.mxu0 0.0
    %1146 = vmatpush.xpose.msra.mxu0 0.0
    %1147 = vmatpush.xpose.msra.mxu0 0.0
    %1148 = vmatpush.xpose.msra.mxu0 0.0
    %1149 = vmatpush.xpose.msra.mxu0 0.0
    %1150 = vmatpush.xpose.msra.mxu0 0.0
    %1151 = vmatpush.xpose.msra.mxu0 0.0
    %1152 = vmatpush.xpose.msra.mxu0 0.0
    %1153 = vmatpush.xpose.msra.mxu0 0.0
    %1154 = vmatpush.xpose.msra.mxu0 0.0
    %1155 = vmatpush.xpose.msra.mxu0 %v1141
    %1156 = vmatpush.xpose.msra.mxu0 %v1139
    %1157 = vmatpush.xpose.msra.mxu0 %v1137
    %1158 = vmatpush.xpose.msra.mxu0 %v1135
    %1159 = vmatmul.f32.gmra.mxu0 %v1131
    %v1160 = vpop.f32.mrf.mxu0
    %v1161 = vadd.f32 %v98, %v1160
    %1162 = vmatmul.f32.gmra.mxu0 %v1133
    %v1163 = vpop.f32.mrf.mxu0
    %v1164 = vadd.f32 %v99, %v1163
    %1165 = vdwg.mxu0
    %v1166 = vsel %vm104, %v1161, -inf
    %1167 = vmax.xlane.f32.xlu0 %v1166
    %v1168 = vpop.xlane.xlu0 %1167
    %v1169 = vsel %vm104, %v1164, -inf
    %1170 = vmax.xlane.f32.xlu0 %v1169
    %v1171 = vpop.xlane.xlu0 %1170
    %v1172 = vsub.f32 %v1161, %v1168
    %v1173 = vsub.f32 %v1164, %v1171
    %v1174 = vmul.f32 %v1172, 1.442695
    %v1175 = vpow.pop %v1174
    %v1176 = vmul.f32 %v1173, 1.442695
    %v1177 = vpow.pop %v1176
    %v1178 = vsel %vm104, %v1175, 0.0
    %1179 = vadd.xlane.f32.xlu0 %v1178
    %v1180 = vpop.xlane.xlu0 %1179
    %v1181 = vsel %vm104, %v1177, 0.0
    %1182 = vadd.xlane.f32.xlu0 %v1181
    %v1183 = vpop.xlane.xlu0 %1182
    %1184 = vrot.lane.b32.xlu0 %v834, 80
    %v1185 = vpop.permute.xlu0 %1184
    %1186 = vrot.lane.b32.xlu0 %v837, 80
    %v1187 = vpop.permute.xlu0 %1186
    %1188 = vrot.lane.b32.xlu0 %v840, 80
    %v1189 = vpop.permute.xlu0 %1188
    %1190 = vrot.lane.b32.xlu0 %v843, 80
    %v1191 = vpop.permute.xlu0 %1190
    %v1197 = vsel %vm104, %v1175, 0
    %v1200 = vsel %vm104, %v1177, 0
    %1202 = vmatpush.msra.mxu0 0.0
    %1203 = vmatpush.msra.mxu0 0.0
    %1204 = vmatpush.msra.mxu0 0.0
    %1205 = vmatpush.msra.mxu0 0.0
    %1206 = vmatpush.msra.mxu0 0.0
    %1207 = vmatpush.msra.mxu0 0.0
    %1208 = vmatpush.msra.mxu0 0.0
    %1209 = vmatpush.msra.mxu0 0.0
    %1210 = vmatpush.msra.mxu0 0.0
    %1211 = vmatpush.msra.mxu0 0.0
    %1212 = vmatpush.msra.mxu0 0.0
    %1213 = vmatpush.msra.mxu0 0.0
    %1214 = vmatpush.msra.mxu0 %v1191
    %1215 = vmatpush.msra.mxu0 %v1189
    %1216 = vmatpush.msra.mxu0 %v1187
    %1217 = vmatpush.msra.mxu0 %v1185
    %1218 = vmatmul.f32.gmra.mxu0 %v1197
    %v1219 = vpop.f32.mrf.mxu0
    %v1220 = vadd.f32 0.0, %v1219
    %1221 = vmatmul.f32.gmra.mxu0 %v1200
    %v1222 = vpop.f32.mrf.mxu0
    %v1223 = vadd.f32 0.0, %v1222
    %1224 = vdwg.mxu0
    %v1225 = vrcp.pop %v1180
    %v1226 = vrcp.pop %v1183
    %v1227 = vmul.f32 %v1220, %v1225
    %v1228 = vmul.f32 %v1223, %v1226
    %v1229 = vld [vmem:[#allocation2 + $0xe0] sm:$0xff]
    %v1231 = vsel %vm203, %v1227, 0
    %v1234 = vsel %vm203, %v1228, 0
    %1236 = vmatpush.msra.mxu0 0.0
    %1237 = vmatpush.msra.mxu0 0.0
    %1238 = vmatpush.msra.mxu0 0.0
    %1239 = vmatpush.msra.mxu0 0.0
    %1240 = vmatpush.msra.mxu0 0.0
    %1241 = vmatpush.msra.mxu0 0.0
    %1242 = vmatpush.msra.mxu0 0.0
    %1243 = vmatpush.msra.mxu0 0.0
    %1244 = vmatpush.msra.mxu0 0.0
    %1245 = vmatpush.msra.mxu0 0.0
    %1246 = vmatpush.msra.mxu0 0.0
    %1247 = vmatpush.msra.mxu0 0.0
    %1248 = vmatpush.msra.mxu0 0.0
    %1249 = vmatpush.msra.mxu0 0.0
    %1250 = vmatpush.msra.mxu0 0.0
    %1251 = vmatpush.msra.mxu0 %v1229
    %1252 = vmatmul.f32.gmra.mxu0 %v1231
    %v1253 = vpop.f32.mrf.mxu0
    %v1254 = vadd.f32 0.0, %v1253
    %1255 = vmatmul.f32.gmra.mxu0 %v1234
    %v1256 = vpop.f32.mrf.mxu0
    %v1257 = vadd.f32 0.0, %v1256
    %1258 = vdwg.mxu0
    %v1259 = vadd.f32 %v1114, %v1254
    %v1260 = vadd.f32 %v1117, %v1257
    %1261 = vrot.lane.b32.xlu0 %v793, 104
    %v1262 = vpop.permute.xlu0 %1261
    %1263 = vrot.lane.b32.xlu0 %v796, 104
    %v1264 = vpop.permute.xlu0 %1263
    %1265 = vrot.lane.b32.xlu0 %v834, 104
    %v1266 = vpop.permute.xlu0 %1265
    %1267 = vrot.lane.b32.xlu0 %v837, 104
    %v1268 = vpop.permute.xlu0 %1267
    %1269 = vrot.lane.b32.xlu0 %v840, 104
    %v1270 = vpop.permute.xlu0 %1269
    %1271 = vrot.lane.b32.xlu0 %v843, 104
    %v1272 = vpop.permute.xlu0 %1271
    %v1273 = vsel %vm203, %v1262, 0
    %v1275 = vsel %vm203, %v1264, 0
    %v1277 = vsel %vm203, %v1266, 0
    %v1279 = vsel %vm203, %v1268, 0
    %v1281 = vsel %vm203, %v1270, 0
    %v1283 = vsel %vm203, %v1272, 0
    %1285 = vmatpush.xpose.msra.mxu0 0.0
    %1286 = vmatpush.xpose.msra.mxu0 0.0
    %1287 = vmatpush.xpose.msra.mxu0 0.0
    %1288 = vmatpush.xpose.msra.mxu0 0.0
    %1289 = vmatpush.xpose.msra.mxu0 0.0
    %1290 = vmatpush.xpose.msra.mxu0 0.0
    %1291 = vmatpush.xpose.msra.mxu0 0.0
    %1292 = vmatpush.xpose.msra.mxu0 0.0
    %1293 = vmatpush.xpose.msra.mxu0 0.0
    %1294 = vmatpush.xpose.msra.mxu0 0.0
    %1295 = vmatpush.xpose.msra.mxu0 0.0
    %1296 = vmatpush.xpose.msra.mxu0 0.0
    %1297 = vmatpush.xpose.msra.mxu0 %v1283
    %1298 = vmatpush.xpose.msra.mxu0 %v1281
    %1299 = vmatpush.xpose.msra.mxu0 %v1279
    %1300 = vmatpush.xpose.msra.mxu0 %v1277
    %1301 = vmatmul.f32.gmra.mxu0 %v1273
    %v1302 = vpop.f32.mrf.mxu0
    %v1303 = vadd.f32 %v98, %v1302
    %1304 = vmatmul.f32.gmra.mxu0 %v1275
    %v1305 = vpop.f32.mrf.mxu0
    %v1306 = vadd.f32 %v99, %v1305
    %1307 = vdwg.mxu0
    %v1308 = vsel %vm104, %v1303, -inf
    %1309 = vmax.xlane.f32.xlu0 %v1308
    %v1310 = vpop.xlane.xlu0 %1309
    %v1311 = vsel %vm104, %v1306, -inf
    %1312 = vmax.xlane.f32.xlu0 %v1311
    %v1313 = vpop.xlane.xlu0 %1312
    %v1314 = vsub.f32 %v1303, %v1310
    %v1315 = vsub.f32 %v1306, %v1313
    %v1316 = vmul.f32 %v1314, 1.442695
    %v1317 = vpow.pop %v1316
    %v1318 = vmul.f32 %v1315, 1.442695
    %v1319 = vpow.pop %v1318
    %v1320 = vsel %vm104, %v1317, 0.0
    %1321 = vadd.xlane.f32.xlu0 %v1320
    %v1322 = vpop.xlane.xlu0 %1321
    %v1323 = vsel %vm104, %v1319, 0.0
    %1324 = vadd.xlane.f32.xlu0 %v1323
    %v1325 = vpop.xlane.xlu0 %1324
    %1326 = vrot.lane.b32.xlu0 %v834, 72
    %v1327 = vpop.permute.xlu0 %1326
    %1328 = vrot.lane.b32.xlu0 %v837, 72
    %v1329 = vpop.permute.xlu0 %1328
    %1330 = vrot.lane.b32.xlu0 %v840, 72
    %v1331 = vpop.permute.xlu0 %1330
    %1332 = vrot.lane.b32.xlu0 %v843, 72
    %v1333 = vpop.permute.xlu0 %1332
    %v1339 = vsel %vm104, %v1317, 0
    %v1342 = vsel %vm104, %v1319, 0
    %1344 = vmatpush.msra.mxu0 0.0
    %1345 = vmatpush.msra.mxu0 0.0
    %1346 = vmatpush.msra.mxu0 0.0
    %1347 = vmatpush.msra.mxu0 0.0
    %1348 = vmatpush.msra.mxu0 0.0
    %1349 = vmatpush.msra.mxu0 0.0
    %1350 = vmatpush.msra.mxu0 0.0
    %1351 = vmatpush.msra.mxu0 0.0
    %1352 = vmatpush.msra.mxu0 0.0
    %1353 = vmatpush.msra.mxu0 0.0
    %1354 = vmatpush.msra.mxu0 0.0
    %1355 = vmatpush.msra.mxu0 0.0
    %1356 = vmatpush.msra.mxu0 %v1333
    %1357 = vmatpush.msra.mxu0 %v1331
    %1358 = vmatpush.msra.mxu0 %v1329
    %1359 = vmatpush.msra.mxu0 %v1327
    %1360 = vmatmul.f32.gmra.mxu0 %v1339
    %v1361 = vpop.f32.mrf.mxu0
    %v1362 = vadd.f32 0.0, %v1361
    %1363 = vmatmul.f32.gmra.mxu0 %v1342
    %v1364 = vpop.f32.mrf.mxu0
    %v1365 = vadd.f32 0.0, %v1364
    %1366 = vdwg.mxu0
    %v1367 = vrcp.pop %v1322
    %v1368 = vrcp.pop %v1325
    %v1369 = vmul.f32 %v1362, %v1367
    %v1370 = vmul.f32 %v1365, %v1368
    %v1371 = vld [vmem:[#allocation2 + $0xe8] sm:$0xff]
    %v1373 = vsel %vm203, %v1369, 0
    %v1376 = vsel %vm203, %v1370, 0
    %1378 = vmatpush.msra.mxu0 0.0
    %1379 = vmatpush.msra.mxu0 0.0
    %1380 = vmatpush.msra.mxu0 0.0
    %1381 = vmatpush.msra.mxu0 0.0
    %1382 = vmatpush.msra.mxu0 0.0
    %1383 = vmatpush.msra.mxu0 0.0
    %1384 = vmatpush.msra.mxu0 0.0
    %1385 = vmatpush.msra.mxu0 0.0
    %1386 = vmatpush.msra.mxu0 0.0
    %1387 = vmatpush.msra.mxu0 0.0
    %1388 = vmatpush.msra.mxu0 0.0
    %1389 = vmatpush.msra.mxu0 0.0
    %1390 = vmatpush.msra.mxu0 0.0
    %1391 = vmatpush.msra.mxu0 0.0
    %1392 = vmatpush.msra.mxu0 0.0
    %1393 = vmatpush.msra.mxu0 %v1371
    %1394 = vmatmul.f32.gmra.mxu0 %v1373
    %v1395 = vpop.f32.mrf.mxu0
    %v1396 = vadd.f32 0.0, %v1395
    %1397 = vmatmul.f32.gmra.mxu0 %v1376
    %v1398 = vpop.f32.mrf.mxu0
    %v1399 = vadd.f32 0.0, %v1398
    %1400 = vdwg.mxu0
    %v1401 = vadd.f32 %v1259, %v1396
    %v1402 = vadd.f32 %v1260, %v1399
    %v1403 = vadd.f32 %v709, %v1401
    %v1404 = vadd.f32 %v710, %v1402
    %v1405 = vld [vmem:[%s5 + $0xc] sm:$0x1]
    %v1406 = vperm.slane %v1405, 0
    %v1407 = vadd.f32 %v1403, %v1406
    %v1408 = vadd.f32 %v1404, %v1406
    %v1409 = vld [vmem:[%s5 + $0xd] sm:$0x1]
    %v1410 = vld [vmem:[%s5 + $0xe] sm:$0x1]
    %v1411 = vsel %vm104, %v1407, 0.0
    %1412 = vadd.xlane.f32.xlu0 %v1411
    %v1413 = vpop.xlane.xlu0 %1412
    %v1414 = vsel %vm104, %v1408, 0.0
    %1415 = vadd.xlane.f32.xlu0 %v1414
    %v1416 = vpop.xlane.xlu0 %1415
    %v1417 = vmul.f32 %v1413, %v117
    %v1418 = vmul.f32 %v1416, %v117
    %v1419 = vsub.f32 %v1407, %v1417
    %v1420 = vsub.f32 %v1408, %v1418
    %v1421 = vmul.f32 %v1419, %v1419
    %v1422 = vmul.f32 %v1420, %v1420
    %v1423 = vsel %vm104, %v1421, 0.0
    %1424 = vadd.xlane.f32.xlu0 %v1423
    %v1425 = vpop.xlane.xlu0 %1424
    %v1426 = vsel %vm104, %v1422, 0.0
    %1427 = vadd.xlane.f32.xlu0 %v1426
    %v1428 = vpop.xlane.xlu0 %1427
    %v1429 = vmul.f32 %v1425, %v117
    %v1430 = vmul.f32 %v1428, %v117
    %v1431 = vadd.f32 %v1429, 1e-06
    %v1432 = vadd.f32 %v1430, 1e-06
    %v1433 = vrsqrt.pop %v1431
    %v1434 = vmul.f32 %v1433, %v1431
    %v1435 = vmul.f32 %v1434, %v1433
    %v1436 = vmul.f32 0.5, %v1435
    %v1437 = vsub.f32 1.5, %v1436
    %v1438 = vmul.f32 %v1433, %v1437
    %vm1439 = vweird.f32 %v1431
    %vm1440 = vweird.f32 %v1433
    %vm1441 = vmor %vm1439, %vm1440
    %v1442 = vsel %vm1441, %v1433, %v1438
    %v1443 = vrsqrt.pop %v1432
    %v1444 = vmul.f32 %v1443, %v1432
    %v1445 = vmul.f32 %v1444, %v1443
    %v1446 = vmul.f32 0.5, %v1445
    %v1447 = vsub.f32 1.5, %v1446
    %v1448 = vmul.f32 %v1443, %v1447
    %vm1449 = vweird.f32 %v1432
    %vm1450 = vweird.f32 %v1443
    %vm1451 = vmor %vm1449, %vm1450
    %v1452 = vsel %vm1451, %v1443, %v1448
    %v1453 = vmul.f32 %v1419, %v1442
    %v1454 = vmul.f32 %v1420, %v1452
    %v1455 = vperm.slane %v1409, 0
    %v1456 = vmul.f32 %v1453, %v1455
    %v1457 = vmul.f32 %v1454, %v1455
    %v1458 = vperm.slane %v1410, 0
    %v1459 = vadd.f32 %v1456, %v1458
    %v1460 = vadd.f32 %v1457, %v1458
    %v1461 = vld [vmem:[#allocation2 + $0xf0] sm:$0xff]
    %v1462 = vld [vmem:[#allocation2 + $0xf8] sm:$0xff]
    %v1463 = vld [vmem:[#allocation2 + $0x100] sm:$0xff]
    %v1464 = vld [vmem:[#allocation2 + $0x108] sm:$0xff]
    %v1465 = vld [vmem:[%s5 + $0xf] sm:$0x1]
    %v1466 = vperm.slane %v1465, 0
    %v1468 = vsel %vm104, %v1459, 0
    %v1471 = vsel %vm104, %v1460, 0
    %1473 = vmatpush.msra.mxu0 0.0
    %1474 = vmatpush.msra.mxu0 0.0
    %1475 = vmatpush.msra.mxu0 0.0
    %1476 = vmatpush.msra.mxu0 0.0
    %1477 = vmatpush.msra.mxu0 0.0
    %1478 = vmatpush.msra.mxu0 0.0
    %1479 = vmatpush.msra.mxu0 0.0
    %1480 = vmatpush.msra.mxu0 0.0
    %1481 = vmatpush.msra.mxu0 0.0
    %1482 = vmatpush.msra.mxu0 0.0
    %1483 = vmatpush.msra.mxu0 0.0
    %1484 = vmatpush.msra.mxu0 0.0
    %1485 = vmatpush.msra.mxu0 %v1464
    %1486 = vmatpush.msra.mxu0 %v1463
    %1487 = vmatpush.msra.mxu0 %v1462
    %1488 = vmatpush.msra.mxu0 %v1461
    %1489 = vmatmul.f32.gmra.mxu0 %v1468
    %v1490 = vpop.f32.mrf.mxu0
    %v1491 = vadd.f32 %v1466, %v1490
    %1492 = vmatmul.f32.gmra.mxu0 %v1471
    %v1493 = vpop.f32.mrf.mxu0
    %v1494 = vadd.f32 %v1466, %v1493
    %1495 = vdwg.mxu0
    %v1496 = vmul.f32 %v1491, 0.5
    %v1497 = vmul.f32 %v1494, 0.5
    %v1498 = vmul.f32 %v1491, 0.70710677
    %v1499 = vmul.f32 %v1494, 0.70710677
    %v1500 = vmul.f32 %v1498, %v1498
    %v1501 = vmin.f32 16.0, %v1500
    %v1502 = vmul.f32 %v1501, 2.1237322e-06
    %v1503 = vadd.f32 %v1502, 0.00028619796
    %v1504 = vmul.f32 %v1501, %v1503
    %v1505 = vadd.f32 %v1504, 0.0036580483
    %v1506 = vmul.f32 %v1501, %v1505
    %v1507 = vadd.f32 %v1506, 0.05243302
    %v1508 = vmul.f32 %v1501, %v1507
    %v1509 = vadd.f32 %v1508, 0.18741608
    %v1510 = vmul.f32 %v1501, %v1509
    %v1511 = vadd.f32 %v1510, 1.1283791
    %v1512 = vmul.f32 %v1498, %v1511
    %v1513 = vmul.f32 %v1501, 3.8918573e-05
    %v1514 = vadd.f32 %v1513, 0.001143296
    %v1515 = vmul.f32 %v1501, %v1514
    %v1516 = vadd.f32 %v1515, 0.014752088
    %v1517 = vmul.f32 %v1501, %v1516
    %v1518 = vadd.f32 %v1517, 0.112945676
    %v1519 = vmul.f32 %v1501, %v1518
    %v1520 = vadd.f32 %v1519, 0.4994258
    %v1521 = vmul.f32 %v1501, %v1520
    %v1522 = vadd.f32 %v1521, 1.0
    %v1523 = vrcp.pop %v1522
    %v1524 = vmul.f32 %v1522, %v1523
    %v1525 = vsub.f32 1.0, %v1524
    %v1526 = vmul.f32 %v1523, %v1525
    %v1527 = vadd.f32 %v1523, %v1526
    %vm1528 = vweird.f32 %v1522
    %vm1529 = vweird.f32 %v1523
    %vm1530 = vmor %vm1528, %vm1529
    %v1531 = vsel %vm1530, %v1523, %v1527
    %v1532 = vand.u32 2147483647, %v1522
    %vm1533 = vcmp.eq.f32.partialorder %v1532, 8.507059e+37
    %v1534 = vand.u32 %v1522, 2147483648
    %v1535 = vor.u32 1.1754944e-38, %v1534
    %v1536 = vsel %vm1533, %v1535, %v1531
    %v1537 = vmul.f32 %v1512, %v1536
    %v1538 = vmin.f32 %v1537, 1.0
    %v1539 = vmax.f32 %v1538, -1.0
    %v1540 = vmul.f32 %v1499, %v1499
    %v1541 = vmin.f32 16.0, %v1540
    %v1542 = vmul.f32 %v1541, 2.1237322e-06
    %v1543 = vadd.f32 %v1542, 0.00028619796
    %v1544 = vmul.f32 %v1541, %v1543
    %v1545 = vadd.f32 %v1544, 0.0036580483
    %v1546 = vmul.f32 %v1541, %v1545
    %v1547 = vadd.f32 %v1546, 0.05243302
    %v1548 = vmul.f32 %v1541, %v1547
    %v1549 = vadd.f32 %v1548, 0.18741608
    %v1550 = vmul.f32 %v1541, %v1549
    %v1551 = vadd.f32 %v1550, 1.1283791
    %v1552 = vmul.f32 %v1499, %v1551
    %v1553 = vmul.f32 %v1541, 3.8918573e-05
    %v1554 = vadd.f32 %v1553, 0.001143296
    %v1555 = vmul.f32 %v1541, %v1554
    %v1556 = vadd.f32 %v1555, 0.014752088
    %v1557 = vmul.f32 %v1541, %v1556
    %v1558 = vadd.f32 %v1557, 0.112945676
    %v1559 = vmul.f32 %v1541, %v1558
    %v1560 = vadd.f32 %v1559, 0.4994258
    %v1561 = vmul.f32 %v1541, %v1560
    %v1562 = vadd.f32 %v1561, 1.0
    %v1563 = vrcp.pop %v1562
    %v1564 = vmul.f32 %v1562, %v1563
    %v1565 = vsub.f32 1.0, %v1564
    %v1566 = vmul.f32 %v1563, %v1565
    %v1567 = vadd.f32 %v1563, %v1566
    %vm1568 = vweird.f32 %v1562
    %vm1569 = vweird.f32 %v1563
    %vm1570 = vmor %vm1568, %vm1569
    %v1571 = vsel %vm1570, %v1563, %v1567
    %v1572 = vand.u32 2147483647, %v1562
    %vm1573 = vcmp.eq.f32.partialorder %v1572, 8.507059e+37
    %v1574 = vand.u32 %v1562, 2147483648
    %v1575 = vor.u32 1.1754944e-38, %v1574
    %v1576 = vsel %vm1573, %v1575, %v1571
    %v1577 = vmul.f32 %v1552, %v1576
    %v1578 = vmin.f32 %v1577, 1.0
    %v1579 = vmax.f32 %v1578, -1.0
    %v1580 = vadd.f32 %v1539, 1.0
    %v1581 = vadd.f32 %v1579, 1.0
    %v1582 = vmul.f32 %v1496, %v1580
    %v1583 = vmul.f32 %v1497, %v1581
    %v1584 = vld [vmem:[#allocation2 + $0x110] sm:$0xff]
    %v1585 = vld [vmem:[#allocation2 + $0x118] sm:$0xff]
    %v1586 = vld [vmem:[#allocation2 + $0x120] sm:$0xff]
    %v1587 = vld [vmem:[#allocation2 + $0x128] sm:$0xff]
    %v1588 = vld [vmem:[#allocation2 + $0x130] sm:$0xff]
    %v1589 = vld [vmem:[#allocation2 + $0x138] sm:$0xff]
    %v1590 = vld [vmem:[#allocation2 + $0x140] sm:$0xff]
    %v1591 = vld [vmem:[#allocation2 + $0x148] sm:$0xff]
    %v1592 = vld [vmem:[#allocation2 + $0x150] sm:$0xff]
    %v1593 = vld [vmem:[#allocation2 + $0x158] sm:$0xff]
    %v1594 = vld [vmem:[#allocation2 + $0x160] sm:$0xff]
    %v1595 = vld [vmem:[#allocation2 + $0x168] sm:$0xff]
    %v1596 = vld [vmem:[#allocation2 + $0x170] sm:$0xff]
    %v1597 = vld [vmem:[#allocation2 + $0x178] sm:$0xff]
    %v1598 = vld [vmem:[#allocation2 + $0x180] sm:$0xff]
    %v1599 = vld [vmem:[#allocation2 + $0x188] sm:$0xff]
    %1600 = vmatpush.msra.mxu0 %v1599
    %1601 = vmatpush.msra.mxu0 %v1598
    %1602 = vmatpush.msra.mxu0 %v1597
    %1603 = vmatpush.msra.mxu0 %v1596
    %1604 = vmatpush.msra.mxu0 %v1595
    %1605 = vmatpush.msra.mxu0 %v1594
    %1606 = vmatpush.msra.mxu0 %v1593
    %1607 = vmatpush.msra.mxu0 %v1592
    %1608 = vmatpush.msra.mxu0 %v1591
    %1609 = vmatpush.msra.mxu0 %v1590
    %1610 = vmatpush.msra.mxu0 %v1589
    %1611 = vmatpush.msra.mxu0 %v1588
    %1612 = vmatpush.msra.mxu0 %v1587
    %1613 = vmatpush.msra.mxu0 %v1586
    %1614 = vmatpush.msra.mxu0 %v1585
    %1615 = vmatpush.msra.mxu0 %v1584
    %1616 = vmatmul.f32.gmra.mxu0 %v1582
    %v1617 = vpop.f32.mrf.mxu0
    %v1618 = vadd.f32 0.0, %v1617
    %1619 = vmatmul.f32.gmra.mxu0 %v1583
    %v1620 = vpop.f32.mrf.mxu0
    %v1621 = vadd.f32 0.0, %v1620
    %1622 = vdwg.mxu0
    %v1623 = vadd.f32 %v1407, %v1618
    %v1624 = vadd.f32 %v1408, %v1621
    %v1625 = vld [vmem:[%s5 + $0x10] sm:$0x1]
    %v1626 = vperm.slane %v1625, 0
    %v1627 = vadd.f32 %v1623, %v1626
    %v1628 = vadd.f32 %v1624, %v1626
    %v1629 = vld [vmem:[%s5 + $0x11] sm:$0x1]
    %v1630 = vld [vmem:[%s5 + $0x12] sm:$0x1]
    %v1631 = vsel %vm104, %v1627, 0.0
    %1632 = vadd.xlane.f32.xlu0 %v1631
    %v1633 = vpop.xlane.xlu0 %1632
    %v1634 = vsel %vm104, %v1628, 0.0
    %1635 = vadd.xlane.f32.xlu0 %v1634
    %v1636 = vpop.xlane.xlu0 %1635
    %v1637 = vmul.f32 %v1633, %v117
    %v1638 = vmul.f32 %v1636, %v117
    %v1639 = vsub.f32 %v1627, %v1637
    %v1640 = vsub.f32 %v1628, %v1638
    %v1641 = vmul.f32 %v1639, %v1639
    %v1642 = vmul.f32 %v1640, %v1640
    %v1643 = vsel %vm104, %v1641, 0.0
    %1644 = vadd.xlane.f32.xlu0 %v1643
    %v1645 = vpop.xlane.xlu0 %1644
    %v1646 = vsel %vm104, %v1642, 0.0
    %1647 = vadd.xlane.f32.xlu0 %v1646
    %v1648 = vpop.xlane.xlu0 %1647
    %v1649 = vmul.f32 %v1645, %v117
    %v1650 = vmul.f32 %v1648, %v117
    %v1651 = vadd.f32 %v1649, 1e-06
    %v1652 = vadd.f32 %v1650, 1e-06
    %v1653 = vrsqrt.pop %v1651
    %v1654 = vmul.f32 %v1653, %v1651
    %v1655 = vmul.f32 %v1654, %v1653
    %v1656 = vmul.f32 0.5, %v1655
    %v1657 = vsub.f32 1.5, %v1656
    %v1658 = vmul.f32 %v1653, %v1657
    %vm1659 = vweird.f32 %v1651
    %vm1660 = vweird.f32 %v1653
    %vm1661 = vmor %vm1659, %vm1660
    %v1662 = vsel %vm1661, %v1653, %v1658
    %v1663 = vrsqrt.pop %v1652
    %v1664 = vmul.f32 %v1663, %v1652
    %v1665 = vmul.f32 %v1664, %v1663
    %v1666 = vmul.f32 0.5, %v1665
    %v1667 = vsub.f32 1.5, %v1666
    %v1668 = vmul.f32 %v1663, %v1667
    %vm1669 = vweird.f32 %v1652
    %vm1670 = vweird.f32 %v1663
    %vm1671 = vmor %vm1669, %vm1670
    %v1672 = vsel %vm1671, %v1663, %v1668
    %v1673 = vmul.f32 %v1639, %v1662
    %v1674 = vmul.f32 %v1640, %v1672
    %v1675 = vperm.slane %v1629, 0
    %v1676 = vmul.f32 %v1673, %v1675
    %v1677 = vmul.f32 %v1674, %v1675
    %v1678 = vperm.slane %v1630, 0
    %v1679 = vadd.f32 %v1676, %v1678
    %v1680 = vadd.f32 %v1677, %v1678
    %v1681 = vld [vmem:[#allocation2 + $0x190] sm:$0xff]
    %v1682 = vld [vmem:[#allocation2 + $0x198] sm:$0xff]
    %v1683 = vld [vmem:[#allocation2 + $0x1a0] sm:$0xff]
    %v1684 = vld [vmem:[#allocation2 + $0x1a8] sm:$0xff]
    %v1685 = vld [vmem:[%s5 + $0x13] sm:$0x1]
    %v1686 = vperm.slane %v1685, 0
    %v1688 = vsel %vm104, %v1679, 0
    %v1691 = vsel %vm104, %v1680, 0
    %1693 = vmatpush.msra.mxu0 0.0
    %1694 = vmatpush.msra.mxu0 0.0
    %1695 = vmatpush.msra.mxu0 0.0
    %1696 = vmatpush.msra.mxu0 0.0
    %1697 = vmatpush.msra.mxu0 0.0
    %1698 = vmatpush.msra.mxu0 0.0
    %1699 = vmatpush.msra.mxu0 0.0
    %1700 = vmatpush.msra.mxu0 0.0
    %1701 = vmatpush.msra.mxu0 0.0
    %1702 = vmatpush.msra.mxu0 0.0
    %1703 = vmatpush.msra.mxu0 0.0
    %1704 = vmatpush.msra.mxu0 0.0
    %1705 = vmatpush.msra.mxu0 %v1684
    %1706 = vmatpush.msra.mxu0 %v1683
    %1707 = vmatpush.msra.mxu0 %v1682
    %1708 = vmatpush.msra.mxu0 %v1681
    %1709 = vmatmul.f32.gmra.mxu0 %v1688
    %v1710 = vpop.f32.mrf.mxu0
    %v1711 = vadd.f32 %v1686, %v1710
    %1712 = vmatmul.f32.gmra.mxu0 %v1691
    %v1713 = vpop.f32.mrf.mxu0
    %v1714 = vadd.f32 %v1686, %v1713
    %1715 = vdwg.mxu0
    %1718 = vrot.lane.b32.xlu0 %v1711, 96
    %v1719 = vpop.permute.xlu0 %1718
    %1720 = vrot.lane.b32.xlu0 %v1714, 96
    %v1721 = vpop.permute.xlu0 %1720
    %v1722 = vsel %vm203, %v1711, 0
    %v1724 = vsel %vm203, %v1714, 0
    %v1726 = vsel %vm203, %v1719, 0
    %v1728 = vsel %vm203, %v1721, 0
    %1730 = vmatpush.xpose.msra.mxu0 0.0
    %1731 = vmatpush.xpose.msra.mxu0 0.0
    %1732 = vmatpush.xpose.msra.mxu0 0.0
    %1733 = vmatpush.xpose.msra.mxu0 0.0
    %1734 = vmatpush.xpose.msra.mxu0 0.0
    %1735 = vmatpush.xpose.msra.mxu0 0.0
    %1736 = vmatpush.xpose.msra.mxu0 0.0
    %1737 = vmatpush.xpose.msra.mxu0 0.0
    %1738 = vmatpush.xpose.msra.mxu0 0.0
    %1739 = vmatpush.xpose.msra.mxu0 0.0
    %1740 = vmatpush.xpose.msra.mxu0 0.0
    %1741 = vmatpush.xpose.msra.mxu0 0.0
    %1742 = vmatpush.xpose.msra.mxu0 0.0
    %1743 = vmatpush.xpose.msra.mxu0 0.0
    %1744 = vmatpush.xpose.msra.mxu0 %v1728
    %1745 = vmatpush.xpose.msra.mxu0 %v1726
    %1746 = vmatmul.f32.gmra.mxu0 %v1722
    %v1747 = vpop.f32.mrf.mxu0
    %v1748 = vadd.f32 %v96, %v1747
    %1749 = vmatmul.f32.gmra.mxu0 %v1724
    %v1750 = vpop.f32.mrf.mxu0
    %v1751 = vadd.f32 %v97, %v1750
    %1752 = vdwg.mxu0
    %v1753 = vsel %vm235, %v1748, -inf
    %1754 = vmax.xlane.f32.xlu0 %v1753
    %v1755 = vpop.xlane.xlu0 %1754
    %v1756 = vsel %vm235, %v1751, -inf
    %1757 = vmax.xlane.f32.xlu0 %v1756
    %v1758 = vpop.xlane.xlu0 %1757
    %v1759 = vsub.f32 %v1748, %v1755
    %v1760 = vsub.f32 %v1751, %v1758
    %v1761 = vmul.f32 %v1759, 1.442695
    %v1762 = vpow.pop %v1761
    %v1763 = vmul.f32 %v1760, 1.442695
    %v1764 = vpow.pop %v1763
    %v1765 = vsel %vm235, %v1762, 0.0
    %1766 = vadd.xlane.f32.xlu0 %v1765
    %v1767 = vpop.xlane.xlu0 %1766
    %v1768 = vsel %vm235, %v1764, 0.0
    %1769 = vadd.xlane.f32.xlu0 %v1768
    %v1770 = vpop.xlane.xlu0 %1769
    %1771 = vrot.lane.b32.xlu0 %v1711, 64
    %v1772 = vpop.permute.xlu0 %1771
    %1773 = vrot.lane.b32.xlu0 %v1714, 64
    %v1774 = vpop.permute.xlu0 %1773
    %v1778 = vsel %vm235, %v1762, 0
    %v1781 = vsel %vm235, %v1764, 0
    %1783 = vmatpush.msra.mxu0 0.0
    %1784 = vmatpush.msra.mxu0 0.0
    %1785 = vmatpush.msra.mxu0 0.0
    %1786 = vmatpush.msra.mxu0 0.0
    %1787 = vmatpush.msra.mxu0 0.0
    %1788 = vmatpush.msra.mxu0 0.0
    %1789 = vmatpush.msra.mxu0 0.0
    %1790 = vmatpush.msra.mxu0 0.0
    %1791 = vmatpush.msra.mxu0 0.0
    %1792 = vmatpush.msra.mxu0 0.0
    %1793 = vmatpush.msra.mxu0 0.0
    %1794 = vmatpush.msra.mxu0 0.0
    %1795 = vmatpush.msra.mxu0 0.0
    %1796 = vmatpush.msra.mxu0 0.0
    %1797 = vmatpush.msra.mxu0 %v1774
    %1798 = vmatpush.msra.mxu0 %v1772
    %1799 = vmatmul.f32.gmra.mxu0 %v1778
    %v1800 = vpop.f32.mrf.mxu0
    %v1801 = vadd.f32 0.0, %v1800
    %1802 = vmatmul.f32.gmra.mxu0 %v1781
    %v1803 = vpop.f32.mrf.mxu0
    %v1804 = vadd.f32 0.0, %v1803
    %1805 = vdwg.mxu0
    %v1806 = vrcp.pop %v1767
    %v1807 = vrcp.pop %v1770
    %v1808 = vmul.f32 %v1801, %v1806
    %v1809 = vmul.f32 %v1804, %v1807
    %v1810 = vld [vmem:[#allocation2 + $0x1b0] sm:$0xff]
    %1811 = vrot.lane.b32.xlu0 %v1711, 120
    %v1812 = vpop.permute.xlu0 %1811
    %1813 = vrot.lane.b32.xlu0 %v1714, 120
    %v1814 = vpop.permute.xlu0 %1813
    %1815 = vrot.lane.b32.xlu0 %v1711, 88
    %v1816 = vpop.permute.xlu0 %1815
    %1817 = vrot.lane.b32.xlu0 %v1714, 88
    %v1818 = vpop.permute.xlu0 %1817
    %v1819 = vsel %vm203, %v1812, 0
    %v1821 = vsel %vm203, %v1814, 0
    %v1823 = vsel %vm203, %v1816, 0
    %v1825 = vsel %vm203, %v1818, 0
    %1827 = vmatpush.xpose.msra.mxu0 0.0
    %1828 = vmatpush.xpose.msra.mxu0 0.0
    %1829 = vmatpush.xpose.msra.mxu0 0.0
    %1830 = vmatpush.xpose.msra.mxu0 0.0
    %1831 = vmatpush.xpose.msra.mxu0 0.0
    %1832 = vmatpush.xpose.msra.mxu0 0.0
    %1833 = vmatpush.xpose.msra.mxu0 0.0
    %1834 = vmatpush.xpose.msra.mxu0 0.0
    %1835 = vmatpush.xpose.msra.mxu0 0.0
    %1836 = vmatpush.xpose.msra.mxu0 0.0
    %1837 = vmatpush.xpose.msra.mxu0 0.0
    %1838 = vmatpush.xpose.msra.mxu0 0.0
    %1839 = vmatpush.xpose.msra.mxu0 0.0
    %1840 = vmatpush.xpose.msra.mxu0 0.0
    %1841 = vmatpush.xpose.msra.mxu0 %v1825
    %1842 = vmatpush.xpose.msra.mxu0 %v1823
    %1843 = vmatmul.f32.gmra.mxu0 %v1819
    %v1844 = vpop.f32.mrf.mxu0
    %v1845 = vadd.f32 %v96, %v1844
    %1846 = vmatmul.f32.gmra.mxu0 %v1821
    %v1847 = vpop.f32.mrf.mxu0
    %v1848 = vadd.f32 %v97, %v1847
    %1849 = vdwg.mxu0
    %v1850 = vsel %vm235, %v1845, -inf
    %1851 = vmax.xlane.f32.xlu0 %v1850
    %v1852 = vpop.xlane.xlu0 %1851
    %v1853 = vsel %vm235, %v1848, -inf
    %1854 = vmax.xlane.f32.xlu0 %v1853
    %v1855 = vpop.xlane.xlu0 %1854
    %v1856 = vsub.f32 %v1845, %v1852
    %v1857 = vsub.f32 %v1848, %v1855
    %v1858 = vmul.f32 %v1856, 1.442695
    %v1859 = vpow.pop %v1858
    %v1860 = vmul.f32 %v1857, 1.442695
    %v1861 = vpow.pop %v1860
    %v1862 = vsel %vm235, %v1859, 0.0
    %1863 = vadd.xlane.f32.xlu0 %v1862
    %v1864 = vpop.xlane.xlu0 %1863
    %v1865 = vsel %vm235, %v1861, 0.0
    %1866 = vadd.xlane.f32.xlu0 %v1865
    %v1867 = vpop.xlane.xlu0 %1866
    %1868 = vrot.lane.b32.xlu0 %v1711, 56
    %v1869 = vpop.permute.xlu0 %1868
    %1870 = vrot.lane.b32.xlu0 %v1714, 56
    %v1871 = vpop.permute.xlu0 %1870
    %v1875 = vsel %vm235, %v1859, 0
    %v1878 = vsel %vm235, %v1861, 0
    %1880 = vmatpush.msra.mxu0 0.0
    %1881 = vmatpush.msra.mxu0 0.0
    %1882 = vmatpush.msra.mxu0 0.0
    %1883 = vmatpush.msra.mxu0 0.0
    %1884 = vmatpush.msra.mxu0 0.0
    %1885 = vmatpush.msra.mxu0 0.0
    %1886 = vmatpush.msra.mxu0 0.0
    %1887 = vmatpush.msra.mxu0 0.0
    %1888 = vmatpush.msra.mxu0 0.0
    %1889 = vmatpush.msra.mxu0 0.0
    %1890 = vmatpush.msra.mxu0 0.0
    %1891 = vmatpush.msra.mxu0 0.0
    %1892 = vmatpush.msra.mxu0 0.0
    %1893 = vmatpush.msra.mxu0 0.0
    %1894 = vmatpush.msra.mxu0 %v1871
    %1895 = vmatpush.msra.mxu0 %v1869
    %1896 = vmatmul.f32.gmra.mxu0 %v1875
    %v1897 = vpop.f32.mrf.mxu0
    %v1898 = vadd.f32 0.0, %v1897
    %1899 = vmatmul.f32.gmra.mxu0 %v1878
    %v1900 = vpop.f32.mrf.mxu0
    %v1901 = vadd.f32 0.0, %v1900
    %1902 = vdwg.mxu0
    %v1903 = vrcp.pop %v1864
    %v1904 = vrcp.pop %v1867
    %v1905 = vmul.f32 %v1898, %v1903
    %v1906 = vmul.f32 %v1901, %v1904
    %v1907 = vld [vmem:[#allocation2 + $0x1b8] sm:$0xff]
    %v1909 = vsel %vm203, %v1905, 0
    %v1912 = vsel %vm203, %v1906, 0
    %1914 = vmatpush.msra.mxu0 0.0
    %1915 = vmatpush.msra.mxu0 0.0
    %1916 = vmatpush.msra.mxu0 0.0
    %1917 = vmatpush.msra.mxu0 0.0
    %1918 = vmatpush.msra.mxu0 0.0
    %1919 = vmatpush.msra.mxu0 0.0
    %1920 = vmatpush.msra.mxu0 0.0
    %1921 = vmatpush.msra.mxu0 0.0
    %1922 = vmatpush.msra.mxu0 0.0
    %1923 = vmatpush.msra.mxu0 0.0
    %1924 = vmatpush.msra.mxu0 0.0
    %1925 = vmatpush.msra.mxu0 0.0
    %1926 = vmatpush.msra.mxu0 0.0
    %1927 = vmatpush.msra.mxu0 0.0
    %1928 = vmatpush.msra.mxu0 0.0
    %1929 = vmatpush.msra.mxu0 %v1907
    %1930 = vmatmul.f32.gmra.mxu0 %v1909
    %v1931 = vpop.f32.mrf.mxu0
    %v1932 = vadd.f32 0.0, %v1931
    %1933 = vmatmul.f32.gmra.mxu0 %v1912
    %v1934 = vpop.f32.mrf.mxu0
    %v1935 = vadd.f32 0.0, %v1934
    %1936 = vdwg.mxu0
    %v1938 = vsel %vm203, %v1808, 0
    %v1941 = vsel %vm203, %v1809, 0
    %1943 = vmatpush.msra.mxu0 0.0
    %1944 = vmatpush.msra.mxu0 0.0
    %1945 = vmatpush.msra.mxu0 0.0
    %1946 = vmatpush.msra.mxu0 0.0
    %1947 = vmatpush.msra.mxu0 0.0
    %1948 = vmatpush.msra.mxu0 0.0
    %1949 = vmatpush.msra.mxu0 0.0
    %1950 = vmatpush.msra.mxu0 0.0
    %1951 = vmatpush.msra.mxu0 0.0
    %1952 = vmatpush.msra.mxu0 0.0
    %1953 = vmatpush.msra.mxu0 0.0
    %1954 = vmatpush.msra.mxu0 0.0
    %1955 = vmatpush.msra.mxu0 0.0
    %1956 = vmatpush.msra.mxu0 0.0
    %1957 = vmatpush.msra.mxu0 0.0
    %1958 = vmatpush.msra.mxu0 %v1810
    %1959 = vmatmul.f32.gmra.mxu0 %v1938
    %v1960 = vpop.f32.mrf.mxu0
    %v1961 = vadd.f32 %v1932, %v1960
    %1962 = vmatmul.f32.gmra.mxu0 %v1941
    %v1963 = vpop.f32.mrf.mxu0
    %v1964 = vadd.f32 %v1935, %v1963
    %1965 = vdwg.mxu0
    %1966 = vrot.lane.b32.xlu0 %v1711, 112
    %v1967 = vpop.permute.xlu0 %1966
    %1968 = vrot.lane.b32.xlu0 %v1714, 112
    %v1969 = vpop.permute.xlu0 %1968
    %1970 = vrot.lane.b32.xlu0 %v1711, 80
    %v1971 = vpop.permute.xlu0 %1970
    %1972 = vrot.lane.b32.xlu0 %v1714, 80
    %v1973 = vpop.permute.xlu0 %1972
    %v1974 = vsel %vm203, %v1967, 0
    %v1976 = vsel %vm203, %v1969, 0
    %v1978 = vsel %vm203, %v1971, 0
    %v1980 = vsel %vm203, %v1973, 0
    %1982 = vmatpush.xpose.msra.mxu0 0.0
    %1983 = vmatpush.xpose.msra.mxu0 0.0
    %1984 = vmatpush.xpose.msra.mxu0 0.0
    %1985 = vmatpush.xpose.msra.mxu0 0.0
    %1986 = vmatpush.xpose.msra.mxu0 0.0
    %1987 = vmatpush.xpose.msra.mxu0 0.0
    %1988 = vmatpush.xpose.msra.mxu0 0.0
    %1989 = vmatpush.xpose.msra.mxu0 0.0
    %1990 = vmatpush.xpose.msra.mxu0 0.0
    %1991 = vmatpush.xpose.msra.mxu0 0.0
    %1992 = vmatpush.xpose.msra.mxu0 0.0
    %1993 = vmatpush.xpose.msra.mxu0 0.0
    %1994 = vmatpush.xpose.msra.mxu0 0.0
    %1995 = vmatpush.xpose.msra.mxu0 0.0
    %1996 = vmatpush.xpose.msra.mxu0 %v1980
    %1997 = vmatpush.xpose.msra.mxu0 %v1978
    %1998 = vmatmul.f32.gmra.mxu0 %v1974
    %v1999 = vpop.f32.mrf.mxu0
    %v2000 = vadd.f32 %v96, %v1999
    %2001 = vmatmul.f32.gmra.mxu0 %v1976
    %v2002 = vpop.f32.mrf.mxu0
    %v2003 = vadd.f32 %v97, %v2002
    %2004 = vdwg.mxu0
    %v2005 = vsel %vm235, %v2000, -inf
    %2006 = vmax.xlane.f32.xlu0 %v2005
    %v2007 = vpop.xlane.xlu0 %2006
    %v2008 = vsel %vm235, %v2003, -inf
    %2009 = vmax.xlane.f32.xlu0 %v2008
    %v2010 = vpop.xlane.xlu0 %2009
    %v2011 = vsub.f32 %v2000, %v2007
    %v2012 = vsub.f32 %v2003, %v2010
    %v2013 = vmul.f32 %v2011, 1.442695
    %v2014 = vpow.pop %v2013
    %v2015 = vmul.f32 %v2012, 1.442695
    %v2016 = vpow.pop %v2015
    %v2017 = vsel %vm235, %v2014, 0.0
    %2018 = vadd.xlane.f32.xlu0 %v2017
    %v2019 = vpop.xlane.xlu0 %2018
    %v2020 = vsel %vm235, %v2016, 0.0
    %2021 = vadd.xlane.f32.xlu0 %v2020
    %v2022 = vpop.xlane.xlu0 %2021
    %2023 = vrot.lane.b32.xlu0 %v1711, 48
    %v2024 = vpop.permute.xlu0 %2023
    %2025 = vrot.lane.b32.xlu0 %v1714, 48
    %v2026 = vpop.permute.xlu0 %2025
    %v2030 = vsel %vm235, %v2014, 0
    %v2033 = vsel %vm235, %v2016, 0
    %2035 = vmatpush.msra.mxu0 0.0
    %2036 = vmatpush.msra.mxu0 0.0
    %2037 = vmatpush.msra.mxu0 0.0
    %2038 = vmatpush.msra.mxu0 0.0
    %2039 = vmatpush.msra.mxu0 0.0
    %2040 = vmatpush.msra.mxu0 0.0
    %2041 = vmatpush.msra.mxu0 0.0
    %2042 = vmatpush.msra.mxu0 0.0
    %2043 = vmatpush.msra.mxu0 0.0
    %2044 = vmatpush.msra.mxu0 0.0
    %2045 = vmatpush.msra.mxu0 0.0
    %2046 = vmatpush.msra.mxu0 0.0
    %2047 = vmatpush.msra.mxu0 0.0
    %2048 = vmatpush.msra.mxu0 0.0
    %2049 = vmatpush.msra.mxu0 %v2026
    %2050 = vmatpush.msra.mxu0 %v2024
    %2051 = vmatmul.f32.gmra.mxu0 %v2030
    %v2052 = vpop.f32.mrf.mxu0
    %v2053 = vadd.f32 0.0, %v2052
    %2054 = vmatmul.f32.gmra.mxu0 %v2033
    %v2055 = vpop.f32.mrf.mxu0
    %v2056 = vadd.f32 0.0, %v2055
    %2057 = vdwg.mxu0
    %v2058 = vrcp.pop %v2019
    %v2059 = vrcp.pop %v2022
    %v2060 = vmul.f32 %v2053, %v2058
    %v2061 = vmul.f32 %v2056, %v2059
    %v2062 = vld [vmem:[#allocation2 + $0x1c0] sm:$0xff]
    %v2064 = vsel %vm203, %v2060, 0
    %v2067 = vsel %vm203, %v2061, 0
    %2069 = vmatpush.msra.mxu0 0.0
    %2070 = vmatpush.msra.mxu0 0.0
    %2071 = vmatpush.msra.mxu0 0.0
    %2072 = vmatpush.msra.mxu0 0.0
    %2073 = vmatpush.msra.mxu0 0.0
    %2074 = vmatpush.msra.mxu0 0.0
    %2075 = vmatpush.msra.mxu0 0.0
    %2076 = vmatpush.msra.mxu0 0.0
    %2077 = vmatpush.msra.mxu0 0.0
    %2078 = vmatpush.msra.mxu0 0.0
    %2079 = vmatpush.msra.mxu0 0.0
    %2080 = vmatpush.msra.mxu0 0.0
    %2081 = vmatpush.msra.mxu0 0.0
    %2082 = vmatpush.msra.mxu0 0.0
    %2083 = vmatpush.msra.mxu0 0.0
    %2084 = vmatpush.msra.mxu0 %v2062
    %2085 = vmatmul.f32.gmra.mxu0 %v2064
    %v2086 = vpop.f32.mrf.mxu0
    %v2087 = vadd.f32 0.0, %v2086
    %2088 = vmatmul.f32.gmra.mxu0 %v2067
    %v2089 = vpop.f32.mrf.mxu0
    %v2090 = vadd.f32 0.0, %v2089
    %2091 = vdwg.mxu0
    %v2092 = vadd.f32 %v1961, %v2087
    %v2093 = vadd.f32 %v1964, %v2090
    %2094 = vrot.lane.b32.xlu0 %v1711, 104
    %v2095 = vpop.permute.xlu0 %2094
    %2096 = vrot.lane.b32.xlu0 %v1714, 104
    %v2097 = vpop.permute.xlu0 %2096
    %2098 = vrot.lane.b32.xlu0 %v1711, 72
    %v2099 = vpop.permute.xlu0 %2098
    %2100 = vrot.lane.b32.xlu0 %v1714, 72
    %v2101 = vpop.permute.xlu0 %2100
    %v2102 = vsel %vm203, %v2095, 0
    %v2104 = vsel %vm203, %v2097, 0
    %v2106 = vsel %vm203, %v2099, 0
    %v2108 = vsel %vm203, %v2101, 0
    %2110 = vmatpush.xpose.msra.mxu0 0.0
    %2111 = vmatpush.xpose.msra.mxu0 0.0
    %2112 = vmatpush.xpose.msra.mxu0 0.0
    %2113 = vmatpush.xpose.msra.mxu0 0.0
    %2114 = vmatpush.xpose.msra.mxu0 0.0
    %2115 = vmatpush.xpose.msra.mxu0 0.0
    %2116 = vmatpush.xpose.msra.mxu0 0.0
    %2117 = vmatpush.xpose.msra.mxu0 0.0
    %2118 = vmatpush.xpose.msra.mxu0 0.0
    %2119 = vmatpush.xpose.msra.mxu0 0.0
    %2120 = vmatpush.xpose.msra.mxu0 0.0
    %2121 = vmatpush.xpose.msra.mxu0 0.0
    %2122 = vmatpush.xpose.msra.mxu0 0.0
    %2123 = vmatpush.xpose.msra.mxu0 0.0
    %2124 = vmatpush.xpose.msra.mxu0 %v2108
    %2125 = vmatpush.xpose.msra.mxu0 %v2106
    %2126 = vmatmul.f32.gmra.mxu0 %v2102
    %v2127 = vpop.f32.mrf.mxu0
    %v2128 = vadd.f32 %v96, %v2127
    %2129 = vmatmul.f32.gmra.mxu0 %v2104
    %v2130 = vpop.f32.mrf.mxu0
    %v2131 = vadd.f32 %v97, %v2130
    %2132 = vdwg.mxu0
    %v2133 = vsel %vm235, %v2128, -inf
    %2134 = vmax.xlane.f32.xlu0 %v2133
    %v2135 = vpop.xlane.xlu0 %2134
    %v2136 = vsel %vm235, %v2131, -inf
    %2137 = vmax.xlane.f32.xlu0 %v2136
    %v2138 = vpop.xlane.xlu0 %2137
    %v2139 = vsub.f32 %v2128, %v2135
    %v2140 = vsub.f32 %v2131, %v2138
    %v2141 = vmul.f32 %v2139, 1.442695
    %v2142 = vpow.pop %v2141
    %v2143 = vmul.f32 %v2140, 1.442695
    %v2144 = vpow.pop %v2143
    %v2145 = vsel %vm235, %v2142, 0.0
    %2146 = vadd.xlane.f32.xlu0 %v2145
    %v2147 = vpop.xlane.xlu0 %2146
    %v2148 = vsel %vm235, %v2144, 0.0
    %2149 = vadd.xlane.f32.xlu0 %v2148
    %v2150 = vpop.xlane.xlu0 %2149
    %2151 = vrot.lane.b32.xlu0 %v1711, 40
    %v2152 = vpop.permute.xlu0 %2151
    %2153 = vrot.lane.b32.xlu0 %v1714, 40
    %v2154 = vpop.permute.xlu0 %2153
    %v2158 = vsel %vm235, %v2142, 0
    %v2161 = vsel %vm235, %v2144, 0
    %2163 = vmatpush.msra.mxu0 0.0
    %2164 = vmatpush.msra.mxu0 0.0
    %2165 = vmatpush.msra.mxu0 0.0
    %2166 = vmatpush.msra.mxu0 0.0
    %2167 = vmatpush.msra.mxu0 0.0
    %2168 = vmatpush.msra.mxu0 0.0
    %2169 = vmatpush.msra.mxu0 0.0
    %2170 = vmatpush.msra.mxu0 0.0
    %2171 = vmatpush.msra.mxu0 0.0
    %2172 = vmatpush.msra.mxu0 0.0
    %2173 = vmatpush.msra.mxu0 0.0
    %2174 = vmatpush.msra.mxu0 0.0
    %2175 = vmatpush.msra.mxu0 0.0
    %2176 = vmatpush.msra.mxu0 0.0
    %2177 = vmatpush.msra.mxu0 %v2154
    %2178 = vmatpush.msra.mxu0 %v2152
    %2179 = vmatmul.f32.gmra.mxu0 %v2158
    %v2180 = vpop.f32.mrf.mxu0
    %v2181 = vadd.f32 0.0, %v2180
    %2182 = vmatmul.f32.gmra.mxu0 %v2161
    %v2183 = vpop.f32.mrf.mxu0
    %v2184 = vadd.f32 0.0, %v2183
    %2185 = vdwg.mxu0
    %v2186 = vrcp.pop %v2147
    %v2187 = vrcp.pop %v2150
    %v2188 = vmul.f32 %v2181, %v2186
    %v2189 = vmul.f32 %v2184, %v2187
    %v2190 = vld [vmem:[#allocation2 + $0x1c8] sm:$0xff]
    %v2192 = vsel %vm203, %v2188, 0
    %v2195 = vsel %vm203, %v2189, 0
    %2197 = vmatpush.msra.mxu0 0.0
    %2198 = vmatpush.msra.mxu0 0.0
    %2199 = vmatpush.msra.mxu0 0.0
    %2200 = vmatpush.msra.mxu0 0.0
    %2201 = vmatpush.msra.mxu0 0.0
    %2202 = vmatpush.msra.mxu0 0.0
    %2203 = vmatpush.msra.mxu0 0.0
    %2204 = vmatpush.msra.mxu0 0.0
    %2205 = vmatpush.msra.mxu0 0.0
    %2206 = vmatpush.msra.mxu0 0.0
    %2207 = vmatpush.msra.mxu0 0.0
    %2208 = vmatpush.msra.mxu0 0.0
    %2209 = vmatpush.msra.mxu0 0.0
    %2210 = vmatpush.msra.mxu0 0.0
    %2211 = vmatpush.msra.mxu0 0.0
    %2212 = vmatpush.msra.mxu0 %v2190
    %2213 = vmatmul.f32.gmra.mxu0 %v2192
    %v2214 = vpop.f32.mrf.mxu0
    %v2215 = vadd.f32 0.0, %v2214
    %2216 = vmatmul.f32.gmra.mxu0 %v2195
    %v2217 = vpop.f32.mrf.mxu0
    %v2218 = vadd.f32 0.0, %v2217
    %2219 = vdwg.mxu0
    %v2220 = vadd.f32 %v2092, %v2215
    %v2221 = vadd.f32 %v2093, %v2218
    %v2222 = vadd.f32 %v1627, %v2220
    %v2223 = vadd.f32 %v1628, %v2221
    %v2224 = vld [vmem:[%s5 + $0x14] sm:$0x1]
    %v2225 = vperm.slane %v2224, 0
    %v2226 = vadd.f32 %v2222, %v2225
    %v2227 = vadd.f32 %v2223, %v2225
    %v2228 = vld [vmem:[%s5 + $0x15] sm:$0x1]
    %v2229 = vld [vmem:[%s5 + $0x16] sm:$0x1]
    %v2230 = vsel %vm104, %v2226, 0.0
    %2231 = vadd.xlane.f32.xlu0 %v2230
    %v2232 = vpop.xlane.xlu0 %2231
    %v2233 = vsel %vm104, %v2227, 0.0
    %2234 = vadd.xlane.f32.xlu0 %v2233
    %v2235 = vpop.xlane.xlu0 %2234
    %v2236 = vmul.f32 %v2232, %v117
    %v2237 = vmul.f32 %v2235, %v117
    %v2238 = vsub.f32 %v2226, %v2236
    %v2239 = vsub.f32 %v2227, %v2237
    %v2240 = vmul.f32 %v2238, %v2238
    %v2241 = vmul.f32 %v2239, %v2239
    %v2242 = vsel %vm104, %v2240, 0.0
    %2243 = vadd.xlane.f32.xlu0 %v2242
    %v2244 = vpop.xlane.xlu0 %2243
    %v2245 = vsel %vm104, %v2241, 0.0
    %2246 = vadd.xlane.f32.xlu0 %v2245
    %v2247 = vpop.xlane.xlu0 %2246
    %v2248 = vmul.f32 %v2244, %v117
    %v2249 = vmul.f32 %v2247, %v117
    %v2250 = vadd.f32 %v2248, 1e-06
    %v2251 = vadd.f32 %v2249, 1e-06
    %v2252 = vrsqrt.pop %v2250
    %v2253 = vmul.f32 %v2252, %v2250
    %v2254 = vmul.f32 %v2253, %v2252
    %v2255 = vmul.f32 0.5, %v2254
    %v2256 = vsub.f32 1.5, %v2255
    %v2257 = vmul.f32 %v2252, %v2256
    %vm2258 = vweird.f32 %v2250
    %vm2259 = vweird.f32 %v2252
    %vm2260 = vmor %vm2258, %vm2259
    %v2261 = vsel %vm2260, %v2252, %v2257
    %v2262 = vrsqrt.pop %v2251
    %v2263 = vmul.f32 %v2262, %v2251
    %v2264 = vmul.f32 %v2263, %v2262
    %v2265 = vmul.f32 0.5, %v2264
    %v2266 = vsub.f32 1.5, %v2265
    %v2267 = vmul.f32 %v2262, %v2266
    %vm2268 = vweird.f32 %v2251
    %vm2269 = vweird.f32 %v2262
    %vm2270 = vmor %vm2268, %vm2269
    %v2271 = vsel %vm2270, %v2262, %v2267
    %v2272 = vmul.f32 %v2238, %v2261
    %v2273 = vmul.f32 %v2239, %v2271
    %v2274 = vperm.slane %v2228, 0
    %v2275 = vmul.f32 %v2272, %v2274
    %v2276 = vmul.f32 %v2273, %v2274
    %v2277 = vperm.slane %v2229, 0
    %v2278 = vadd.f32 %v2275, %v2277
    %v2279 = vadd.f32 %v2276, %v2277
    %v2280 = vld [vmem:[#allocation2 + $0x1d0] sm:$0xff]
    %v2281 = vld [vmem:[#allocation2 + $0x1d8] sm:$0xff]
    %v2282 = vld [vmem:[#allocation2 + $0x1e0] sm:$0xff]
    %v2283 = vld [vmem:[#allocation2 + $0x1e8] sm:$0xff]
    %v2284 = vld [vmem:[%s5 + $0x17] sm:$0x1]
    %v2285 = vperm.slane %v2284, 0
    %v2287 = vsel %vm104, %v2278, 0
    %v2290 = vsel %vm104, %v2279, 0
    %2292 = vmatpush.msra.mxu0 0.0
    %2293 = vmatpush.msra.mxu0 0.0
    %2294 = vmatpush.msra.mxu0 0.0
    %2295 = vmatpush.msra.mxu0 0.0
    %2296 = vmatpush.msra.mxu0 0.0
    %2297 = vmatpush.msra.mxu0 0.0
    %2298 = vmatpush.msra.mxu0 0.0
    %2299 = vmatpush.msra.mxu0 0.0
    %2300 = vmatpush.msra.mxu0 0.0
    %2301 = vmatpush.msra.mxu0 0.0
    %2302 = vmatpush.msra.mxu0 0.0
    %2303 = vmatpush.msra.mxu0 0.0
    %2304 = vmatpush.msra.mxu0 %v2283
    %2305 = vmatpush.msra.mxu0 %v2282
    %2306 = vmatpush.msra.mxu0 %v2281
    %2307 = vmatpush.msra.mxu0 %v2280
    %2308 = vmatmul.f32.gmra.mxu0 %v2287
    %v2309 = vpop.f32.mrf.mxu0
    %v2310 = vadd.f32 %v2285, %v2309
    %2311 = vmatmul.f32.gmra.mxu0 %v2290
    %v2312 = vpop.f32.mrf.mxu0
    %v2313 = vadd.f32 %v2285, %v2312
    %2314 = vdwg.mxu0
    %v2315 = vld [vmem:[#allocation2 + $0x1f0] sm:$0xff]
    %v2316 = vld [vmem:[#allocation2 + $0x1f8] sm:$0xff]
    %v2317 = vld [vmem:[#allocation2 + $0x200] sm:$0xff]
    %v2318 = vld [vmem:[#allocation2 + $0x208] sm:$0xff]
    %v2319 = vld [vmem:[%s5 + $0x18] sm:$0x1]
    %v2320 = vperm.slane %v2319, 0
    %2321 = vmatpush.msra.mxu0 0.0
    %2322 = vmatpush.msra.mxu0 0.0
    %2323 = vmatpush.msra.mxu0 0.0
    %2324 = vmatpush.msra.mxu0 0.0
    %2325 = vmatpush.msra.mxu0 0.0
    %2326 = vmatpush.msra.mxu0 0.0
    %2327 = vmatpush.msra.mxu0 0.0
    %2328 = vmatpush.msra.mxu0 0.0
    %2329 = vmatpush.msra.mxu0 0.0
    %2330 = vmatpush.msra.mxu0 0.0
    %2331 = vmatpush.msra.mxu0 0.0
    %2332 = vmatpush.msra.mxu0 0.0
    %2333 = vmatpush.msra.mxu0 %v2318
    %2334 = vmatpush.msra.mxu0 %v2317
    %2335 = vmatpush.msra.mxu0 %v2316
    %2336 = vmatpush.msra.mxu0 %v2315
    %2337 = vmatmul.f32.gmra.mxu0 %v805
    %v2338 = vpop.f32.mrf.mxu0
    %v2339 = vadd.f32 %v2320, %v2338
    %2340 = vmatmul.f32.gmra.mxu0 %v808
    %v2341 = vpop.f32.mrf.mxu0
    %v2342 = vadd.f32 %v2320, %v2341
    %2343 = vmatmul.f32.gmra.mxu0 %v811
    %v2344 = vpop.f32.mrf.mxu0
    %v2345 = vadd.f32 %v2320, %v2344
    %2346 = vmatmul.f32.gmra.mxu0 %v814
    %v2347 = vpop.f32.mrf.mxu0
    %v2348 = vadd.f32 %v2320, %v2347
    %2349 = vdwg.mxu0
    %v2351 = vsel %vm203, %v2310, 0
    %v2354 = vsel %vm203, %v2313, 0
    %v2357 = vsel %vm203, %v2339, 0
    %v2360 = vsel %vm203, %v2342, 0
    %v2363 = vsel %vm203, %v2345, 0
    %v2366 = vsel %vm203, %v2348, 0
    %2368 = vmatpush.xpose.msra.mxu0 0.0
    %2369 = vmatpush.xpose.msra.mxu0 0.0
    %2370 = vmatpush.xpose.msra.mxu0 0.0
    %2371 = vmatpush.xpose.msra.mxu0 0.0
    %2372 = vmatpush.xpose.msra.mxu0 0.0
    %2373 = vmatpush.xpose.msra.mxu0 0.0
    %2374 = vmatpush.xpose.msra.mxu0 0.0
    %2375 = vmatpush.xpose.msra.mxu0 0.0
    %2376 = vmatpush.xpose.msra.mxu0 0.0
    %2377 = vmatpush.xpose.msra.mxu0 0.0
    %2378 = vmatpush.xpose.msra.mxu0 0.0
    %2379 = vmatpush.xpose.msra.mxu0 0.0
    %2380 = vmatpush.xpose.msra.mxu0 %v2366
    %2381 = vmatpush.xpose.msra.mxu0 %v2363
    %2382 = vmatpush.xpose.msra.mxu0 %v2360
    %2383 = vmatpush.xpose.msra.mxu0 %v2357
    %2384 = vmatmul.f32.gmra.mxu0 %v2351
    %v2385 = vpop.f32.mrf.mxu0
    %v2386 = vadd.f32 %v98, %v2385
    %2387 = vmatmul.f32.gmra.mxu0 %v2354
    %v2388 = vpop.f32.mrf.mxu0
    %v2389 = vadd.f32 %v99, %v2388
    %2390 = vdwg.mxu0
    %v2391 = vsel %vm104, %v2386, -inf
    %2392 = vmax.xlane.f32.xlu0 %v2391
    %v2393 = vpop.xlane.xlu0 %2392
    %v2394 = vsel %vm104, %v2389, -inf
    %2395 = vmax.xlane.f32.xlu0 %v2394
    %v2396 = vpop.xlane.xlu0 %2395
    %v2397 = vsub.f32 %v2386, %v2393
    %v2398 = vsub.f32 %v2389, %v2396
    %v2399 = vmul.f32 %v2397, 1.442695
    %v2400 = vpow.pop %v2399
    %v2401 = vmul.f32 %v2398, 1.442695
    %v2402 = vpow.pop %v2401
    %v2403 = vsel %vm104, %v2400, 0.0
    %2404 = vadd.xlane.f32.xlu0 %v2403
    %v2405 = vpop.xlane.xlu0 %2404
    %v2406 = vsel %vm104, %v2402, 0.0
    %2407 = vadd.xlane.f32.xlu0 %v2406
    %v2408 = vpop.xlane.xlu0 %2407
    %2409 = vrot.lane.b32.xlu0 %v2339, 96
    %v2410 = vpop.permute.xlu0 %2409
    %2411 = vrot.lane.b32.xlu0 %v2342, 96
    %v2412 = vpop.permute.xlu0 %2411
    %2413 = vrot.lane.b32.xlu0 %v2345, 96
    %v2414 = vpop.permute.xlu0 %2413
    %2415 = vrot.lane.b32.xlu0 %v2348, 96
    %v2416 = vpop.permute.xlu0 %2415
    %v2422 = vsel %vm104, %v2400, 0
    %v2425 = vsel %vm104, %v2402, 0
    %2427 = vmatpush.msra.mxu0 0.0
    %2428 = vmatpush.msra.mxu0 0.0
    %2429 = vmatpush.msra.mxu0 0.0
    %2430 = vmatpush.msra.mxu0 0.0
    %2431 = vmatpush.msra.mxu0 0.0
    %2432 = vmatpush.msra.mxu0 0.0
    %2433 = vmatpush.msra.mxu0 0.0
    %2434 = vmatpush.msra.mxu0 0.0
    %2435 = vmatpush.msra.mxu0 0.0
    %2436 = vmatpush.msra.mxu0 0.0
    %2437 = vmatpush.msra.mxu0 0.0
    %2438 = vmatpush.msra.mxu0 0.0
    %2439 = vmatpush.msra.mxu0 %v2416
    %2440 = vmatpush.msra.mxu0 %v2414
    %2441 = vmatpush.msra.mxu0 %v2412
    %2442 = vmatpush.msra.mxu0 %v2410
    %2443 = vmatmul.f32.gmra.mxu0 %v2422
    %v2444 = vpop.f32.mrf.mxu0
    %v2445 = vadd.f32 0.0, %v2444
    %2446 = vmatmul.f32.gmra.mxu0 %v2425
    %v2447 = vpop.f32.mrf.mxu0
    %v2448 = vadd.f32 0.0, %v2447
    %2449 = vdwg.mxu0
    %v2450 = vrcp.pop %v2405
    %v2451 = vrcp.pop %v2408
    %v2452 = vmul.f32 %v2445, %v2450
    %v2453 = vmul.f32 %v2448, %v2451
    %v2454 = vld [vmem:[#allocation2 + $0x210] sm:$0xff]
    %2455 = vrot.lane.b32.xlu0 %v2310, 120
    %v2456 = vpop.permute.xlu0 %2455
    %2457 = vrot.lane.b32.xlu0 %v2313, 120
    %v2458 = vpop.permute.xlu0 %2457
    %2459 = vrot.lane.b32.xlu0 %v2339, 120
    %v2460 = vpop.permute.xlu0 %2459
    %2461 = vrot.lane.b32.xlu0 %v2342, 120
    %v2462 = vpop.permute.xlu0 %2461
    %2463 = vrot.lane.b32.xlu0 %v2345, 120
    %v2464 = vpop.permute.xlu0 %2463
    %2465 = vrot.lane.b32.xlu0 %v2348, 120
    %v2466 = vpop.permute.xlu0 %2465
    %v2467 = vsel %vm203, %v2456, 0
    %v2469 = vsel %vm203, %v2458, 0
    %v2471 = vsel %vm203, %v2460, 0
    %v2473 = vsel %vm203, %v2462, 0
    %v2475 = vsel %vm203, %v2464, 0
    %v2477 = vsel %vm203, %v2466, 0
    %2479 = vmatpush.xpose.msra.mxu0 0.0
    %2480 = vmatpush.xpose.msra.mxu0 0.0
    %2481 = vmatpush.xpose.msra.mxu0 0.0
    %2482 = vmatpush.xpose.msra.mxu0 0.0
    %2483 = vmatpush.xpose.msra.mxu0 0.0
    %2484 = vmatpush.xpose.msra.mxu0 0.0
    %2485 = vmatpush.xpose.msra.mxu0 0.0
    %2486 = vmatpush.xpose.msra.mxu0 0.0
    %2487 = vmatpush.xpose.msra.mxu0 0.0
    %2488 = vmatpush.xpose.msra.mxu0 0.0
    %2489 = vmatpush.xpose.msra.mxu0 0.0
    %2490 = vmatpush.xpose.msra.mxu0 0.0
    %2491 = vmatpush.xpose.msra.mxu0 %v2477
    %2492 = vmatpush.xpose.msra.mxu0 %v2475
    %2493 = vmatpush.xpose.msra.mxu0 %v2473
    %2494 = vmatpush.xpose.msra.mxu0 %v2471
    %2495 = vmatmul.f32.gmra.mxu0 %v2467
    %v2496 = vpop.f32.mrf.mxu0
    %v2497 = vadd.f32 %v98, %v2496
    %2498 = vmatmul.f32.gmra.mxu0 %v2469
    %v2499 = vpop.f32.mrf.mxu0
    %v2500 = vadd.f32 %v99, %v2499
    %2501 = vdwg.mxu0
    %v2502 = vsel %vm104, %v2497, -inf
    %2503 = vmax.xlane.f32.xlu0 %v2502
    %v2504 = vpop.xlane.xlu0 %2503
    %v2505 = vsel %vm104, %v2500, -inf
    %2506 = vmax.xlane.f32.xlu0 %v2505
    %v2507 = vpop.xlane.xlu0 %2506
    %v2508 = vsub.f32 %v2497, %v2504
    %v2509 = vsub.f32 %v2500, %v2507
    %v2510 = vmul.f32 %v2508, 1.442695
    %v2511 = vpow.pop %v2510
    %v2512 = vmul.f32 %v2509, 1.442695
    %v2513 = vpow.pop %v2512
    %v2514 = vsel %vm104, %v2511, 0.0
    %2515 = vadd.xlane.f32.xlu0 %v2514
    %v2516 = vpop.xlane.xlu0 %2515
    %v2517 = vsel %vm104, %v2513, 0.0
    %2518 = vadd.xlane.f32.xlu0 %v2517
    %v2519 = vpop.xlane.xlu0 %2518
    %2520 = vrot.lane.b32.xlu0 %v2339, 88
    %v2521 = vpop.permute.xlu0 %2520
    %2522 = vrot.lane.b32.xlu0 %v2342, 88
    %v2523 = vpop.permute.xlu0 %2522
    %2524 = vrot.lane.b32.xlu0 %v2345, 88
    %v2525 = vpop.permute.xlu0 %2524
    %2526 = vrot.lane.b32.xlu0 %v2348, 88
    %v2527 = vpop.permute.xlu0 %2526
    %v2533 = vsel %vm104, %v2511, 0
    %v2536 = vsel %vm104, %v2513, 0
    %2538 = vmatpush.msra.mxu0 0.0
    %2539 = vmatpush.msra.mxu0 0.0
    %2540 = vmatpush.msra.mxu0 0.0
    %2541 = vmatpush.msra.mxu0 0.0
    %2542 = vmatpush.msra.mxu0 0.0
    %2543 = vmatpush.msra.mxu0 0.0
    %2544 = vmatpush.msra.mxu0 0.0
    %2545 = vmatpush.msra.mxu0 0.0
    %2546 = vmatpush.msra.mxu0 0.0
    %2547 = vmatpush.msra.mxu0 0.0
    %2548 = vmatpush.msra.mxu0 0.0
    %2549 = vmatpush.msra.mxu0 0.0
    %2550 = vmatpush.msra.mxu0 %v2527
    %2551 = vmatpush.msra.mxu0 %v2525
    %2552 = vmatpush.msra.mxu0 %v2523
    %2553 = vmatpush.msra.mxu0 %v2521
    %2554 = vmatmul.f32.gmra.mxu0 %v2533
    %v2555 = vpop.f32.mrf.mxu0
    %v2556 = vadd.f32 0.0, %v2555
    %2557 = vmatmul.f32.gmra.mxu0 %v2536
    %v2558 = vpop.f32.mrf.mxu0
    %v2559 = vadd.f32 0.0, %v2558
    %2560 = vdwg.mxu0
    %v2561 = vrcp.pop %v2516
    %v2562 = vrcp.pop %v2519
    %v2563 = vmul.f32 %v2556, %v2561
    %v2564 = vmul.f32 %v2559, %v2562
    %v2565 = vld [vmem:[#allocation2 + $0x218] sm:$0xff]
    %v2567 = vsel %vm203, %v2563, 0
    %v2570 = vsel %vm203, %v2564, 0
    %2572 = vmatpush.msra.mxu0 0.0
    %2573 = vmatpush.msra.mxu0 0.0
    %2574 = vmatpush.msra.mxu0 0.0
    %2575 = vmatpush.msra.mxu0 0.0
    %2576 = vmatpush.msra.mxu0 0.0
    %2577 = vmatpush.msra.mxu0 0.0
    %2578 = vmatpush.msra.mxu0 0.0
    %2579 = vmatpush.msra.mxu0 0.0
    %2580 = vmatpush.msra.mxu0 0.0
    %2581 = vmatpush.msra.mxu0 0.0
    %2582 = vmatpush.msra.mxu0 0.0
    %2583 = vmatpush.msra.mxu0 0.0
    %2584 = vmatpush.msra.mxu0 0.0
    %2585 = vmatpush.msra.mxu0 0.0
    %2586 = vmatpush.msra.mxu0 0.0
    %2587 = vmatpush.msra.mxu0 %v2565
    %2588 = vmatmul.f32.gmra.mxu0 %v2567
    %v2589 = vpop.f32.mrf.mxu0
    %v2590 = vadd.f32 0.0, %v2589
    %2591 = vmatmul.f32.gmra.mxu0 %v2570
    %v2592 = vpop.f32.mrf.mxu0
    %v2593 = vadd.f32 0.0, %v2592
    %2594 = vdwg.mxu0
    %v2596 = vsel %vm203, %v2452, 0
    %v2599 = vsel %vm203, %v2453, 0
    %2601 = vmatpush.msra.mxu0 0.0
    %2602 = vmatpush.msra.mxu0 0.0
    %2603 = vmatpush.msra.mxu0 0.0
    %2604 = vmatpush.msra.mxu0 0.0
    %2605 = vmatpush.msra.mxu0 0.0
    %2606 = vmatpush.msra.mxu0 0.0
    %2607 = vmatpush.msra.mxu0 0.0
    %2608 = vmatpush.msra.mxu0 0.0
    %2609 = vmatpush.msra.mxu0 0.0
    %2610 = vmatpush.msra.mxu0 0.0
    %2611 = vmatpush.msra.mxu0 0.0
    %2612 = vmatpush.msra.mxu0 0.0
    %2613 = vmatpush.msra.mxu0 0.0
    %2614 = vmatpush.msra.mxu0 0.0
    %2615 = vmatpush.msra.mxu0 0.0
    %2616 = vmatpush.msra.mxu0 %v2454
    %2617 = vmatmul.f32.gmra.mxu0 %v2596
    %v2618 = vpop.f32.mrf.mxu0
    %v2619 = vadd.f32 %v2590, %v2618
    %2620 = vmatmul.f32.gmra.mxu0 %v2599
    %v2621 = vpop.f32.mrf.mxu0
    %v2622 = vadd.f32 %v2593, %v2621
    %2623 = vdwg.mxu0
    %2624 = vrot.lane.b32.xlu0 %v2310, 112
    %v2625 = vpop.permute.xlu0 %2624
    %2626 = vrot.lane.b32.xlu0 %v2313, 112
    %v2627 = vpop.permute.xlu0 %2626
    %2628 = vrot.lane.b32.xlu0 %v2339, 112
    %v2629 = vpop.permute.xlu0 %2628
    %2630 = vrot.lane.b32.xlu0 %v2342, 112
    %v2631 = vpop.permute.xlu0 %2630
    %2632 = vrot.lane.b32.xlu0 %v2345, 112
    %v2633 = vpop.permute.xlu0 %2632
    %2634 = vrot.lane.b32.xlu0 %v2348, 112
    %v2635 = vpop.permute.xlu0 %2634
    %v2636 = vsel %vm203, %v2625, 0
    %v2638 = vsel %vm203, %v2627, 0
    %v2640 = vsel %vm203, %v2629, 0
    %v2642 = vsel %vm203, %v2631, 0
    %v2644 = vsel %vm203, %v2633, 0
    %v2646 = vsel %vm203, %v2635, 0
    %2648 = vmatpush.xpose.msra.mxu0 0.0
    %2649 = vmatpush.xpose.msra.mxu0 0.0
    %2650 = vmatpush.xpose.msra.mxu0 0.0
    %2651 = vmatpush.xpose.msra.mxu0 0.0
    %2652 = vmatpush.xpose.msra.mxu0 0.0
    %2653 = vmatpush.xpose.msra.mxu0 0.0
    %2654 = vmatpush.xpose.msra.mxu0 0.0
    %2655 = vmatpush.xpose.msra.mxu0 0.0
    %2656 = vmatpush.xpose.msra.mxu0 0.0
    %2657 = vmatpush.xpose.msra.mxu0 0.0
    %2658 = vmatpush.xpose.msra.mxu0 0.0
    %2659 = vmatpush.xpose.msra.mxu0 0.0
    %2660 = vmatpush.xpose.msra.mxu0 %v2646
    %2661 = vmatpush.xpose.msra.mxu0 %v2644
    %2662 = vmatpush.xpose.msra.mxu0 %v2642
    %2663 = vmatpush.xpose.msra.mxu0 %v2640
    %2664 = vmatmul.f32.gmra.mxu0 %v2636
    %v2665 = vpop.f32.mrf.mxu0
    %v2666 = vadd.f32 %v98, %v2665
    %2667 = vmatmul.f32.gmra.mxu0 %v2638
    %v2668 = vpop.f32.mrf.mxu0
    %v2669 = vadd.f32 %v99, %v2668
    %2670 = vdwg.mxu0
    %v2671 = vsel %vm104, %v2666, -inf
    %2672 = vmax.xlane.f32.xlu0 %v2671
    %v2673 = vpop.xlane.xlu0 %2672
    %v2674 = vsel %vm104, %v2669, -inf
    %2675 = vmax.xlane.f32.xlu0 %v2674
    %v2676 = vpop.xlane.xlu0 %2675
    %v2677 = vsub.f32 %v2666, %v2673
    %v2678 = vsub.f32 %v2669, %v2676
    %v2679 = vmul.f32 %v2677, 1.442695
    %v2680 = vpow.pop %v2679
    %v2681 = vmul.f32 %v2678, 1.442695
    %v2682 = vpow.pop %v2681
    %v2683 = vsel %vm104, %v2680, 0.0
    %2684 = vadd.xlane.f32.xlu0 %v2683
    %v2685 = vpop.xlane.xlu0 %2684
    %v2686 = vsel %vm104, %v2682, 0.0
    %2687 = vadd.xlane.f32.xlu0 %v2686
    %v2688 = vpop.xlane.xlu0 %2687
    %2689 = vrot.lane.b32.xlu0 %v2339, 80
    %v2690 = vpop.permute.xlu0 %2689
    %2691 = vrot.lane.b32.xlu0 %v2342, 80
    %v2692 = vpop.permute.xlu0 %2691
    %2693 = vrot.lane.b32.xlu0 %v2345, 80
    %v2694 = vpop.permute.xlu0 %2693
    %2695 = vrot.lane.b32.xlu0 %v2348, 80
    %v2696 = vpop.permute.xlu0 %2695
    %v2702 = vsel %vm104, %v2680, 0
    %v2705 = vsel %vm104, %v2682, 0
    %2707 = vmatpush.msra.mxu0 0.0
    %2708 = vmatpush.msra.mxu0 0.0
    %2709 = vmatpush.msra.mxu0 0.0
    %2710 = vmatpush.msra.mxu0 0.0
    %2711 = vmatpush.msra.mxu0 0.0
    %2712 = vmatpush.msra.mxu0 0.0
    %2713 = vmatpush.msra.mxu0 0.0
    %2714 = vmatpush.msra.mxu0 0.0
    %2715 = vmatpush.msra.mxu0 0.0
    %2716 = vmatpush.msra.mxu0 0.0
    %2717 = vmatpush.msra.mxu0 0.0
    %2718 = vmatpush.msra.mxu0 0.0
    %2719 = vmatpush.msra.mxu0 %v2696
    %2720 = vmatpush.msra.mxu0 %v2694
    %2721 = vmatpush.msra.mxu0 %v2692
    %2722 = vmatpush.msra.mxu0 %v2690
    %2723 = vmatmul.f32.gmra.mxu0 %v2702
    %v2724 = vpop.f32.mrf.mxu0
    %v2725 = vadd.f32 0.0, %v2724
    %2726 = vmatmul.f32.gmra.mxu0 %v2705
    %v2727 = vpop.f32.mrf.mxu0
    %v2728 = vadd.f32 0.0, %v2727
    %2729 = vdwg.mxu0
    %v2730 = vrcp.pop %v2685
    %v2731 = vrcp.pop %v2688
    %v2732 = vmul.f32 %v2725, %v2730
    %v2733 = vmul.f32 %v2728, %v2731
    %v2734 = vld [vmem:[#allocation2 + $0x220] sm:$0xff]
    %v2736 = vsel %vm203, %v2732, 0
    %v2739 = vsel %vm203, %v2733, 0
    %2741 = vmatpush.msra.mxu0 0.0
    %2742 = vmatpush.msra.mxu0 0.0
    %2743 = vmatpush.msra.mxu0 0.0
    %2744 = vmatpush.msra.mxu0 0.0
    %2745 = vmatpush.msra.mxu0 0.0
    %2746 = vmatpush.msra.mxu0 0.0
    %2747 = vmatpush.msra.mxu0 0.0
    %2748 = vmatpush.msra.mxu0 0.0
    %2749 = vmatpush.msra.mxu0 0.0
    %2750 = vmatpush.msra.mxu0 0.0
    %2751 = vmatpush.msra.mxu0 0.0
    %2752 = vmatpush.msra.mxu0 0.0
    %2753 = vmatpush.msra.mxu0 0.0
    %2754 = vmatpush.msra.mxu0 0.0
    %2755 = vmatpush.msra.mxu0 0.0
    %2756 = vmatpush.msra.mxu0 %v2734
    %2757 = vmatmul.f32.gmra.mxu0 %v2736
    %v2758 = vpop.f32.mrf.mxu0
    %v2759 = vadd.f32 0.0, %v2758
    %2760 = vmatmul.f32.gmra.mxu0 %v2739
    %v2761 = vpop.f32.mrf.mxu0
    %v2762 = vadd.f32 0.0, %v2761
    %2763 = vdwg.mxu0
    %v2764 = vadd.f32 %v2619, %v2759
    %v2765 = vadd.f32 %v2622, %v2762
    %2766 = vrot.lane.b32.xlu0 %v2310, 104
    %v2767 = vpop.permute.xlu0 %2766
    %2768 = vrot.lane.b32.xlu0 %v2313, 104
    %v2769 = vpop.permute.xlu0 %2768
    %2770 = vrot.lane.b32.xlu0 %v2339, 104
    %v2771 = vpop.permute.xlu0 %2770
    %2772 = vrot.lane.b32.xlu0 %v2342, 104
    %v2773 = vpop.permute.xlu0 %2772
    %2774 = vrot.lane.b32.xlu0 %v2345, 104
    %v2775 = vpop.permute.xlu0 %2774
    %2776 = vrot.lane.b32.xlu0 %v2348, 104
    %v2777 = vpop.permute.xlu0 %2776
    %v2778 = vsel %vm203, %v2767, 0
    %v2780 = vsel %vm203, %v2769, 0
    %v2782 = vsel %vm203, %v2771, 0
    %v2784 = vsel %vm203, %v2773, 0
    %v2786 = vsel %vm203, %v2775, 0
    %v2788 = vsel %vm203, %v2777, 0
    %2790 = vmatpush.xpose.msra.mxu0 0.0
    %2791 = vmatpush.xpose.msra.mxu0 0.0
    %2792 = vmatpush.xpose.msra.mxu0 0.0
    %2793 = vmatpush.xpose.msra.mxu0 0.0
    %2794 = vmatpush.xpose.msra.mxu0 0.0
    %2795 = vmatpush.xpose.msra.mxu0 0.0
    %2796 = vmatpush.xpose.msra.mxu0 0.0
    %2797 = vmatpush.xpose.msra.mxu0 0.0
    %2798 = vmatpush.xpose.msra.mxu0 0.0
    %2799 = vmatpush.xpose.msra.mxu0 0.0
    %2800 = vmatpush.xpose.msra.mxu0 0.0
    %2801 = vmatpush.xpose.msra.mxu0 0.0
    %2802 = vmatpush.xpose.msra.mxu0 %v2788
    %2803 = vmatpush.xpose.msra.mxu0 %v2786
    %2804 = vmatpush.xpose.msra.mxu0 %v2784
    %2805 = vmatpush.xpose.msra.mxu0 %v2782
    %2806 = vmatmul.f32.gmra.mxu0 %v2778
    %v2807 = vpop.f32.mrf.mxu0
    %v2808 = vadd.f32 %v98, %v2807
    %2809 = vmatmul.f32.gmra.mxu0 %v2780
    %v2810 = vpop.f32.mrf.mxu0
    %v2811 = vadd.f32 %v99, %v2810
    %2812 = vdwg.mxu0
    %v2813 = vsel %vm104, %v2808, -inf
    %2814 = vmax.xlane.f32.xlu0 %v2813
    %v2815 = vpop.xlane.xlu0 %2814
    %v2816 = vsel %vm104, %v2811, -inf
    %2817 = vmax.xlane.f32.xlu0 %v2816
    %v2818 = vpop.xlane.xlu0 %2817
    %v2819 = vsub.f32 %v2808, %v2815
    %v2820 = vsub.f32 %v2811, %v2818
    %v2821 = vmul.f32 %v2819, 1.442695
    %v2822 = vpow.pop %v2821
    %v2823 = vmul.f32 %v2820, 1.442695
    %v2824 = vpow.pop %v2823
    %v2825 = vsel %vm104, %v2822, 0.0
    %2826 = vadd.xlane.f32.xlu0 %v2825
    %v2827 = vpop.xlane.xlu0 %2826
    %v2828 = vsel %vm104, %v2824, 0.0
    %2829 = vadd.xlane.f32.xlu0 %v2828
    %v2830 = vpop.xlane.xlu0 %2829
    %2831 = vrot.lane.b32.xlu0 %v2339, 72
    %v2832 = vpop.permute.xlu0 %2831
    %2833 = vrot.lane.b32.xlu0 %v2342, 72
    %v2834 = vpop.permute.xlu0 %2833
    %2835 = vrot.lane.b32.xlu0 %v2345, 72
    %v2836 = vpop.permute.xlu0 %2835
    %2837 = vrot.lane.b32.xlu0 %v2348, 72
    %v2838 = vpop.permute.xlu0 %2837
    %v2844 = vsel %vm104, %v2822, 0
    %v2847 = vsel %vm104, %v2824, 0
    %2849 = vmatpush.msra.mxu0 0.0
    %2850 = vmatpush.msra.mxu0 0.0
    %2851 = vmatpush.msra.mxu0 0.0
    %2852 = vmatpush.msra.mxu0 0.0
    %2853 = vmatpush.msra.mxu0 0.0
    %2854 = vmatpush.msra.mxu0 0.0
    %2855 = vmatpush.msra.mxu0 0.0
    %2856 = vmatpush.msra.mxu0 0.0
    %2857 = vmatpush.msra.mxu0 0.0
    %2858 = vmatpush.msra.mxu0 0.0
    %2859 = vmatpush.msra.mxu0 0.0
    %2860 = vmatpush.msra.mxu0 0.0
    %2861 = vmatpush.msra.mxu0 %v2838
    %2862 = vmatpush.msra.mxu0 %v2836
    %2863 = vmatpush.msra.mxu0 %v2834
    %2864 = vmatpush.msra.mxu0 %v2832
    %2865 = vmatmul.f32.gmra.mxu0 %v2844
    %v2866 = vpop.f32.mrf.mxu0
    %v2867 = vadd.f32 0.0, %v2866
    %2868 = vmatmul.f32.gmra.mxu0 %v2847
    %v2869 = vpop.f32.mrf.mxu0
    %v2870 = vadd.f32 0.0, %v2869
    %2871 = vdwg.mxu0
    %v2872 = vrcp.pop %v2827
    %v2873 = vrcp.pop %v2830
    %v2874 = vmul.f32 %v2867, %v2872
    %v2875 = vmul.f32 %v2870, %v2873
    %v2876 = vld [vmem:[#allocation2 + $0x228] sm:$0xff]
    %v2878 = vsel %vm203, %v2874, 0
    %v2881 = vsel %vm203, %v2875, 0
    %2883 = vmatpush.msra.mxu0 0.0
    %2884 = vmatpush.msra.mxu0 0.0
    %2885 = vmatpush.msra.mxu0 0.0
    %2886 = vmatpush.msra.mxu0 0.0
    %2887 = vmatpush.msra.mxu0 0.0
    %2888 = vmatpush.msra.mxu0 0.0
    %2889 = vmatpush.msra.mxu0 0.0
    %2890 = vmatpush.msra.mxu0 0.0
    %2891 = vmatpush.msra.mxu0 0.0
    %2892 = vmatpush.msra.mxu0 0.0
    %2893 = vmatpush.msra.mxu0 0.0
    %2894 = vmatpush.msra.mxu0 0.0
    %2895 = vmatpush.msra.mxu0 0.0
    %2896 = vmatpush.msra.mxu0 0.0
    %2897 = vmatpush.msra.mxu0 0.0
    %2898 = vmatpush.msra.mxu0 %v2876
    %2899 = vmatmul.f32.gmra.mxu0 %v2878
    %v2900 = vpop.f32.mrf.mxu0
    %v2901 = vadd.f32 0.0, %v2900
    %2902 = vmatmul.f32.gmra.mxu0 %v2881
    %v2903 = vpop.f32.mrf.mxu0
    %v2904 = vadd.f32 0.0, %v2903
    %2905 = vdwg.mxu0
    %v2906 = vadd.f32 %v2764, %v2901
    %v2907 = vadd.f32 %v2765, %v2904
    %v2908 = vadd.f32 %v2226, %v2906
    %v2909 = vadd.f32 %v2227, %v2907
    %v2910 = vld [vmem:[%s5 + $0x19] sm:$0x1]
    %v2911 = vperm.slane %v2910, 0
    %v2912 = vadd.f32 %v2908, %v2911
    %v2913 = vadd.f32 %v2909, %v2911
    %v2914 = vld [vmem:[%s5 + $0x1a] sm:$0x1]
    %v2915 = vld [vmem:[%s5 + $0x1b] sm:$0x1]
    %v2916 = vsel %vm104, %v2912, 0.0
    %2917 = vadd.xlane.f32.xlu0 %v2916
    %v2918 = vpop.xlane.xlu0 %2917
    %v2919 = vsel %vm104, %v2913, 0.0
    %2920 = vadd.xlane.f32.xlu0 %v2919
    %v2921 = vpop.xlane.xlu0 %2920
    %v2922 = vmul.f32 %v2918, %v117
    %v2923 = vmul.f32 %v2921, %v117
    %v2924 = vsub.f32 %v2912, %v2922
    %v2925 = vsub.f32 %v2913, %v2923
    %v2926 = vmul.f32 %v2924, %v2924
    %v2927 = vmul.f32 %v2925, %v2925
    %v2928 = vsel %vm104, %v2926, 0.0
    %2929 = vadd.xlane.f32.xlu0 %v2928
    %v2930 = vpop.xlane.xlu0 %2929
    %v2931 = vsel %vm104, %v2927, 0.0
    %2932 = vadd.xlane.f32.xlu0 %v2931
    %v2933 = vpop.xlane.xlu0 %2932
    %v2934 = vmul.f32 %v2930, %v117
    %v2935 = vmul.f32 %v2933, %v117
    %v2936 = vadd.f32 %v2934, 1e-06
    %v2937 = vadd.f32 %v2935, 1e-06
    %v2938 = vrsqrt.pop %v2936
    %v2939 = vmul.f32 %v2938, %v2936
    %v2940 = vmul.f32 %v2939, %v2938
    %v2941 = vmul.f32 0.5, %v2940
    %v2942 = vsub.f32 1.5, %v2941
    %v2943 = vmul.f32 %v2938, %v2942
    %vm2944 = vweird.f32 %v2936
    %vm2945 = vweird.f32 %v2938
    %vm2946 = vmor %vm2944, %vm2945
    %v2947 = vsel %vm2946, %v2938, %v2943
    %v2948 = vrsqrt.pop %v2937
    %v2949 = vmul.f32 %v2948, %v2937
    %v2950 = vmul.f32 %v2949, %v2948
    %v2951 = vmul.f32 0.5, %v2950
    %v2952 = vsub.f32 1.5, %v2951
    %v2953 = vmul.f32 %v2948, %v2952
    %vm2954 = vweird.f32 %v2937
    %vm2955 = vweird.f32 %v2948
    %vm2956 = vmor %vm2954, %vm2955
    %v2957 = vsel %vm2956, %v2948, %v2953
    %v2958 = vmul.f32 %v2924, %v2947
    %v2959 = vmul.f32 %v2925, %v2957
    %v2960 = vperm.slane %v2914, 0
    %v2961 = vmul.f32 %v2958, %v2960
    %v2962 = vmul.f32 %v2959, %v2960
    %v2963 = vperm.slane %v2915, 0
    %v2964 = vadd.f32 %v2961, %v2963
    %v2965 = vadd.f32 %v2962, %v2963
    %v2966 = vld [vmem:[#allocation2 + $0x230] sm:$0xff]
    %v2967 = vld [vmem:[#allocation2 + $0x238] sm:$0xff]
    %v2968 = vld [vmem:[#allocation2 + $0x240] sm:$0xff]
    %v2969 = vld [vmem:[#allocation2 + $0x248] sm:$0xff]
    %v2970 = vld [vmem:[%s5 + $0x1c] sm:$0x1]
    %v2971 = vperm.slane %v2970, 0
    %v2973 = vsel %vm104, %v2964, 0
    %v2976 = vsel %vm104, %v2965, 0
    %2978 = vmatpush.msra.mxu0 0.0
    %2979 = vmatpush.msra.mxu0 0.0
    %2980 = vmatpush.msra.mxu0 0.0
    %2981 = vmatpush.msra.mxu0 0.0
    %2982 = vmatpush.msra.mxu0 0.0
    %2983 = vmatpush.msra.mxu0 0.0
    %2984 = vmatpush.msra.mxu0 0.0
    %2985 = vmatpush.msra.mxu0 0.0
    %2986 = vmatpush.msra.mxu0 0.0
    %2987 = vmatpush.msra.mxu0 0.0
    %2988 = vmatpush.msra.mxu0 0.0
    %2989 = vmatpush.msra.mxu0 0.0
    %2990 = vmatpush.msra.mxu0 %v2969
    %2991 = vmatpush.msra.mxu0 %v2968
    %2992 = vmatpush.msra.mxu0 %v2967
    %2993 = vmatpush.msra.mxu0 %v2966
    %2994 = vmatmul.f32.gmra.mxu0 %v2973
    %v2995 = vpop.f32.mrf.mxu0
    %v2996 = vadd.f32 %v2971, %v2995
    %2997 = vmatmul.f32.gmra.mxu0 %v2976
    %v2998 = vpop.f32.mrf.mxu0
    %v2999 = vadd.f32 %v2971, %v2998
    %3000 = vdwg.mxu0
    %v3001 = vmul.f32 %v2996, 0.5
    %v3002 = vmul.f32 %v2999, 0.5
    %v3003 = vmul.f32 %v2996, 0.70710677
    %v3004 = vmul.f32 %v2999, 0.70710677
    %v3005 = vmul.f32 %v3003, %v3003
    %v3006 = vmin.f32 16.0, %v3005
    %v3007 = vmul.f32 %v3006, 2.1237322e-06
    %v3008 = vadd.f32 %v3007, 0.00028619796
    %v3009 = vmul.f32 %v3006, %v3008
    %v3010 = vadd.f32 %v3009, 0.0036580483
    %v3011 = vmul.f32 %v3006, %v3010
    %v3012 = vadd.f32 %v3011, 0.05243302
    %v3013 = vmul.f32 %v3006, %v3012
    %v3014 = vadd.f32 %v3013, 0.18741608
    %v3015 = vmul.f32 %v3006, %v3014
    %v3016 = vadd.f32 %v3015, 1.1283791
    %v3017 = vmul.f32 %v3003, %v3016
    %v3018 = vmul.f32 %v3006, 3.8918573e-05
    %v3019 = vadd.f32 %v3018, 0.001143296
    %v3020 = vmul.f32 %v3006, %v3019
    %v3021 = vadd.f32 %v3020, 0.014752088
    %v3022 = vmul.f32 %v3006, %v3021
    %v3023 = vadd.f32 %v3022, 0.112945676
    %v3024 = vmul.f32 %v3006, %v3023
    %v3025 = vadd.f32 %v3024, 0.4994258
    %v3026 = vmul.f32 %v3006, %v3025
    %v3027 = vadd.f32 %v3026, 1.0
    %v3028 = vrcp.pop %v3027
    %v3029 = vmul.f32 %v3027, %v3028
    %v3030 = vsub.f32 1.0, %v3029
    %v3031 = vmul.f32 %v3028, %v3030
    %v3032 = vadd.f32 %v3028, %v3031
    %vm3033 = vweird.f32 %v3027
    %vm3034 = vweird.f32 %v3028
    %vm3035 = vmor %vm3033, %vm3034
    %v3036 = vsel %vm3035, %v3028, %v3032
    %v3037 = vand.u32 2147483647, %v3027
    %vm3038 = vcmp.eq.f32.partialorder %v3037, 8.507059e+37
    %v3039 = vand.u32 %v3027, 2147483648
    %v3040 = vor.u32 1.1754944e-38, %v3039
    %v3041 = vsel %vm3038, %v3040, %v3036
    %v3042 = vmul.f32 %v3017, %v3041
    %v3043 = vmin.f32 %v3042, 1.0
    %v3044 = vmax.f32 %v3043, -1.0
    %v3045 = vmul.f32 %v3004, %v3004
    %v3046 = vmin.f32 16.0, %v3045
    %v3047 = vmul.f32 %v3046, 2.1237322e-06
    %v3048 = vadd.f32 %v3047, 0.00028619796
    %v3049 = vmul.f32 %v3046, %v3048
    %v3050 = vadd.f32 %v3049, 0.0036580483
    %v3051 = vmul.f32 %v3046, %v3050
    %v3052 = vadd.f32 %v3051, 0.05243302
    %v3053 = vmul.f32 %v3046, %v3052
    %v3054 = vadd.f32 %v3053, 0.18741608
    %v3055 = vmul.f32 %v3046, %v3054
    %v3056 = vadd.f32 %v3055, 1.1283791
    %v3057 = vmul.f32 %v3004, %v3056
    %v3058 = vmul.f32 %v3046, 3.8918573e-05
    %v3059 = vadd.f32 %v3058, 0.001143296
    %v3060 = vmul.f32 %v3046, %v3059
    %v3061 = vadd.f32 %v3060, 0.014752088
    %v3062 = vmul.f32 %v3046, %v3061
    %v3063 = vadd.f32 %v3062, 0.112945676
    %v3064 = vmul.f32 %v3046, %v3063
    %v3065 = vadd.f32 %v3064, 0.4994258
    %v3066 = vmul.f32 %v3046, %v3065
    %v3067 = vadd.f32 %v3066, 1.0
    %v3068 = vrcp.pop %v3067
    %v3069 = vmul.f32 %v3067, %v3068
    %v3070 = vsub.f32 1.0, %v3069
    %v3071 = vmul.f32 %v3068, %v3070
    %v3072 = vadd.f32 %v3068, %v3071
    %vm3073 = vweird.f32 %v3067
    %vm3074 = vweird.f32 %v3068
    %vm3075 = vmor %vm3073, %vm3074
    %v3076 = vsel %vm3075, %v3068, %v3072
    %v3077 = vand.u32 2147483647, %v3067
    %vm3078 = vcmp.eq.f32.partialorder %v3077, 8.507059e+37
    %v3079 = vand.u32 %v3067, 2147483648
    %v3080 = vor.u32 1.1754944e-38, %v3079
    %v3081 = vsel %vm3078, %v3080, %v3076
    %v3082 = vmul.f32 %v3057, %v3081
    %v3083 = vmin.f32 %v3082, 1.0
    %v3084 = vmax.f32 %v3083, -1.0
    %v3085 = vadd.f32 %v3044, 1.0
    %v3086 = vadd.f32 %v3084, 1.0
    %v3087 = vmul.f32 %v3001, %v3085
    %v3088 = vmul.f32 %v3002, %v3086
    %v3089 = vld [vmem:[#allocation2 + $0x250] sm:$0xff]
    %v3090 = vld [vmem:[#allocation2 + $0x258] sm:$0xff]
    %v3091 = vld [vmem:[#allocation2 + $0x260] sm:$0xff]
    %v3092 = vld [vmem:[#allocation2 + $0x268] sm:$0xff]
    %v3093 = vld [vmem:[#allocation2 + $0x270] sm:$0xff]
    %v3094 = vld [vmem:[#allocation2 + $0x278] sm:$0xff]
    %v3095 = vld [vmem:[#allocation2 + $0x280] sm:$0xff]
    %v3096 = vld [vmem:[#allocation2 + $0x288] sm:$0xff]
    %v3097 = vld [vmem:[#allocation2 + $0x290] sm:$0xff]
    %v3098 = vld [vmem:[#allocation2 + $0x298] sm:$0xff]
    %v3099 = vld [vmem:[#allocation2 + $0x2a0] sm:$0xff]
    %v3100 = vld [vmem:[#allocation2 + $0x2a8] sm:$0xff]
    %v3101 = vld [vmem:[#allocation2 + $0x2b0] sm:$0xff]
    %v3102 = vld [vmem:[#allocation2 + $0x2b8] sm:$0xff]
    %v3103 = vld [vmem:[#allocation2 + $0x2c0] sm:$0xff]
    %v3104 = vld [vmem:[#allocation2 + $0x2c8] sm:$0xff]
    %3105 = vmatpush.msra.mxu0 %v3104
    %3106 = vmatpush.msra.mxu0 %v3103
    %3107 = vmatpush.msra.mxu0 %v3102
    %3108 = vmatpush.msra.mxu0 %v3101
    %3109 = vmatpush.msra.mxu0 %v3100
    %3110 = vmatpush.msra.mxu0 %v3099
    %3111 = vmatpush.msra.mxu0 %v3098
    %3112 = vmatpush.msra.mxu0 %v3097
    %3113 = vmatpush.msra.mxu0 %v3096
    %3114 = vmatpush.msra.mxu0 %v3095
    %3115 = vmatpush.msra.mxu0 %v3094
    %3116 = vmatpush.msra.mxu0 %v3093
    %3117 = vmatpush.msra.mxu0 %v3092
    %3118 = vmatpush.msra.mxu0 %v3091
    %3119 = vmatpush.msra.mxu0 %v3090
    %3120 = vmatpush.msra.mxu0 %v3089
    %3121 = vmatmul.f32.gmra.mxu0 %v3087
    %v3122 = vpop.f32.mrf.mxu0
    %v3123 = vadd.f32 0.0, %v3122
    %3124 = vmatmul.f32.gmra.mxu0 %v3088
    %v3125 = vpop.f32.mrf.mxu0
    %v3126 = vadd.f32 0.0, %v3125
    %3127 = vdwg.mxu0
    %v3128 = vadd.f32 %v2912, %v3123
    %v3129 = vadd.f32 %v2913, %v3126
    %v3130 = vld [vmem:[%s5 + $0x1d] sm:$0x1]
    %v3131 = vperm.slane %v3130, 0
    %v3132 = vadd.f32 %v3128, %v3131
    %v3133 = vadd.f32 %v3129, %v3131
    %v3134 = vld [vmem:[%s5 + $0x1] sm:$0x1]
    %v3135 = vld [vmem:[%s5 + $0x2] sm:$0x1]
    %v3136 = vsel %vm104, %v3132, 0.0
    %3137 = vadd.xlane.f32.xlu0 %v3136
    %v3138 = vpop.xlane.xlu0 %3137
    %v3139 = vsel %vm104, %v3133, 0.0
    %3140 = vadd.xlane.f32.xlu0 %v3139
    %v3141 = vpop.xlane.xlu0 %3140
    %v3142 = vmul.f32 %v3138, %v117
    %v3143 = vmul.f32 %v3141, %v117
    %v3144 = vsub.f32 %v3132, %v3142
    %v3145 = vsub.f32 %v3133, %v3143
    %v3146 = vmul.f32 %v3144, %v3144
    %v3147 = vmul.f32 %v3145, %v3145
    %v3148 = vsel %vm104, %v3146, 0.0
    %3149 = vadd.xlane.f32.xlu0 %v3148
    %v3150 = vpop.xlane.xlu0 %3149
    %v3151 = vsel %vm104, %v3147, 0.0
    %3152 = vadd.xlane.f32.xlu0 %v3151
    %v3153 = vpop.xlane.xlu0 %3152
    %v3154 = vmul.f32 %v3150, %v117
    %v3155 = vmul.f32 %v3153, %v117
    %v3156 = vadd.f32 %v3154, 1e-06
    %v3157 = vadd.f32 %v3155, 1e-06
    %v3158 = vrsqrt.pop %v3156
    %v3159 = vmul.f32 %v3158, %v3156
    %v3160 = vmul.f32 %v3159, %v3158
    %v3161 = vmul.f32 0.5, %v3160
    %v3162 = vsub.f32 1.5, %v3161
    %v3163 = vmul.f32 %v3158, %v3162
    %vm3164 = vweird.f32 %v3156
    %vm3165 = vweird.f32 %v3158
    %vm3166 = vmor %vm3164, %vm3165
    %v3167 = vsel %vm3166, %v3158, %v3163
    %v3168 = vrsqrt.pop %v3157
    %v3169 = vmul.f32 %v3168, %v3157
    %v3170 = vmul.f32 %v3169, %v3168
    %v3171 = vmul.f32 0.5, %v3170
    %v3172 = vsub.f32 1.5, %v3171
    %v3173 = vmul.f32 %v3168, %v3172
    %vm3174 = vweird.f32 %v3157
    %vm3175 = vweird.f32 %v3168
    %vm3176 = vmor %vm3174, %vm3175
    %v3177 = vsel %vm3176, %v3168, %v3173
    %v3178 = vmul.f32 %v3144, %v3167
    %v3179 = vmul.f32 %v3145, %v3177
    %v3180 = vperm.slane %v3134, 0
    %v3181 = vmul.f32 %v3178, %v3180
    %v3182 = vmul.f32 %v3179, %v3180
    %v3183 = vperm.slane %v3135, 0
    %v3184 = vadd.f32 %v3181, %v3183
    %v3185 = vadd.f32 %v3182, %v3183
    %3186 = vst.msk [vmem:[#allocation5] sm:$0xff] %vm104, %v3184
    %3187 = vst.msk [vmem:[#allocation5 + $0x8] sm:$0xff] %vm104, %v3185
    %v3188 = vld [vmem:[#allocation2 + $0x30] sm:$0xff]
    %v3189 = vld [vmem:[#allocation2 + $0x38] sm:$0xff]
    %v3190 = vld [vmem:[#allocation2 + $0x40] sm:$0xff]
    %v3191 = vld [vmem:[#allocation2 + $0x48] sm:$0xff]
    %v3192 = vld [vmem:[%s5 + $0x3] sm:$0x1]
    %v3193 = vperm.slane %v3192, 0
    %v3195 = vsel %vm104, %v3184, 0
    %v3198 = vsel %vm104, %v3185, 0
    %3200 = vmatpush.msra.mxu0 0.0
    %3201 = vmatpush.msra.mxu0 0.0
    %3202 = vmatpush.msra.mxu0 0.0
    %3203 = vmatpush.msra.mxu0 0.0
    %3204 = vmatpush.msra.mxu0 0.0
    %3205 = vmatpush.msra.mxu0 0.0
    %3206 = vmatpush.msra.mxu0 0.0
    %3207 = vmatpush.msra.mxu0 0.0
    %3208 = vmatpush.msra.mxu0 0.0
    %3209 = vmatpush.msra.mxu0 0.0
    %3210 = vmatpush.msra.mxu0 0.0
    %3211 = vmatpush.msra.mxu0 0.0
    %3212 = vmatpush.msra.mxu0 %v3191
    %3213 = vmatpush.msra.mxu0 %v3190
    %3214 = vmatpush.msra.mxu0 %v3189
    %3215 = vmatpush.msra.mxu0 %v3188
    %3216 = vmatmul.f32.gmra.mxu0 %v3195
    %v3217 = vpop.f32.mrf.mxu0
    %v3218 = vadd.f32 %v3193, %v3217
    %3219 = vmatmul.f32.gmra.mxu0 %v3198
    %v3220 = vpop.f32.mrf.mxu0
    %v3221 = vadd.f32 %v3193, %v3220
    %3222 = vdwg.mxu0
    %3223 = vst [vmem:[%s6] sm:$0xff] %v3218
    %3224 = vst [vmem:[%s6 + $0x8] sm:$0xff] %v3221
    // Predicated region
    $region30: #{forward.1} parent=1 // pred_check
      _
    $region31: #{forward.1} parent=1 // pred_check_branch
      %3226 = sbr.rel (0) target = $region33
    $region32: #{forward.1} parent=1 // pred_region
      _
    $region33: #{forward.1} parent=1 // pred_fallthru
      _
    // Predicated region
    $region34: #{forward.1} parent=1 // pred_check
      _
    $region35: #{forward.1} parent=1 // pred_check_branch
      %3228 = sbr.rel (0) target = $region37
    $region36: #{forward.1} parent=1 // pred_region
      %3230 = vsyncadd [#allocation4], 0
      %s3231 = sshll.u32 [#allocation5], 4
      %s3232 = int_to_ptr.vmem [resolvable:$true] %s3231
      %s3233 = sshll.u32 %s7, 4
      %s3234 = int_to_ptr.hbm [resolvable:$true] %s3233
      %3239 = dma.vmem_to_hbm [thread:$0]  %s3232, 256, %s3234, [#allocation4], 128, 128, 8
    $region37: #{forward.1} parent=1 // pred_fallthru
      _
    // Predicated region
    $region38: #{forward.1} parent=1 // pred_check
      _
    $region39: #{forward.1} parent=1 // pred_check_branch
      %3241 = sbr.rel (0) target = $region41
    $region40: #{forward.1} parent=1 // pred_region
      _
    $region41: #{forward.1} parent=1 // pred_fallthru
      _
    // Predicated region
    $region42: #{forward.1} parent=1 // pred_check
      _
    $region43: #{forward.1} parent=1 // pred_check_branch
      %3243 = sbr.rel (0) target = $region45
    $region44: #{forward.1} parent=1 // pred_region
      %3245 = dma.done [#allocation4], 256
    $region45: #{forward.1} parent=1 // pred_fallthru
      _
    %3246 = vsyncpa [#allocation3], 1
    %3247 = vsyncpa [#allocation4], 1

</llo_original>
